<compile_context>
chip_gen: v5e
topology: v5e:2x2
jax: 0.10.0
libtpu: 0.0.40
codegen_flags: <defaults>
</compile_context>

<pallas_src>
import jax
import jax.numpy as jnp
from jax.experimental import pallas as pl
from jax.experimental.pallas import tpu as pltpu  # noqa: F401  (TPU backend)

# ----------------------------- config (small) -----------------------------
BATCH = 2
IN_CH = 3
IMG = 32
PATCH = 8
GRID_HW = IMG // PATCH            # 4
NUM_PATCHES = GRID_HW * GRID_HW   # 16
SEQ = NUM_PATCHES + 1             # 17 real tokens (CLS + patches)
SEQ_PAD = 32                      # per-image sequence padded to sublane multiple
TOK = BATCH * SEQ_PAD             # 64 flattened (padded) tokens
PATCH_DIM = IN_CH * PATCH * PATCH # 192
HIDDEN = 32
NUM_HEADS = 2
HEAD_DIM = HIDDEN // NUM_HEADS    # 16
INTER = 64
NUM_LAYERS = 2
PROJ_DIM = 16
NUM_CLASSES = 7                   # {'akiec','bcc','bkl','df','mel','nv','vasc'}
LOGIT_PAD = 128                   # lane-dense logits output width
LN_EPS = 1e-5
HEAD_ROWS = 8 + HIDDEN + PROJ_DIM # head blob rows (globals pad to 8-aligned)

_F32 = jnp.float32
_BF16 = jnp.bfloat16


# ----------------------------- kernel helpers -----------------------------
def _ln(x, g, b, eps=LN_EPS):
    mu = jnp.mean(x, axis=-1, keepdims=True)
    var = jnp.mean((x - mu) ** 2, axis=-1, keepdims=True)
    return (x - mu) * jax.lax.rsqrt(var + eps) * g + b


# ----------------------------- fused kernel --------------------------------
def _clip_fused_kernel(patches_ref, tok_const_ref, w_patch_ref,
                       w_enc_a_ref, w_enc_b_ref, vec_layer_ref, head_ref,
                       o_ref):
    # per-token constants: [additive attn bias (TOK) | pos/class add (HIDDEN)]
    mask_bias = tok_const_ref[:, :TOK]                       # (TOK, TOK) f32
    add = tok_const_ref[:, TOK:TOK + HIDDEN]                 # (TOK, HIDDEN) f32

    # ---- patch embed (bf16 MXU, f32 accumulate) + pos/class emb + pre-LN ----
    x = jnp.dot(patches_ref[...], w_patch_ref[...],
                preferred_element_type=_F32) + add           # (TOK, HIDDEN) f32
    x = _ln(x, head_ref[0:1, :HIDDEN], head_ref[1:2, :HIDDEN])

    for l in range(NUM_LAYERS):          # static unroll, weights stay in VMEM
        wa = w_enc_a_ref[l]              # (HIDDEN, 192) bf16 = [wo|wqkv|w1]
        wo = wa[:, :HIDDEN]              # (32, 32)
        wqkv = wa[:, HIDDEN:4 * HIDDEN]  # (32, 96), Q cols pre-scaled
        w1 = wa[:, 4 * HIDDEN:]          # (32, 64)
        w2 = w_enc_b_ref[l]              # (64, 32) bf16
        vl = vec_layer_ref[l]            # (8, 128) f32
        ln1_g, ln1_b = vl[0:1, :HIDDEN], vl[1:2, :HIDDEN]
        bqkv = vl[2:3, :3 * HIDDEN]      # Q part pre-scaled
        bo = vl[3:4, :HIDDEN]
        ln2_g, ln2_b = vl[4:5, :HIDDEN], vl[5:6, :HIDDEN]
        b1 = vl[6:7, :INTER]
        b2 = vl[7:8, :HIDDEN]

        # --- self-attention block ---
        h = _ln(x, ln1_g, ln1_b)
        qkv = jnp.dot(h.astype(_BF16), wqkv,
                      preferred_element_type=_F32) + bqkv    # (TOK, 96) f32
        heads = []
        for hd in range(NUM_HEADS):
            q = qkv[:, hd * HEAD_DIM:(hd + 1) * HEAD_DIM]
            k = qkv[:, HIDDEN + hd * HEAD_DIM:HIDDEN + (hd + 1) * HEAD_DIM]
            v = qkv[:, 2 * HIDDEN + hd * HEAD_DIM:2 * HIDDEN + (hd + 1) * HEAD_DIM]
            s = jax.lax.dot_general(q.astype(_BF16), k.astype(_BF16),
                                    (((1,), (1,)), ((), ())),
                                    preferred_element_type=_F32)     # (TOK, TOK)
            s = s + mask_bias
            s = s - jnp.max(s, axis=-1, keepdims=True)
            p = jnp.exp(s)
            p = p / jnp.sum(p, axis=-1, keepdims=True)               # exact
            heads.append(jnp.dot(p.astype(_BF16), v.astype(_BF16),
                                 preferred_element_type=_F32))       # (TOK, 16)
        attn = jnp.concatenate(heads, axis=-1)                       # (TOK, 32)
        x = x + jnp.dot(attn.astype(_BF16), wo,
                        preferred_element_type=_F32) + bo

        # --- MLP block (quick_gelu) ---
        h2 = _ln(x, ln2_g, ln2_b)
        f = jnp.dot(h2.astype(_BF16), w1, preferred_element_type=_F32) + b1
        f = f * jax.nn.sigmoid(1.702 * f)
        x = x + jnp.dot(f.astype(_BF16), w2, preferred_element_type=_F32) + b2

    # ---- head (all f32): CLS rows sit at sublane-aligned offsets 0, SEQ_PAD ----
    cls = jnp.concatenate(
        [x[b * SEQ_PAD:b * SEQ_PAD + 1, :] for b in range(BATCH)], axis=0)
    pooled = _ln(cls, head_ref[2:3, :HIDDEN], head_ref[3:4, :HIDDEN])  # (B, H)
    w_proj = head_ref[8:8 + HIDDEN, :PROJ_DIM]                         # (32, 16)
    img = jnp.dot(pooled, w_proj, preferred_element_type=_F32)         # (B, 16)
    img = img * jax.lax.rsqrt(
        jnp.maximum(jnp.sum(img * img, axis=-1, keepdims=True), 1e-24))
    txt_t = head_ref[8 + HIDDEN:8 + HIDDEN + PROJ_DIM, :]              # (16, 128)
    o_ref[...] = jnp.dot(img, txt_t, preferred_element_type=_F32)      # (B, 128)


# ----------------------------- one-time weight packing ----------------------
def pack_params(params):
    """Runs ONCE (outside jit): pack all weights into a few kernel-ready blobs."""
    scale = HEAD_DIM ** -0.5
    wa_list, wb_list, vl_list = [], [], []
    for lp in params['layers']:
        wqkv = jnp.concatenate([lp['wq'] * scale, lp['wk'], lp['wv']], axis=1)
        wa_list.append(jnp.concatenate([lp['wo'], wqkv, lp['w1']], axis=1))  # (32,192)
        wb_list.append(lp['w2'])                                             # (64, 32)
        bqkv = jnp.concatenate([lp['bq'] * scale, lp['bk'], lp['bv']], axis=1)
        rows = jnp.zeros((8, 128), _F32)
        rows = rows.at[0, :HIDDEN].set(lp['ln1_g'][0])
        rows = rows.at[1, :HIDDEN].set(lp['ln1_b'][0])
        rows = rows.at[2, :3 * HIDDEN].set(bqkv[0])
        rows = rows.at[3, :HIDDEN].set(lp['bo'][0])
        rows = rows.at[4, :HIDDEN].set(lp['ln2_g'][0])
        rows = rows.at[5, :HIDDEN].set(lp['ln2_b'][0])
        rows = rows.at[6, :INTER].set(lp['b1'][0])
        rows = rows.at[7, :HIDDEN].set(lp['b2'][0])
        vl_list.append(rows)

    # head blob: [ln_pre_g, ln_pre_b, post_g, post_b, 4 pad rows,
    #             w_proj (32 rows), normalized text_emb^T (16 rows, 128 lanes)]
    txt = params['text_emb']
    txt_n = txt * jax.lax.rsqrt(
        jnp.maximum(jnp.sum(txt * txt, axis=-1, keepdims=True), 1e-24))
    head = jnp.zeros((HEAD_ROWS, 128), _F32)
    head = head.at[0, :HIDDEN].set(params['ln_pre_g'][0])
    head = head.at[1, :HIDDEN].set(params['ln_pre_b'][0])
    head = head.at[2, :HIDDEN].set(params['post_ln_g'][0])
    head = head.at[3, :HIDDEN].set(params['post_ln_b'][0])
    head = head.at[8:8 + HIDDEN, :PROJ_DIM].set(params['w_proj'])
    head = head.at[8 + HIDDEN:8 + HIDDEN + PROJ_DIM, :NUM_CLASSES].set(txt_n.T)

    # per-token constants: additive attention bias + pos/class-emb add term
    add = jnp.zeros((SEQ_PAD, HIDDEN), _F32)
    add = add.at[:SEQ].set(params['pos_emb'])
    add = add.at[0].add(params['class_emb'])
    add = jnp.tile(add, (BATCH, 1))                                  # (TOK, H)

    row_img = jnp.arange(TOK)[:, None] // SEQ_PAD
    col_img = jnp.arange(TOK)[None, :] // SEQ_PAD
    col_real = (jnp.arange(TOK)[None, :] % SEQ_PAD) < SEQ
    ok = (row_img == col_img) & col_real
    bias = jnp.where(ok, 0.0, -1e30).astype(_F32)                    # (TOK, TOK)
    tok_const = jnp.concatenate([bias, add], axis=1)                 # (TOK, TOK+H)

    return dict(
        w_patch=params['w_patch'].astype(_BF16),                     # (192, 32)
        w_enc_a=jnp.stack(wa_list).astype(_BF16),                    # (L, 32, 192)
        w_enc_b=jnp.stack(wb_list).astype(_BF16),                    # (L, 64, 32)
        vec_layer=jnp.stack(vl_list),                                # (L, 8, 128)
        head=head,                                                   # (56, 128)
        tok_const=tok_const,                                         # (64, 96)
    )


# ----------------------------- cost estimate --------------------------------
def _make_cost_estimate():
    flops = 2 * TOK * PATCH_DIM * HIDDEN
    per_layer = (2 * TOK * HIDDEN * 3 * HIDDEN
                 + NUM_HEADS * 2 * TOK * HEAD_DIM * TOK
                 + NUM_HEADS * 2 * TOK * TOK * HEAD_DIM
                 + 2 * TOK * HIDDEN * HIDDEN
                 + 2 * TOK * HIDDEN * INTER
                 + 2 * TOK * INTER * HIDDEN)
    flops += NUM_LAYERS * per_layer
    flops += 2 * BATCH * HIDDEN * PROJ_DIM + 2 * BATCH * PROJ_DIM * LOGIT_PAD
    trans = NUM_LAYERS * (NUM_HEADS * TOK * TOK + TOK * INTER) + 8 * TOK
    byts = (TOK * PATCH_DIM * 2 + TOK * (TOK + HIDDEN) * 4 + PATCH_DIM * HIDDEN * 2
            + NUM_LAYERS * HIDDEN * 192 * 2 + NUM_LAYERS * INTER * HIDDEN * 2
            + NUM_LAYERS * 8 * 128 * 4 + HEAD_ROWS * 128 * 4 + BATCH * LOGIT_PAD * 4)
    return pl.CostEstimate(flops=flops, transcendentals=trans, bytes_accessed=byts)


_COST = _make_cost_estimate()


# ----------------------------- full forward ---------------------------------
def clip_zero_shot_forward(pixel_values, packed):
    """pixel_values: (B, C, H, W) NCHW float32 -> logits (B, NUM_CLASSES)."""
    B = pixel_values.shape[0]
    # im2col for stride==kernel conv: order (c, ph, pw) matches Conv2d flatten
    patches = pixel_values.reshape(B, IN_CH, GRID_HW, PATCH, GRID_HW, PATCH)
    patches = patches.transpose(0, 2, 4, 1, 3, 5).reshape(B, NUM_PATCHES, PATCH_DIM)
    # row 0 of each padded sequence is the CLS slot; rows 17..31 are pad (zeros)
    patches = jnp.pad(patches, ((0, 0), (1, SEQ_PAD - 1 - NUM_PATCHES), (0, 0)))
    patches_flat = patches.reshape(TOK, PATCH_DIM).astype(_BF16)

    logits_pad = pl.pallas_call(
        _clip_fused_kernel,
        out_shape=jax.ShapeDtypeStruct((BATCH, LOGIT_PAD), _F32),
        cost_estimate=_COST,
    )(patches_flat, packed['tok_const'], packed['w_patch'],
      packed['w_enc_a'], packed['w_enc_b'], packed['vec_layer'], packed['head'])
    return logits_pad[:, :NUM_CLASSES]


# ----------------------------- reference (plain JAX, f32) -------------------
def _ln_ref(x, g, b, eps=LN_EPS):
    mu = jnp.mean(x, axis=-1, keepdims=True)
    var = jnp.mean((x - mu) ** 2, axis=-1, keepdims=True)
    return (x - mu) * jax.lax.rsqrt(var + eps) * g + b


def reference_forward(pixel_values, params):
    B = pixel_values.shape[0]
    patches = pixel_values.reshape(B, IN_CH, GRID_HW, PATCH, GRID_HW, PATCH)
    patches = patches.transpose(0, 2, 4, 1, 3, 5).reshape(B, NUM_PATCHES, PATCH_DIM)
    pe = patches @ params['w_patch']
    cls = jnp.broadcast_to(params['class_emb'][None, None, :], (B, 1, HIDDEN))
    x = jnp.concatenate([cls, pe], axis=1) + params['pos_emb'][None]
    x = _ln_ref(x, params['ln_pre_g'], params['ln_pre_b'])
    scale = HEAD_DIM ** -0.5
    for lp in params['layers']:
        h = _ln_ref(x, lp['ln1_g'], lp['ln1_b'])
        q = (h @ lp['wq'] + lp['bq']).reshape(B, SEQ, NUM_HEADS, HEAD_DIM).transpose(0, 2, 1, 3)
        k = (h @ lp['wk'] + lp['bk']).reshape(B, SEQ, NUM_HEADS, HEAD_DIM).transpose(0, 2, 1, 3)
        v = (h @ lp['wv'] + lp['bv']).reshape(B, SEQ, NUM_HEADS, HEAD_DIM).transpose(0, 2, 1, 3)
        s = jnp.einsum('bhqd,bhkd->bhqk', q, k) * scale
        p = jax.nn.softmax(s, axis=-1)
        o = jnp.einsum('bhqk,bhkd->bhqd', p, v).transpose(0, 2, 1, 3).reshape(B, SEQ, HIDDEN)
        x = x + o @ lp['wo'] + lp['bo']
        h2 = _ln_ref(x, lp['ln2_g'], lp['ln2_b'])
        f = h2 @ lp['w1'] + lp['b1']
        f = f * jax.nn.sigmoid(1.702 * f)
        x = x + f @ lp['w2'] + lp['b2']
    pooled = _ln_ref(x[:, 0, :], params['post_ln_g'], params['post_ln_b'])
    img = pooled @ params['w_proj']
    img_n = img / jnp.maximum(jnp.linalg.norm(img, axis=-1, keepdims=True), 1e-12)
    txt = params['text_emb']
    txt_n = txt / jnp.maximum(jnp.linalg.norm(txt, axis=-1, keepdims=True), 1e-12)
    return img_n @ txt_n.T


# ----------------------------- parameter init -------------------------------
def init_params(key):
    def nrm(k, shape, scale=0.02):
        return (scale * jax.random.normal(k, shape)).astype(_F32)

    keys = jax.random.split(key, 5 + NUM_LAYERS)
    params = dict(
        w_patch=nrm(keys[0], (PATCH_DIM, HIDDEN)),
        class_emb=nrm(keys[1], (HIDDEN,)),
        pos_emb=nrm(keys[2], (SEQ, HIDDEN)),
        ln_pre_g=jnp.ones((1, HIDDEN), _F32),
        ln_pre_b=jnp.zeros((1, HIDDEN), _F32),
        post_ln_g=jnp.ones((1, HIDDEN), _F32),
        post_ln_b=jnp.zeros((1, HIDDEN), _F32),
        w_proj=nrm(keys[3], (HIDDEN, PROJ_DIM)),
        # deterministic stand-ins for the cached get_text_features() embeddings
        text_emb=nrm(keys[4], (NUM_CLASSES, PROJ_DIM), scale=1.0),
        layers=[],
    )
    for i in range(NUM_LAYERS):
        lk = jax.random.split(keys[5 + i], 12)
        params['layers'].append(dict(
            ln1_g=jnp.ones((1, HIDDEN), _F32),
            ln1_b=jnp.zeros((1, HIDDEN), _F32),
            wq=nrm(lk[0], (HIDDEN, HIDDEN)), bq=nrm(lk[1], (1, HIDDEN)),
            wk=nrm(lk[2], (HIDDEN, HIDDEN)), bk=nrm(lk[3], (1, HIDDEN)),
            wv=nrm(lk[4], (HIDDEN, HIDDEN)), bv=nrm(lk[5], (1, HIDDEN)),
            wo=nrm(lk[6], (HIDDEN, HIDDEN)), bo=nrm(lk[7], (1, HIDDEN)),
            ln2_g=jnp.ones((1, HIDDEN), _F32),
            ln2_b=jnp.zeros((1, HIDDEN), _F32),
            w1=nrm(lk[8], (HIDDEN, INTER)), b1=nrm(lk[9], (1, INTER)),
            w2=nrm(lk[10], (INTER, HIDDEN)), b2=nrm(lk[11], (1, HIDDEN)),
        ))
    return params


# ----------------------------- main ------------------------------------------
if __name__ == "__main__":
    key = jax.random.PRNGKey(0)
    pkey, xkey = jax.random.split(key)
    params = init_params(pkey)
    packed = pack_params(params)          # one-time packing, outside jit
    pixel_values = jax.random.normal(xkey, (BATCH, IN_CH, IMG, IMG), _F32)

    fwd = jax.jit(clip_zero_shot_forward)
    logits = jax.block_until_ready(fwd(pixel_values, packed))

    assert logits.shape == (BATCH, NUM_CLASSES), logits.shape
    ref = reference_forward(pixel_values, params)
    # Encoder matmuls use bf16 MXU operands (f32 accumulation) per the perf
    # review, so compare against the all-f32 reference with a mixed-precision
    # tolerance on the cosine-similarity logits.
    if not bool(jnp.allclose(logits, ref, atol=2e-2, rtol=2e-2)):
        raise AssertionError(
            f"Pallas logits mismatch vs reference:\n{logits}\nvs\n{ref}")
    print("KERNEL_OK")
</pallas_src>

<mosaic_0001>
module attributes {stable_mosaic.version = 11 : i64} {
  func.func @_clip_fused_kernel(%arg0: memref<64x192xbf16, #tpu.memory_space<vmem>>, %arg1: memref<64x96xf32, #tpu.memory_space<vmem>>, %arg2: memref<192x32xbf16, #tpu.memory_space<vmem>>, %arg3: memref<2x32x192xbf16, #tpu.memory_space<vmem>>, %arg4: memref<2x64x32xbf16, #tpu.memory_space<vmem>>, %arg5: memref<2x8x128xf32, #tpu.memory_space<vmem>>, %arg6: memref<56x128xf32, #tpu.memory_space<vmem>>, %arg7: memref<2x128xf32, #tpu.memory_space<vmem>>) attributes {dimension_semantics = [], scalar_prefetch = 0 : i64, scratch_operands = 0 : i64, tpu.core_type = #tpu.core_type<tc>} {
    %c0 = arith.constant 0 : index
    %c0_0 = arith.constant 0 : index
    %0 = vector.load %arg1[%c0, %c0_0] : memref<64x96xf32, #tpu.memory_space<vmem>>, vector<64x64xf32>
    %c0_1 = arith.constant 0 : index
    %c64 = arith.constant 64 : index
    %1 = vector.load %arg1[%c0_1, %c64] : memref<64x96xf32, #tpu.memory_space<vmem>>, vector<64x32xf32>
    %c0_2 = arith.constant 0 : index
    %c0_3 = arith.constant 0 : index
    %2 = vector.load %arg0[%c0_2, %c0_3] : memref<64x192xbf16, #tpu.memory_space<vmem>>, vector<64x192xbf16>
    %c0_4 = arith.constant 0 : index
    %c0_5 = arith.constant 0 : index
    %3 = vector.load %arg2[%c0_4, %c0_5] : memref<192x32xbf16, #tpu.memory_space<vmem>>, vector<192x32xbf16>
    %cst = arith.constant dense<0.000000e+00> : vector<64x32xf32>
    %4 = tpu.matmul %2, %3, %cst {dimension_numbers = #tpu.dot_dimension_numbers<[1], [0], [0], [1], [0, 0, 1, 1], [], []>} : vector<64x192xbf16>, vector<192x32xbf16>, vector<64x32xf32> -> vector<64x32xf32>
    %5 = arith.addf %4, %1 : vector<64x32xf32>
    %c0_6 = arith.constant 0 : index
    %c0_7 = arith.constant 0 : index
    %6 = vector.load %arg6[%c0_6, %c0_7] : memref<56x128xf32, #tpu.memory_space<vmem>>, vector<1x32xf32>
    %c1 = arith.constant 1 : index
    %c0_8 = arith.constant 0 : index
    %7 = vector.load %arg6[%c1, %c0_8] : memref<56x128xf32, #tpu.memory_space<vmem>>, vector<1x32xf32>
    %cst_9 = arith.constant dense<0.000000e+00> : vector<64xf32>
    %8 = vector.multi_reduction <add>, %5, %cst_9 [1] : vector<64x32xf32> to vector<64xf32>
    %9 = vector.shape_cast %8 : vector<64xf32> to vector<64x1xf32>
    %cst_10 = arith.constant 3.200000e+01 : f32
    %10 = vector.broadcast %cst_10 : f32 to vector<64x1xf32>
    %11 = arith.divf %9, %10 : vector<64x1xf32>
    %12 = vector.broadcast %11 : vector<64x1xf32> to vector<64x32xf32>
    %13 = arith.subf %5, %12 : vector<64x32xf32>
    %14 = arith.mulf %13, %13 : vector<64x32xf32>
    %cst_11 = arith.constant dense<0.000000e+00> : vector<64xf32>
    %15 = vector.multi_reduction <add>, %14, %cst_11 [1] : vector<64x32xf32> to vector<64xf32>
    %16 = vector.shape_cast %15 : vector<64xf32> to vector<64x1xf32>
    %cst_12 = arith.constant 3.200000e+01 : f32
    %17 = vector.broadcast %cst_12 : f32 to vector<64x1xf32>
    %18 = arith.divf %16, %17 : vector<64x1xf32>
    %19 = vector.broadcast %11 : vector<64x1xf32> to vector<64x32xf32>
    %20 = arith.subf %5, %19 : vector<64x32xf32>
    %cst_13 = arith.constant 9.99999974E-6 : f32
    %21 = vector.broadcast %cst_13 : f32 to vector<64x1xf32>
    %22 = arith.addf %18, %21 : vector<64x1xf32>
    %23 = math.rsqrt %22 : vector<64x1xf32>
    %24 = vector.broadcast %23 : vector<64x1xf32> to vector<64x32xf32>
    %25 = arith.mulf %20, %24 : vector<64x32xf32>
    %26 = vector.broadcast %6 : vector<1x32xf32> to vector<64x32xf32>
    %27 = arith.mulf %25, %26 : vector<64x32xf32>
    %28 = vector.broadcast %7 : vector<1x32xf32> to vector<64x32xf32>
    %29 = arith.addf %27, %28 : vector<64x32xf32>
    %c0_14 = arith.constant 0 : index
    %c0_15 = arith.constant 0 : index
    %c0_16 = arith.constant 0 : index
    %30 = vector.load %arg3[%c0_14, %c0_15, %c0_16] : memref<2x32x192xbf16, #tpu.memory_space<vmem>>, vector<1x32x192xbf16>
    %31 = vector.shape_cast %30 : vector<1x32x192xbf16> to vector<32x192xbf16>
    %32 = vector.extract_strided_slice %31 {offsets = [0, 0], sizes = [32, 32], strides = [1, 1]} : vector<32x192xbf16> to vector<32x32xbf16>
    %33 = vector.extract_strided_slice %31 {offsets = [0, 32], sizes = [32, 96], strides = [1, 1]} : vector<32x192xbf16> to vector<32x96xbf16>
    %34 = vector.extract_strided_slice %31 {offsets = [0, 128], sizes = [32, 64], strides = [1, 1]} : vector<32x192xbf16> to vector<32x64xbf16>
    %c0_17 = arith.constant 0 : index
    %c0_18 = arith.constant 0 : index
    %c0_19 = arith.constant 0 : index
    %35 = vector.load %arg4[%c0_17, %c0_18, %c0_19] : memref<2x64x32xbf16, #tpu.memory_space<vmem>>, vector<1x64x32xbf16>
    %36 = vector.shape_cast %35 : vector<1x64x32xbf16> to vector<64x32xbf16>
    %c0_20 = arith.constant 0 : index
    %c0_21 = arith.constant 0 : index
    %c0_22 = arith.constant 0 : index
    %37 = vector.load %arg5[%c0_20, %c0_21, %c0_22] : memref<2x8x128xf32, #tpu.memory_space<vmem>>, vector<1x8x128xf32>
    %38 = vector.shape_cast %37 : vector<1x8x128xf32> to vector<8x128xf32>
    %39 = vector.extract_strided_slice %38 {offsets = [0, 0], sizes = [1, 32], strides = [1, 1]} : vector<8x128xf32> to vector<1x32xf32>
    %40 = vector.extract_strided_slice %38 {offsets = [1, 0], sizes = [1, 32], strides = [1, 1]} : vector<8x128xf32> to vector<1x32xf32>
    %41 = vector.extract_strided_slice %38 {offsets = [2, 0], sizes = [1, 96], strides = [1, 1]} : vector<8x128xf32> to vector<1x96xf32>
    %42 = vector.extract_strided_slice %38 {offsets = [3, 0], sizes = [1, 32], strides = [1, 1]} : vector<8x128xf32> to vector<1x32xf32>
    %43 = vector.extract_strided_slice %38 {offsets = [4, 0], sizes = [1, 32], strides = [1, 1]} : vector<8x128xf32> to vector<1x32xf32>
    %44 = vector.extract_strided_slice %38 {offsets = [5, 0], sizes = [1, 32], strides = [1, 1]} : vector<8x128xf32> to vector<1x32xf32>
    %45 = vector.extract_strided_slice %38 {offsets = [6, 0], sizes = [1, 64], strides = [1, 1]} : vector<8x128xf32> to vector<1x64xf32>
    %46 = vector.extract_strided_slice %38 {offsets = [7, 0], sizes = [1, 32], strides = [1, 1]} : vector<8x128xf32> to vector<1x32xf32>
    %cst_23 = arith.constant dense<0.000000e+00> : vector<64xf32>
    %47 = vector.multi_reduction <add>, %29, %cst_23 [1] : vector<64x32xf32> to vector<64xf32>
    %48 = vector.shape_cast %47 : vector<64xf32> to vector<64x1xf32>
    %cst_24 = arith.constant 3.200000e+01 : f32
    %49 = vector.broadcast %cst_24 : f32 to vector<64x1xf32>
    %50 = arith.divf %48, %49 : vector<64x1xf32>
    %51 = vector.broadcast %50 : vector<64x1xf32> to vector<64x32xf32>
    %52 = arith.subf %29, %51 : vector<64x32xf32>
    %53 = arith.mulf %52, %52 : vector<64x32xf32>
    %cst_25 = arith.constant dense<0.000000e+00> : vector<64xf32>
    %54 = vector.multi_reduction <add>, %53, %cst_25 [1] : vector<64x32xf32> to vector<64xf32>
    %55 = vector.shape_cast %54 : vector<64xf32> to vector<64x1xf32>
    %cst_26 = arith.constant 3.200000e+01 : f32
    %56 = vector.broadcast %cst_26 : f32 to vector<64x1xf32>
    %57 = arith.divf %55, %56 : vector<64x1xf32>
    %58 = vector.broadcast %50 : vector<64x1xf32> to vector<64x32xf32>
    %59 = arith.subf %29, %58 : vector<64x32xf32>
    %cst_27 = arith.constant 9.99999974E-6 : f32
    %60 = vector.broadcast %cst_27 : f32 to vector<64x1xf32>
    %61 = arith.addf %57, %60 : vector<64x1xf32>
    %62 = math.rsqrt %61 : vector<64x1xf32>
    %63 = vector.broadcast %62 : vector<64x1xf32> to vector<64x32xf32>
    %64 = arith.mulf %59, %63 : vector<64x32xf32>
    %65 = vector.broadcast %39 : vector<1x32xf32> to vector<64x32xf32>
    %66 = arith.mulf %64, %65 : vector<64x32xf32>
    %67 = vector.broadcast %40 : vector<1x32xf32> to vector<64x32xf32>
    %68 = arith.addf %66, %67 : vector<64x32xf32>
    %69 = arith.truncf %68 : vector<64x32xf32> to vector<64x32xbf16>
    %cst_28 = arith.constant dense<0.000000e+00> : vector<64x96xf32>
    %70 = tpu.matmul %69, %33, %cst_28 {dimension_numbers = #tpu.dot_dimension_numbers<[1], [0], [0], [1], [0, 0, 1, 1], [], []>} : vector<64x32xbf16>, vector<32x96xbf16>, vector<64x96xf32> -> vector<64x96xf32>
    %71 = vector.broadcast %41 : vector<1x96xf32> to vector<64x96xf32>
    %72 = arith.addf %70, %71 : vector<64x96xf32>
    %73 = vector.extract_strided_slice %72 {offsets = [0, 0], sizes = [64, 16], strides = [1, 1]} : vector<64x96xf32> to vector<64x16xf32>
    %74 = vector.extract_strided_slice %72 {offsets = [0, 32], sizes = [64, 16], strides = [1, 1]} : vector<64x96xf32> to vector<64x16xf32>
    %75 = vector.extract_strided_slice %72 {offsets = [0, 64], sizes = [64, 16], strides = [1, 1]} : vector<64x96xf32> to vector<64x16xf32>
    %76 = arith.truncf %73 : vector<64x16xf32> to vector<64x16xbf16>
    %77 = arith.truncf %74 : vector<64x16xf32> to vector<64x16xbf16>
    %cst_29 = arith.constant dense<0.000000e+00> : vector<64x64xf32>
    %78 = tpu.matmul %76, %77, %cst_29 {dimension_numbers = #tpu.dot_dimension_numbers<[1], [1], [0], [0], [0, 0, 1, 0], [], []>} : vector<64x16xbf16>, vector<64x16xbf16>, vector<64x64xf32> -> vector<64x64xf32>
    %79 = arith.addf %78, %0 : vector<64x64xf32>
    %cst_30 = arith.constant dense<0xFF800000> : vector<64xf32>
    %80 = vector.multi_reduction <maximumf>, %79, %cst_30 [1] : vector<64x64xf32> to vector<64xf32>
    %81 = vector.shape_cast %80 : vector<64xf32> to vector<64x1xf32>
    %82 = vector.broadcast %81 : vector<64x1xf32> to vector<64x64xf32>
    %83 = arith.subf %79, %82 : vector<64x64xf32>
    %84 = math.exp %83 : vector<64x64xf32>
    %cst_31 = arith.constant dense<0.000000e+00> : vector<64xf32>
    %85 = vector.multi_reduction <add>, %84, %cst_31 [1] : vector<64x64xf32> to vector<64xf32>
    %86 = vector.shape_cast %85 : vector<64xf32> to vector<64x1xf32>
    %87 = vector.broadcast %86 : vector<64x1xf32> to vector<64x64xf32>
    %88 = arith.divf %84, %87 : vector<64x64xf32>
    %89 = arith.truncf %88 : vector<64x64xf32> to vector<64x64xbf16>
    %90 = arith.truncf %75 : vector<64x16xf32> to vector<64x16xbf16>
    %cst_32 = arith.constant dense<0.000000e+00> : vector<64x16xf32>
    %91 = tpu.matmul %89, %90, %cst_32 {dimension_numbers = #tpu.dot_dimension_numbers<[1], [0], [0], [1], [0, 0, 1, 1], [], []>} : vector<64x64xbf16>, vector<64x16xbf16>, vector<64x16xf32> -> vector<64x16xf32>
    %92 = vector.extract_strided_slice %72 {offsets = [0, 16], sizes = [64, 16], strides = [1, 1]} : vector<64x96xf32> to vector<64x16xf32>
    %93 = vector.extract_strided_slice %72 {offsets = [0, 48], sizes = [64, 16], strides = [1, 1]} : vector<64x96xf32> to vector<64x16xf32>
    %94 = vector.extract_strided_slice %72 {offsets = [0, 80], sizes = [64, 16], strides = [1, 1]} : vector<64x96xf32> to vector<64x16xf32>
    %95 = arith.truncf %92 : vector<64x16xf32> to vector<64x16xbf16>
    %96 = arith.truncf %93 : vector<64x16xf32> to vector<64x16xbf16>
    %cst_33 = arith.constant dense<0.000000e+00> : vector<64x64xf32>
    %97 = tpu.matmul %95, %96, %cst_33 {dimension_numbers = #tpu.dot_dimension_numbers<[1], [1], [0], [0], [0, 0, 1, 0], [], []>} : vector<64x16xbf16>, vector<64x16xbf16>, vector<64x64xf32> -> vector<64x64xf32>
    %98 = arith.addf %97, %0 : vector<64x64xf32>
    %cst_34 = arith.constant dense<0xFF800000> : vector<64xf32>
    %99 = vector.multi_reduction <maximumf>, %98, %cst_34 [1] : vector<64x64xf32> to vector<64xf32>
    %100 = vector.shape_cast %99 : vector<64xf32> to vector<64x1xf32>
    %101 = vector.broadcast %100 : vector<64x1xf32> to vector<64x64xf32>
    %102 = arith.subf %98, %101 : vector<64x64xf32>
    %103 = math.exp %102 : vector<64x64xf32>
    %cst_35 = arith.constant dense<0.000000e+00> : vector<64xf32>
    %104 = vector.multi_reduction <add>, %103, %cst_35 [1] : vector<64x64xf32> to vector<64xf32>
    %105 = vector.shape_cast %104 : vector<64xf32> to vector<64x1xf32>
    %106 = vector.broadcast %105 : vector<64x1xf32> to vector<64x64xf32>
    %107 = arith.divf %103, %106 : vector<64x64xf32>
    %108 = arith.truncf %107 : vector<64x64xf32> to vector<64x64xbf16>
    %109 = arith.truncf %94 : vector<64x16xf32> to vector<64x16xbf16>
    %cst_36 = arith.constant dense<0.000000e+00> : vector<64x16xf32>
    %110 = tpu.matmul %108, %109, %cst_36 {dimension_numbers = #tpu.dot_dimension_numbers<[1], [0], [0], [1], [0, 0, 1, 1], [], []>} : vector<64x64xbf16>, vector<64x16xbf16>, vector<64x16xf32> -> vector<64x16xf32>
    %111 = tpu.concatenate %91, %110 in 1 : vector<64x16xf32>, vector<64x16xf32> -> vector<64x32xf32>
    %112 = arith.truncf %111 : vector<64x32xf32> to vector<64x32xbf16>
    %cst_37 = arith.constant dense<0.000000e+00> : vector<64x32xf32>
    %113 = tpu.matmul %112, %32, %cst_37 {dimension_numbers = #tpu.dot_dimension_numbers<[1], [0], [0], [1], [0, 0, 1, 1], [], []>} : vector<64x32xbf16>, vector<32x32xbf16>, vector<64x32xf32> -> vector<64x32xf32>
    %114 = arith.addf %29, %113 : vector<64x32xf32>
    %115 = vector.broadcast %42 : vector<1x32xf32> to vector<64x32xf32>
    %116 = arith.addf %114, %115 : vector<64x32xf32>
    %cst_38 = arith.constant dense<0.000000e+00> : vector<64xf32>
    %117 = vector.multi_reduction <add>, %116, %cst_38 [1] : vector<64x32xf32> to vector<64xf32>
    %118 = vector.shape_cast %117 : vector<64xf32> to vector<64x1xf32>
    %cst_39 = arith.constant 3.200000e+01 : f32
    %119 = vector.broadcast %cst_39 : f32 to vector<64x1xf32>
    %120 = arith.divf %118, %119 : vector<64x1xf32>
    %121 = vector.broadcast %120 : vector<64x1xf32> to vector<64x32xf32>
    %122 = arith.subf %116, %121 : vector<64x32xf32>
    %123 = arith.mulf %122, %122 : vector<64x32xf32>
    %cst_40 = arith.constant dense<0.000000e+00> : vector<64xf32>
    %124 = vector.multi_reduction <add>, %123, %cst_40 [1] : vector<64x32xf32> to vector<64xf32>
    %125 = vector.shape_cast %124 : vector<64xf32> to vector<64x1xf32>
    %cst_41 = arith.constant 3.200000e+01 : f32
    %126 = vector.broadcast %cst_41 : f32 to vector<64x1xf32>
    %127 = arith.divf %125, %126 : vector<64x1xf32>
    %128 = vector.broadcast %120 : vector<64x1xf32> to vector<64x32xf32>
    %129 = arith.subf %116, %128 : vector<64x32xf32>
    %cst_42 = arith.constant 9.99999974E-6 : f32
    %130 = vector.broadcast %cst_42 : f32 to vector<64x1xf32>
    %131 = arith.addf %127, %130 : vector<64x1xf32>
    %132 = math.rsqrt %131 : vector<64x1xf32>
    %133 = vector.broadcast %132 : vector<64x1xf32> to vector<64x32xf32>
    %134 = arith.mulf %129, %133 : vector<64x32xf32>
    %135 = vector.broadcast %43 : vector<1x32xf32> to vector<64x32xf32>
    %136 = arith.mulf %134, %135 : vector<64x32xf32>
    %137 = vector.broadcast %44 : vector<1x32xf32> to vector<64x32xf32>
    %138 = arith.addf %136, %137 : vector<64x32xf32>
    %139 = arith.truncf %138 : vector<64x32xf32> to vector<64x32xbf16>
    %cst_43 = arith.constant dense<0.000000e+00> : vector<64x64xf32>
    %140 = tpu.matmul %139, %34, %cst_43 {dimension_numbers = #tpu.dot_dimension_numbers<[1], [0], [0], [1], [0, 0, 1, 1], [], []>} : vector<64x32xbf16>, vector<32x64xbf16>, vector<64x64xf32> -> vector<64x64xf32>
    %141 = vector.broadcast %45 : vector<1x64xf32> to vector<64x64xf32>
    %142 = arith.addf %140, %141 : vector<64x64xf32>
    %cst_44 = arith.constant 1.702000e+00 : f32
    %143 = vector.broadcast %cst_44 : f32 to vector<64x64xf32>
    %144 = arith.mulf %143, %142 : vector<64x64xf32>
    %145 = arith.negf %144 : vector<64x64xf32>
    %146 = math.exp %145 : vector<64x64xf32>
    %cst_45 = arith.constant 1.000000e+00 : f32
    %147 = vector.broadcast %cst_45 : f32 to vector<64x64xf32>
    %148 = arith.addf %147, %146 : vector<64x64xf32>
    %149 = arith.divf %147, %148 : vector<64x64xf32>
    %150 = arith.mulf %142, %149 : vector<64x64xf32>
    %151 = arith.truncf %150 : vector<64x64xf32> to vector<64x64xbf16>
    %cst_46 = arith.constant dense<0.000000e+00> : vector<64x32xf32>
    %152 = tpu.matmul %151, %36, %cst_46 {dimension_numbers = #tpu.dot_dimension_numbers<[1], [0], [0], [1], [0, 0, 1, 1], [], []>} : vector<64x64xbf16>, vector<64x32xbf16>, vector<64x32xf32> -> vector<64x32xf32>
    %153 = arith.addf %116, %152 : vector<64x32xf32>
    %154 = vector.broadcast %46 : vector<1x32xf32> to vector<64x32xf32>
    %155 = arith.addf %153, %154 : vector<64x32xf32>
    %c1_47 = arith.constant 1 : index
    %c0_48 = arith.constant 0 : index
    %c0_49 = arith.constant 0 : index
    %156 = vector.load %arg3[%c1_47, %c0_48, %c0_49] : memref<2x32x192xbf16, #tpu.memory_space<vmem>>, vector<1x32x192xbf16>
    %157 = vector.shape_cast %156 : vector<1x32x192xbf16> to vector<32x192xbf16>
    %158 = vector.extract_strided_slice %157 {offsets = [0, 0], sizes = [32, 32], strides = [1, 1]} : vector<32x192xbf16> to vector<32x32xbf16>
    %159 = vector.extract_strided_slice %157 {offsets = [0, 32], sizes = [32, 96], strides = [1, 1]} : vector<32x192xbf16> to vector<32x96xbf16>
    %160 = vector.extract_strided_slice %157 {offsets = [0, 128], sizes = [32, 64], strides = [1, 1]} : vector<32x192xbf16> to vector<32x64xbf16>
    %c1_50 = arith.constant 1 : index
    %c0_51 = arith.constant 0 : index
    %c0_52 = arith.constant 0 : index
    %161 = vector.load %arg4[%c1_50, %c0_51, %c0_52] : memref<2x64x32xbf16, #tpu.memory_space<vmem>>, vector<1x64x32xbf16>
    %162 = vector.shape_cast %161 : vector<1x64x32xbf16> to vector<64x32xbf16>
    %c1_53 = arith.constant 1 : index
    %c0_54 = arith.constant 0 : index
    %c0_55 = arith.constant 0 : index
    %163 = vector.load %arg5[%c1_53, %c0_54, %c0_55] : memref<2x8x128xf32, #tpu.memory_space<vmem>>, vector<1x8x128xf32>
    %164 = vector.shape_cast %163 : vector<1x8x128xf32> to vector<8x128xf32>
    %165 = vector.extract_strided_slice %164 {offsets = [0, 0], sizes = [1, 32], strides = [1, 1]} : vector<8x128xf32> to vector<1x32xf32>
    %166 = vector.extract_strided_slice %164 {offsets = [1, 0], sizes = [1, 32], strides = [1, 1]} : vector<8x128xf32> to vector<1x32xf32>
    %167 = vector.extract_strided_slice %164 {offsets = [2, 0], sizes = [1, 96], strides = [1, 1]} : vector<8x128xf32> to vector<1x96xf32>
    %168 = vector.extract_strided_slice %164 {offsets = [3, 0], sizes = [1, 32], strides = [1, 1]} : vector<8x128xf32> to vector<1x32xf32>
    %169 = vector.extract_strided_slice %164 {offsets = [4, 0], sizes = [1, 32], strides = [1, 1]} : vector<8x128xf32> to vector<1x32xf32>
    %170 = vector.extract_strided_slice %164 {offsets = [5, 0], sizes = [1, 32], strides = [1, 1]} : vector<8x128xf32> to vector<1x32xf32>
    %171 = vector.extract_strided_slice %164 {offsets = [6, 0], sizes = [1, 64], strides = [1, 1]} : vector<8x128xf32> to vector<1x64xf32>
    %172 = vector.extract_strided_slice %164 {offsets = [7, 0], sizes = [1, 32], strides = [1, 1]} : vector<8x128xf32> to vector<1x32xf32>
    %cst_56 = arith.constant dense<0.000000e+00> : vector<64xf32>
    %173 = vector.multi_reduction <add>, %155, %cst_56 [1] : vector<64x32xf32> to vector<64xf32>
    %174 = vector.shape_cast %173 : vector<64xf32> to vector<64x1xf32>
    %cst_57 = arith.constant 3.200000e+01 : f32
    %175 = vector.broadcast %cst_57 : f32 to vector<64x1xf32>
    %176 = arith.divf %174, %175 : vector<64x1xf32>
    %177 = vector.broadcast %176 : vector<64x1xf32> to vector<64x32xf32>
    %178 = arith.subf %155, %177 : vector<64x32xf32>
    %179 = arith.mulf %178, %178 : vector<64x32xf32>
    %cst_58 = arith.constant dense<0.000000e+00> : vector<64xf32>
    %180 = vector.multi_reduction <add>, %179, %cst_58 [1] : vector<64x32xf32> to vector<64xf32>
    %181 = vector.shape_cast %180 : vector<64xf32> to vector<64x1xf32>
    %cst_59 = arith.constant 3.200000e+01 : f32
    %182 = vector.broadcast %cst_59 : f32 to vector<64x1xf32>
    %183 = arith.divf %181, %182 : vector<64x1xf32>
    %184 = vector.broadcast %176 : vector<64x1xf32> to vector<64x32xf32>
    %185 = arith.subf %155, %184 : vector<64x32xf32>
    %cst_60 = arith.constant 9.99999974E-6 : f32
    %186 = vector.broadcast %cst_60 : f32 to vector<64x1xf32>
    %187 = arith.addf %183, %186 : vector<64x1xf32>
    %188 = math.rsqrt %187 : vector<64x1xf32>
    %189 = vector.broadcast %188 : vector<64x1xf32> to vector<64x32xf32>
    %190 = arith.mulf %185, %189 : vector<64x32xf32>
    %191 = vector.broadcast %165 : vector<1x32xf32> to vector<64x32xf32>
    %192 = arith.mulf %190, %191 : vector<64x32xf32>
    %193 = vector.broadcast %166 : vector<1x32xf32> to vector<64x32xf32>
    %194 = arith.addf %192, %193 : vector<64x32xf32>
    %195 = arith.truncf %194 : vector<64x32xf32> to vector<64x32xbf16>
    %cst_61 = arith.constant dense<0.000000e+00> : vector<64x96xf32>
    %196 = tpu.matmul %195, %159, %cst_61 {dimension_numbers = #tpu.dot_dimension_numbers<[1], [0], [0], [1], [0, 0, 1, 1], [], []>} : vector<64x32xbf16>, vector<32x96xbf16>, vector<64x96xf32> -> vector<64x96xf32>
    %197 = vector.broadcast %167 : vector<1x96xf32> to vector<64x96xf32>
    %198 = arith.addf %196, %197 : vector<64x96xf32>
    %199 = vector.extract_strided_slice %198 {offsets = [0, 0], sizes = [64, 16], strides = [1, 1]} : vector<64x96xf32> to vector<64x16xf32>
    %200 = vector.extract_strided_slice %198 {offsets = [0, 32], sizes = [64, 16], strides = [1, 1]} : vector<64x96xf32> to vector<64x16xf32>
    %201 = vector.extract_strided_slice %198 {offsets = [0, 64], sizes = [64, 16], strides = [1, 1]} : vector<64x96xf32> to vector<64x16xf32>
    %202 = arith.truncf %199 : vector<64x16xf32> to vector<64x16xbf16>
    %203 = arith.truncf %200 : vector<64x16xf32> to vector<64x16xbf16>
    %cst_62 = arith.constant dense<0.000000e+00> : vector<64x64xf32>
    %204 = tpu.matmul %202, %203, %cst_62 {dimension_numbers = #tpu.dot_dimension_numbers<[1], [1], [0], [0], [0, 0, 1, 0], [], []>} : vector<64x16xbf16>, vector<64x16xbf16>, vector<64x64xf32> -> vector<64x64xf32>
    %205 = arith.addf %204, %0 : vector<64x64xf32>
    %cst_63 = arith.constant dense<0xFF800000> : vector<64xf32>
    %206 = vector.multi_reduction <maximumf>, %205, %cst_63 [1] : vector<64x64xf32> to vector<64xf32>
    %207 = vector.shape_cast %206 : vector<64xf32> to vector<64x1xf32>
    %208 = vector.broadcast %207 : vector<64x1xf32> to vector<64x64xf32>
    %209 = arith.subf %205, %208 : vector<64x64xf32>
    %210 = math.exp %209 : vector<64x64xf32>
    %cst_64 = arith.constant dense<0.000000e+00> : vector<64xf32>
    %211 = vector.multi_reduction <add>, %210, %cst_64 [1] : vector<64x64xf32> to vector<64xf32>
    %212 = vector.shape_cast %211 : vector<64xf32> to vector<64x1xf32>
    %213 = vector.broadcast %212 : vector<64x1xf32> to vector<64x64xf32>
    %214 = arith.divf %210, %213 : vector<64x64xf32>
    %215 = arith.truncf %214 : vector<64x64xf32> to vector<64x64xbf16>
    %216 = arith.truncf %201 : vector<64x16xf32> to vector<64x16xbf16>
    %cst_65 = arith.constant dense<0.000000e+00> : vector<64x16xf32>
    %217 = tpu.matmul %215, %216, %cst_65 {dimension_numbers = #tpu.dot_dimension_numbers<[1], [0], [0], [1], [0, 0, 1, 1], [], []>} : vector<64x64xbf16>, vector<64x16xbf16>, vector<64x16xf32> -> vector<64x16xf32>
    %218 = vector.extract_strided_slice %198 {offsets = [0, 16], sizes = [64, 16], strides = [1, 1]} : vector<64x96xf32> to vector<64x16xf32>
    %219 = vector.extract_strided_slice %198 {offsets = [0, 48], sizes = [64, 16], strides = [1, 1]} : vector<64x96xf32> to vector<64x16xf32>
    %220 = vector.extract_strided_slice %198 {offsets = [0, 80], sizes = [64, 16], strides = [1, 1]} : vector<64x96xf32> to vector<64x16xf32>
    %221 = arith.truncf %218 : vector<64x16xf32> to vector<64x16xbf16>
    %222 = arith.truncf %219 : vector<64x16xf32> to vector<64x16xbf16>
    %cst_66 = arith.constant dense<0.000000e+00> : vector<64x64xf32>
    %223 = tpu.matmul %221, %222, %cst_66 {dimension_numbers = #tpu.dot_dimension_numbers<[1], [1], [0], [0], [0, 0, 1, 0], [], []>} : vector<64x16xbf16>, vector<64x16xbf16>, vector<64x64xf32> -> vector<64x64xf32>
    %224 = arith.addf %223, %0 : vector<64x64xf32>
    %cst_67 = arith.constant dense<0xFF800000> : vector<64xf32>
    %225 = vector.multi_reduction <maximumf>, %224, %cst_67 [1] : vector<64x64xf32> to vector<64xf32>
    %226 = vector.shape_cast %225 : vector<64xf32> to vector<64x1xf32>
    %227 = vector.broadcast %226 : vector<64x1xf32> to vector<64x64xf32>
    %228 = arith.subf %224, %227 : vector<64x64xf32>
    %229 = math.exp %228 : vector<64x64xf32>
    %cst_68 = arith.constant dense<0.000000e+00> : vector<64xf32>
    %230 = vector.multi_reduction <add>, %229, %cst_68 [1] : vector<64x64xf32> to vector<64xf32>
    %231 = vector.shape_cast %230 : vector<64xf32> to vector<64x1xf32>
    %232 = vector.broadcast %231 : vector<64x1xf32> to vector<64x64xf32>
    %233 = arith.divf %229, %232 : vector<64x64xf32>
    %234 = arith.truncf %233 : vector<64x64xf32> to vector<64x64xbf16>
    %235 = arith.truncf %220 : vector<64x16xf32> to vector<64x16xbf16>
    %cst_69 = arith.constant dense<0.000000e+00> : vector<64x16xf32>
    %236 = tpu.matmul %234, %235, %cst_69 {dimension_numbers = #tpu.dot_dimension_numbers<[1], [0], [0], [1], [0, 0, 1, 1], [], []>} : vector<64x64xbf16>, vector<64x16xbf16>, vector<64x16xf32> -> vector<64x16xf32>
    %237 = tpu.concatenate %217, %236 in 1 : vector<64x16xf32>, vector<64x16xf32> -> vector<64x32xf32>
    %238 = arith.truncf %237 : vector<64x32xf32> to vector<64x32xbf16>
    %cst_70 = arith.constant dense<0.000000e+00> : vector<64x32xf32>
    %239 = tpu.matmul %238, %158, %cst_70 {dimension_numbers = #tpu.dot_dimension_numbers<[1], [0], [0], [1], [0, 0, 1, 1], [], []>} : vector<64x32xbf16>, vector<32x32xbf16>, vector<64x32xf32> -> vector<64x32xf32>
    %240 = arith.addf %155, %239 : vector<64x32xf32>
    %241 = vector.broadcast %168 : vector<1x32xf32> to vector<64x32xf32>
    %242 = arith.addf %240, %241 : vector<64x32xf32>
    %cst_71 = arith.constant dense<0.000000e+00> : vector<64xf32>
    %243 = vector.multi_reduction <add>, %242, %cst_71 [1] : vector<64x32xf32> to vector<64xf32>
    %244 = vector.shape_cast %243 : vector<64xf32> to vector<64x1xf32>
    %cst_72 = arith.constant 3.200000e+01 : f32
    %245 = vector.broadcast %cst_72 : f32 to vector<64x1xf32>
    %246 = arith.divf %244, %245 : vector<64x1xf32>
    %247 = vector.broadcast %246 : vector<64x1xf32> to vector<64x32xf32>
    %248 = arith.subf %242, %247 : vector<64x32xf32>
    %249 = arith.mulf %248, %248 : vector<64x32xf32>
    %cst_73 = arith.constant dense<0.000000e+00> : vector<64xf32>
    %250 = vector.multi_reduction <add>, %249, %cst_73 [1] : vector<64x32xf32> to vector<64xf32>
    %251 = vector.shape_cast %250 : vector<64xf32> to vector<64x1xf32>
    %cst_74 = arith.constant 3.200000e+01 : f32
    %252 = vector.broadcast %cst_74 : f32 to vector<64x1xf32>
    %253 = arith.divf %251, %252 : vector<64x1xf32>
    %254 = vector.broadcast %246 : vector<64x1xf32> to vector<64x32xf32>
    %255 = arith.subf %242, %254 : vector<64x32xf32>
    %cst_75 = arith.constant 9.99999974E-6 : f32
    %256 = vector.broadcast %cst_75 : f32 to vector<64x1xf32>
    %257 = arith.addf %253, %256 : vector<64x1xf32>
    %258 = math.rsqrt %257 : vector<64x1xf32>
    %259 = vector.broadcast %258 : vector<64x1xf32> to vector<64x32xf32>
    %260 = arith.mulf %255, %259 : vector<64x32xf32>
    %261 = vector.broadcast %169 : vector<1x32xf32> to vector<64x32xf32>
    %262 = arith.mulf %260, %261 : vector<64x32xf32>
    %263 = vector.broadcast %170 : vector<1x32xf32> to vector<64x32xf32>
    %264 = arith.addf %262, %263 : vector<64x32xf32>
    %265 = arith.truncf %264 : vector<64x32xf32> to vector<64x32xbf16>
    %cst_76 = arith.constant dense<0.000000e+00> : vector<64x64xf32>
    %266 = tpu.matmul %265, %160, %cst_76 {dimension_numbers = #tpu.dot_dimension_numbers<[1], [0], [0], [1], [0, 0, 1, 1], [], []>} : vector<64x32xbf16>, vector<32x64xbf16>, vector<64x64xf32> -> vector<64x64xf32>
    %267 = vector.broadcast %171 : vector<1x64xf32> to vector<64x64xf32>
    %268 = arith.addf %266, %267 : vector<64x64xf32>
    %cst_77 = arith.constant 1.702000e+00 : f32
    %269 = vector.broadcast %cst_77 : f32 to vector<64x64xf32>
    %270 = arith.mulf %269, %268 : vector<64x64xf32>
    %271 = arith.negf %270 : vector<64x64xf32>
    %272 = math.exp %271 : vector<64x64xf32>
    %cst_78 = arith.constant 1.000000e+00 : f32
    %273 = vector.broadcast %cst_78 : f32 to vector<64x64xf32>
    %274 = arith.addf %273, %272 : vector<64x64xf32>
    %275 = arith.divf %273, %274 : vector<64x64xf32>
    %276 = arith.mulf %268, %275 : vector<64x64xf32>
    %277 = arith.truncf %276 : vector<64x64xf32> to vector<64x64xbf16>
    %cst_79 = arith.constant dense<0.000000e+00> : vector<64x32xf32>
    %278 = tpu.matmul %277, %162, %cst_79 {dimension_numbers = #tpu.dot_dimension_numbers<[1], [0], [0], [1], [0, 0, 1, 1], [], []>} : vector<64x64xbf16>, vector<64x32xbf16>, vector<64x32xf32> -> vector<64x32xf32>
    %279 = arith.addf %242, %278 : vector<64x32xf32>
    %280 = vector.broadcast %172 : vector<1x32xf32> to vector<64x32xf32>
    %281 = arith.addf %279, %280 : vector<64x32xf32>
    %282 = vector.extract_strided_slice %281 {offsets = [0, 0], sizes = [1, 32], strides = [1, 1]} : vector<64x32xf32> to vector<1x32xf32>
    %283 = vector.extract_strided_slice %281 {offsets = [32, 0], sizes = [1, 32], strides = [1, 1]} : vector<64x32xf32> to vector<1x32xf32>
    %284 = tpu.concatenate %282, %283 in 0 : vector<1x32xf32>, vector<1x32xf32> -> vector<2x32xf32>
    %c2 = arith.constant 2 : index
    %c0_80 = arith.constant 0 : index
    %285 = vector.load %arg6[%c2, %c0_80] : memref<56x128xf32, #tpu.memory_space<vmem>>, vector<1x32xf32>
    %c3 = arith.constant 3 : index
    %c0_81 = arith.constant 0 : index
    %286 = vector.load %arg6[%c3, %c0_81] : memref<56x128xf32, #tpu.memory_space<vmem>>, vector<1x32xf32>
    %cst_82 = arith.constant dense<0.000000e+00> : vector<2xf32>
    %287 = vector.multi_reduction <add>, %284, %cst_82 [1] : vector<2x32xf32> to vector<2xf32>
    %288 = vector.shape_cast %287 : vector<2xf32> to vector<2x1xf32>
    %cst_83 = arith.constant 3.200000e+01 : f32
    %289 = vector.broadcast %cst_83 : f32 to vector<2x1xf32>
    %290 = arith.divf %288, %289 : vector<2x1xf32>
    %291 = vector.broadcast %290 : vector<2x1xf32> to vector<2x32xf32>
    %292 = arith.subf %284, %291 : vector<2x32xf32>
    %293 = arith.mulf %292, %292 : vector<2x32xf32>
    %cst_84 = arith.constant dense<0.000000e+00> : vector<2xf32>
    %294 = vector.multi_reduction <add>, %293, %cst_84 [1] : vector<2x32xf32> to vector<2xf32>
    %295 = vector.shape_cast %294 : vector<2xf32> to vector<2x1xf32>
    %cst_85 = arith.constant 3.200000e+01 : f32
    %296 = vector.broadcast %cst_85 : f32 to vector<2x1xf32>
    %297 = arith.divf %295, %296 : vector<2x1xf32>
    %298 = vector.broadcast %290 : vector<2x1xf32> to vector<2x32xf32>
    %299 = arith.subf %284, %298 : vector<2x32xf32>
    %cst_86 = arith.constant 9.99999974E-6 : f32
    %300 = vector.broadcast %cst_86 : f32 to vector<2x1xf32>
    %301 = arith.addf %297, %300 : vector<2x1xf32>
    %302 = math.rsqrt %301 : vector<2x1xf32>
    %303 = vector.broadcast %302 : vector<2x1xf32> to vector<2x32xf32>
    %304 = arith.mulf %299, %303 : vector<2x32xf32>
    %305 = vector.broadcast %285 : vector<1x32xf32> to vector<2x32xf32>
    %306 = arith.mulf %304, %305 : vector<2x32xf32>
    %307 = vector.broadcast %286 : vector<1x32xf32> to vector<2x32xf32>
    %308 = arith.addf %306, %307 : vector<2x32xf32>
    %c8 = arith.constant 8 : index
    %c0_87 = arith.constant 0 : index
    %309 = vector.load %arg6[%c8, %c0_87] : memref<56x128xf32, #tpu.memory_space<vmem>>, vector<32x16xf32>
    %cst_88 = arith.constant dense<0.000000e+00> : vector<2x16xf32>
    %310 = tpu.matmul %308, %309, %cst_88 {dimension_numbers = #tpu.dot_dimension_numbers<[1], [0], [0], [1], [0, 0, 1, 1], [], []>} : vector<2x32xf32>, vector<32x16xf32>, vector<2x16xf32> -> vector<2x16xf32>
    %311 = arith.mulf %310, %310 : vector<2x16xf32>
    %cst_89 = arith.constant dense<0.000000e+00> : vector<2xf32>
    %312 = vector.multi_reduction <add>, %311, %cst_89 [1] : vector<2x16xf32> to vector<2xf32>
    %313 = vector.shape_cast %312 : vector<2xf32> to vector<2x1xf32>
    %cst_90 = arith.constant 1.000000e-24 : f32
    %314 = vector.broadcast %cst_90 : f32 to vector<2x1xf32>
    %315 = arith.maximumf %313, %314 : vector<2x1xf32>
    %316 = math.rsqrt %315 : vector<2x1xf32>
    %317 = vector.broadcast %316 : vector<2x1xf32> to vector<2x16xf32>
    %318 = arith.mulf %310, %317 : vector<2x16xf32>
    %c40 = arith.constant 40 : index
    %c0_91 = arith.constant 0 : index
    %319 = vector.load %arg6[%c40, %c0_91] : memref<56x128xf32, #tpu.memory_space<vmem>>, vector<16x128xf32>
    %cst_92 = arith.constant dense<0.000000e+00> : vector<2x128xf32>
    %320 = tpu.matmul %318, %319, %cst_92 {dimension_numbers = #tpu.dot_dimension_numbers<[1], [0], [0], [1], [0, 0, 1, 1], [], []>} : vector<2x16xf32>, vector<16x128xf32>, vector<2x128xf32> -> vector<2x128xf32>
    %c0_93 = arith.constant 0 : index
    %c0_94 = arith.constant 0 : index
    %321 = vector.load %arg7[%c0_93, %c0_94] : memref<2x128xf32, #tpu.memory_space<vmem>>, vector<2x128xf32>
    tpu.vector_store %arg7[%c0_93, %c0_94], %320 {strides = array<i32>} : memref<2x128xf32, #tpu.memory_space<vmem>>, vector<2x128xf32>,
    return
  }
}

</mosaic_0001>

<llo_original>
// kernel: clip_zero_shot_forward.1
$region0: #{clip_zero_shot_forward.1}
  #allocation0 [shape = 'u32[]', space=smem, size = 0x4, offset = 0x4, fixed_abs, tag = 'smem constant byte address 0x4 - core index']
  #allocation1 [shape = 'u32[72,128]{1,0:T(1,128)}', space=vmem, size = 0x9000, scoped, tag = 'internal scratch']
  %s0 = inlined_call_operand.vmem [shape: bf16[64,192], index: 0, kind: input, shape index: {}]
  %s1 = inlined_call_operand.vmem [shape: f32[64,96], index: 1, kind: input, shape index: {}]
  %s2 = inlined_call_operand.vmem [shape: bf16[192,32], index: 2, kind: input, shape index: {}]
  %s3 = inlined_call_operand.vmem [shape: bf16[2,32,192], index: 3, kind: input, shape index: {}]
  %s4 = inlined_call_operand.vmem [shape: bf16[2,64,32], index: 4, kind: input, shape index: {}]
  %s5 = inlined_call_operand.vmem [shape: f32[2,8,128], index: 5, kind: input, shape index: {}]
  %s6 = inlined_call_operand.vmem [shape: f32[56,128], index: 6, kind: input, shape index: {}]
  %s7 = inlined_call_operand.hbm [shape: f32[2,128], index: 7, kind: output, shape index: {}]
  %s8 = sld [smem:[#allocation0]]
  $region38: #{clip_zero_shot_forward.1} parent=0
    _
  %s10 = ssub.s32 1, %s8
  %s11 = scalar_select 0, %s10, %s8
  $region1: #{clip_zero_shot_forward.1} parent=0
    #allocation2 [shape = 'u8[1024]{0}', space=vmem, size = 0x400, scoped, tag = 'output window, operand 0, single buffered']
    #allocation3 [shape = 's32[1]{0}', space=sflag, size = 0x4, scoped, tag = 'scoped memory for clip_zero_shot_forward.1']
    %12 = vsyncpa [#allocation3], 0
    // Predicated region
    $region2: #{clip_zero_shot_forward.1} parent=1 // pred_check
      _
    $region3: #{clip_zero_shot_forward.1} parent=1 // pred_check_branch
      %14 = sbr.rel (0) target = $region5
    $region4: #{clip_zero_shot_forward.1} parent=1 // pred_region
      _
    $region5: #{clip_zero_shot_forward.1} parent=1 // pred_fallthru
      _
    // Predicated region
    $region6: #{clip_zero_shot_forward.1} parent=1 // pred_check
      _
    $region7: #{clip_zero_shot_forward.1} parent=1 // pred_check_branch
      %16 = sbr.rel (0) target = $region9
    $region8: #{clip_zero_shot_forward.1} parent=1 // pred_region
      _
    $region9: #{clip_zero_shot_forward.1} parent=1 // pred_fallthru
      _
    // Predicated region
    $region10: #{clip_zero_shot_forward.1} parent=1 // pred_check
      _
    $region11: #{clip_zero_shot_forward.1} parent=1 // pred_check_branch
      %18 = sbr.rel (0) target = $region13
    $region12: #{clip_zero_shot_forward.1} parent=1 // pred_region
      _
    $region13: #{clip_zero_shot_forward.1} parent=1 // pred_fallthru
      _
    // Predicated region
    $region14: #{clip_zero_shot_forward.1} parent=1 // pred_check
      _
    $region15: #{clip_zero_shot_forward.1} parent=1 // pred_check_branch
      %20 = sbr.rel (0) target = $region17
    $region16: #{clip_zero_shot_forward.1} parent=1 // pred_region
      _
    $region17: #{clip_zero_shot_forward.1} parent=1 // pred_fallthru
      _
    // Predicated region
    $region18: #{clip_zero_shot_forward.1} parent=1 // pred_check
      _
    $region19: #{clip_zero_shot_forward.1} parent=1 // pred_check_branch
      %22 = sbr.rel (0) target = $region21
    $region20: #{clip_zero_shot_forward.1} parent=1 // pred_region
      _
    $region21: #{clip_zero_shot_forward.1} parent=1 // pred_fallthru
      _
    // Predicated region
    $region22: #{clip_zero_shot_forward.1} parent=1 // pred_check
      _
    $region23: #{clip_zero_shot_forward.1} parent=1 // pred_check_branch
      %24 = sbr.rel (0) target = $region25
    $region24: #{clip_zero_shot_forward.1} parent=1 // pred_region
      _
    $region25: #{clip_zero_shot_forward.1} parent=1 // pred_fallthru
      _
    // Predicated region
    $region26: #{clip_zero_shot_forward.1} parent=1 // pred_check
      _
    $region27: #{clip_zero_shot_forward.1} parent=1 // pred_check_branch
      %26 = sbr.rel (0) target = $region29
    $region28: #{clip_zero_shot_forward.1} parent=1 // pred_region
      _
    $region29: #{clip_zero_shot_forward.1} parent=1 // pred_fallthru
      _
    %v28 = vld [vmem:[%s1] sm:$0xff]
    %v29 = vld [vmem:[%s1 + $0x8] sm:$0xff]
    %v30 = vld [vmem:[%s1 + $0x10] sm:$0xff]
    %v31 = vld [vmem:[%s1 + $0x18] sm:$0xff]
    %v32 = vld [vmem:[%s1 + $0x20] sm:$0xff]
    %v33 = vld [vmem:[%s1 + $0x28] sm:$0xff]
    %v34 = vld [vmem:[%s1 + $0x30] sm:$0xff]
    %v35 = vld [vmem:[%s1 + $0x38] sm:$0xff]
    %v36 = vld [vmem:[%s0] sm:$0xff]
    %v37 = vld [vmem:[%s0 + $0x8] sm:$0xff]
    %v38 = vld [vmem:[%s0 + $0x10] sm:$0xff]
    %v39 = vld [vmem:[%s0 + $0x18] sm:$0xff]
    %v40 = vld [vmem:[%s0 + $0x20] sm:$0xff]
    %v41 = vld [vmem:[%s0 + $0x28] sm:$0xff]
    %v42 = vld [vmem:[%s0 + $0x30] sm:$0xff]
    %v43 = vld [vmem:[%s0 + $0x38] sm:$0xff]
    %v44 = vld [vmem:[%s2] sm:$0xf]
    %v45 = vld [vmem:[%s2 + $0x4] sm:$0xf]
    %v46 = vld [vmem:[%s2 + $0x8] sm:$0xf]
    %v47 = vld [vmem:[%s2 + $0xc] sm:$0xf]
    %v48 = vld [vmem:[%s2 + $0x10] sm:$0xf]
    %v49 = vld [vmem:[%s2 + $0x14] sm:$0xf]
    %v50 = vld [vmem:[%s2 + $0x18] sm:$0xf]
    %v51 = vld [vmem:[%s2 + $0x1c] sm:$0xf]
    %v52 = vld [vmem:[%s2 + $0x20] sm:$0xf]
    %v53 = vld [vmem:[%s2 + $0x24] sm:$0xf]
    %v54 = vld [vmem:[%s2 + $0x28] sm:$0xf]
    %v55 = vld [vmem:[%s2 + $0x2c] sm:$0xf]
    %v56 = vld [vmem:[%s2 + $0x30] sm:$0xf]
    %v57 = vld [vmem:[%s2 + $0x34] sm:$0xf]
    %v58 = vld [vmem:[%s2 + $0x38] sm:$0xf]
    %v59 = vld [vmem:[%s2 + $0x3c] sm:$0xf]
    %v60 = vld [vmem:[%s2 + $0x40] sm:$0xf]
    %v61 = vld [vmem:[%s2 + $0x44] sm:$0xf]
    %v62 = vld [vmem:[%s2 + $0x48] sm:$0xf]
    %v63 = vld [vmem:[%s2 + $0x4c] sm:$0xf]
    %v64 = vld [vmem:[%s2 + $0x50] sm:$0xf]
    %v65 = vld [vmem:[%s2 + $0x54] sm:$0xf]
    %v66 = vld [vmem:[%s2 + $0x58] sm:$0xf]
    %v67 = vld [vmem:[%s2 + $0x5c] sm:$0xf]
    %v76 = vunpack.c.l.b16 %v36
    %v77 = vunpack.c.h.b16 %v36
    %v78 = vunpack.c.l.b16 %v37
    %v79 = vunpack.c.h.b16 %v37
    %v80 = vunpack.c.l.b16 %v38
    %v81 = vunpack.c.h.b16 %v38
    %v82 = vunpack.c.l.b16 %v39
    %v83 = vunpack.c.h.b16 %v39
    %v84 = vunpack.c.l.b16 %v40
    %v85 = vunpack.c.h.b16 %v40
    %v86 = vunpack.c.l.b16 %v41
    %v87 = vunpack.c.h.b16 %v41
    %v88 = vunpack.c.l.b16 %v42
    %v89 = vunpack.c.h.b16 %v42
    %v90 = vunpack.c.l.b16 %v43
    %v91 = vunpack.c.h.b16 %v43
    %v92 = vpack.c.b16 %v78, %v76
    %v93 = vpack.c.b16 %v79, %v77
    %v94 = vpack.c.b16 %v82, %v80
    %v95 = vpack.c.b16 %v83, %v81
    %v96 = vpack.c.b16 %v86, %v84
    %v97 = vpack.c.b16 %v87, %v85
    %v98 = vpack.c.b16 %v90, %v88
    %v99 = vpack.c.b16 %v91, %v89
    %v128 = vunpack.c.l.b16 %v44
    %v129 = vunpack.c.l.b16 %v45
    %v130 = vunpack.c.l.b16 %v46
    %v131 = vunpack.c.l.b16 %v47
    %v132 = vunpack.c.l.b16 %v48
    %v133 = vunpack.c.l.b16 %v49
    %v134 = vunpack.c.l.b16 %v50
    %v135 = vunpack.c.l.b16 %v51
    %v136 = vunpack.c.l.b16 %v52
    %v137 = vunpack.c.l.b16 %v53
    %v138 = vunpack.c.l.b16 %v54
    %v139 = vunpack.c.l.b16 %v55
    %v140 = vunpack.c.l.b16 %v56
    %v141 = vunpack.c.l.b16 %v57
    %v142 = vunpack.c.l.b16 %v58
    %v143 = vunpack.c.l.b16 %v59
    %v144 = vunpack.c.l.b16 %v60
    %v145 = vunpack.c.l.b16 %v61
    %v146 = vunpack.c.l.b16 %v62
    %v147 = vunpack.c.l.b16 %v63
    %v148 = vunpack.c.l.b16 %v64
    %v149 = vunpack.c.l.b16 %v65
    %v150 = vunpack.c.l.b16 %v66
    %v151 = vunpack.c.l.b16 %v67
    %v152 = vpack.c.b16 %v129, %v128
    %v153 = vpack.c.b16 %v131, %v130
    %v154 = vpack.c.b16 %v133, %v132
    %v155 = vpack.c.b16 %v135, %v134
    %v156 = vpack.c.b16 %v137, %v136
    %v157 = vpack.c.b16 %v139, %v138
    %v158 = vpack.c.b16 %v141, %v140
    %v159 = vpack.c.b16 %v143, %v142
    %v160 = vpack.c.b16 %v145, %v144
    %v161 = vpack.c.b16 %v147, %v146
    %v162 = vpack.c.b16 %v149, %v148
    %v163 = vpack.c.b16 %v151, %v150
    %184 = vrot.lane.b32.xlu0 %v28, 64
    %v185 = vpop.permute.xlu0 %184
    %186 = vrot.lane.b32.xlu0 %v29, 64
    %v187 = vpop.permute.xlu0 %186
    %188 = vrot.lane.b32.xlu0 %v30, 64
    %v189 = vpop.permute.xlu0 %188
    %190 = vrot.lane.b32.xlu0 %v31, 64
    %v191 = vpop.permute.xlu0 %190
    %192 = vrot.lane.b32.xlu0 %v32, 64
    %v193 = vpop.permute.xlu0 %192
    %194 = vrot.lane.b32.xlu0 %v33, 64
    %v195 = vpop.permute.xlu0 %194
    %196 = vrot.lane.b32.xlu0 %v34, 64
    %v197 = vpop.permute.xlu0 %196
    %198 = vrot.lane.b32.xlu0 %v35, 64
    %v199 = vpop.permute.xlu0 %198
    %vm208 = vcmask 523264
    %v210 = vsel %vm208, %v93, 0
    %v213 = vsel %vm208, %v95, 0
    %v216 = vsel %vm208, %v97, 0
    %v219 = vsel %vm208, %v99, 0
    %221 = vmatpush.bf16.msra.mxu0 %v159
    %222 = vmatpush.bf16.msra.mxu0 %v158
    %223 = vmatpush.bf16.msra.mxu0 %v157
    %224 = vmatpush.bf16.msra.mxu0 %v156
    %225 = vmatpush.bf16.msra.mxu0 %v155
    %226 = vmatpush.bf16.msra.mxu0 %v154
    %227 = vmatpush.bf16.msra.mxu0 %v153
    %228 = vmatpush.bf16.msra.mxu0 %v152
    %229 = vmatmul.bf16.gmra.mxu0 %v92
    %v230 = vpop.f32.mrf.mxu0
    %v231 = vadd.f32 %v185, %v230
    %v232 = vpop.f32.mrf.mxu0
    %v233 = vadd.f32 %v187, %v232
    %234 = vmatmul.bf16.gmra.mxu0 %v94
    %v235 = vpop.f32.mrf.mxu0
    %v236 = vadd.f32 %v189, %v235
    %v237 = vpop.f32.mrf.mxu0
    %v238 = vadd.f32 %v191, %v237
    %239 = vmatmul.bf16.gmra.mxu0 %v96
    %v240 = vpop.f32.mrf.mxu0
    %v241 = vadd.f32 %v193, %v240
    %v242 = vpop.f32.mrf.mxu0
    %v243 = vadd.f32 %v195, %v242
    %244 = vmatmul.bf16.gmra.mxu0 %v98
    %v245 = vpop.f32.mrf.mxu0
    %v246 = vadd.f32 %v197, %v245
    %v247 = vpop.f32.mrf.mxu0
    %v248 = vadd.f32 %v199, %v247
    %249 = vdwg.mxu0
    %250 = vmatpush.bf16.msra.mxu0 0
    %251 = vmatpush.bf16.msra.mxu0 0
    %252 = vmatpush.bf16.msra.mxu0 0
    %253 = vmatpush.bf16.msra.mxu0 0
    %254 = vmatpush.bf16.msra.mxu0 %v163
    %255 = vmatpush.bf16.msra.mxu0 %v162
    %256 = vmatpush.bf16.msra.mxu0 %v161
    %257 = vmatpush.bf16.msra.mxu0 %v160
    %258 = vmatmul.bf16.gmra.mxu0 %v210
    %v259 = vpop.f32.mrf.mxu0
    %v260 = vadd.f32 %v231, %v259
    %v261 = vpop.f32.mrf.mxu0
    %v262 = vadd.f32 %v233, %v261
    %263 = vmatmul.bf16.gmra.mxu0 %v213
    %v264 = vpop.f32.mrf.mxu0
    %v265 = vadd.f32 %v236, %v264
    %v266 = vpop.f32.mrf.mxu0
    %v267 = vadd.f32 %v238, %v266
    %268 = vmatmul.bf16.gmra.mxu0 %v216
    %v269 = vpop.f32.mrf.mxu0
    %v270 = vadd.f32 %v241, %v269
    %v271 = vpop.f32.mrf.mxu0
    %v272 = vadd.f32 %v243, %v271
    %273 = vmatmul.bf16.gmra.mxu0 %v219
    %v274 = vpop.f32.mrf.mxu0
    %v275 = vadd.f32 %v246, %v274
    %v276 = vpop.f32.mrf.mxu0
    %v277 = vadd.f32 %v248, %v276
    %278 = vdwg.mxu0
    %v279 = vld [vmem:[%s6] sm:$0x1]
    %v280 = vld [vmem:[%s6 + $0x1] sm:$0x1]
    %vm281 = vcmask 261120
    %v282 = vsel %vm281, %v260, 0.0
    %283 = vadd.xlane.f32.xlu0 %v282
    %v284 = vpop.xlane.xlu0 %283
    %v285 = vsel %vm281, %v262, 0.0
    %286 = vadd.xlane.f32.xlu0 %v285
    %v287 = vpop.xlane.xlu0 %286
    %v288 = vsel %vm281, %v265, 0.0
    %289 = vadd.xlane.f32.xlu0 %v288
    %v290 = vpop.xlane.xlu0 %289
    %v291 = vsel %vm281, %v267, 0.0
    %292 = vadd.xlane.f32.xlu0 %v291
    %v293 = vpop.xlane.xlu0 %292
    %v294 = vsel %vm281, %v270, 0.0
    %295 = vadd.xlane.f32.xlu0 %v294
    %v296 = vpop.xlane.xlu0 %295
    %v297 = vsel %vm281, %v272, 0.0
    %298 = vadd.xlane.f32.xlu0 %v297
    %v299 = vpop.xlane.xlu0 %298
    %v300 = vsel %vm281, %v275, 0.0
    %301 = vadd.xlane.f32.xlu0 %v300
    %v302 = vpop.xlane.xlu0 %301
    %v303 = vsel %vm281, %v277, 0.0
    %304 = vadd.xlane.f32.xlu0 %v303
    %v305 = vpop.xlane.xlu0 %304
    %v306 = vrcp.pop 32.0
    %v307 = vmul.f32 32.0, %v306
    %v308 = vsub.f32 1.0, %v307
    %v309 = vmul.f32 %v306, %v308
    %v310 = vadd.f32 %v306, %v309
    %vm311 = vweird.f32 %v306
    %v312 = vsel %vm311, %v306, %v310
    %v313 = vmul.f32 %v284, %v312
    %v314 = vmul.f32 %v287, %v312
    %v315 = vmul.f32 %v290, %v312
    %v316 = vmul.f32 %v293, %v312
    %v317 = vmul.f32 %v296, %v312
    %v318 = vmul.f32 %v299, %v312
    %v319 = vmul.f32 %v302, %v312
    %v320 = vmul.f32 %v305, %v312
    %v321 = vsub.f32 %v260, %v313
    %v322 = vsub.f32 %v262, %v314
    %v323 = vsub.f32 %v265, %v315
    %v324 = vsub.f32 %v267, %v316
    %v325 = vsub.f32 %v270, %v317
    %v326 = vsub.f32 %v272, %v318
    %v327 = vsub.f32 %v275, %v319
    %v328 = vsub.f32 %v277, %v320
    %v329 = vmul.f32 %v321, %v321
    %v330 = vmul.f32 %v322, %v322
    %v331 = vmul.f32 %v323, %v323
    %v332 = vmul.f32 %v324, %v324
    %v333 = vmul.f32 %v325, %v325
    %v334 = vmul.f32 %v326, %v326
    %v335 = vmul.f32 %v327, %v327
    %v336 = vmul.f32 %v328, %v328
    %v337 = vsel %vm281, %v329, 0.0
    %338 = vadd.xlane.f32.xlu0 %v337
    %v339 = vpop.xlane.xlu0 %338
    %v340 = vsel %vm281, %v330, 0.0
    %341 = vadd.xlane.f32.xlu0 %v340
    %v342 = vpop.xlane.xlu0 %341
    %v343 = vsel %vm281, %v331, 0.0
    %344 = vadd.xlane.f32.xlu0 %v343
    %v345 = vpop.xlane.xlu0 %344
    %v346 = vsel %vm281, %v332, 0.0
    %347 = vadd.xlane.f32.xlu0 %v346
    %v348 = vpop.xlane.xlu0 %347
    %v349 = vsel %vm281, %v333, 0.0
    %350 = vadd.xlane.f32.xlu0 %v349
    %v351 = vpop.xlane.xlu0 %350
    %v352 = vsel %vm281, %v334, 0.0
    %353 = vadd.xlane.f32.xlu0 %v352
    %v354 = vpop.xlane.xlu0 %353
    %v355 = vsel %vm281, %v335, 0.0
    %356 = vadd.xlane.f32.xlu0 %v355
    %v357 = vpop.xlane.xlu0 %356
    %v358 = vsel %vm281, %v336, 0.0
    %359 = vadd.xlane.f32.xlu0 %v358
    %v360 = vpop.xlane.xlu0 %359
    %v361 = vmul.f32 %v339, %v312
    %v362 = vmul.f32 %v342, %v312
    %v363 = vmul.f32 %v345, %v312
    %v364 = vmul.f32 %v348, %v312
    %v365 = vmul.f32 %v351, %v312
    %v366 = vmul.f32 %v354, %v312
    %v367 = vmul.f32 %v357, %v312
    %v368 = vmul.f32 %v360, %v312
    %v369 = vadd.f32 %v361, 1e-05
    %v370 = vadd.f32 %v362, 1e-05
    %v371 = vadd.f32 %v363, 1e-05
    %v372 = vadd.f32 %v364, 1e-05
    %v373 = vadd.f32 %v365, 1e-05
    %v374 = vadd.f32 %v366, 1e-05
    %v375 = vadd.f32 %v367, 1e-05
    %v376 = vadd.f32 %v368, 1e-05
    %v377 = vrsqrt.pop %v369
    %v378 = vmul.f32 %v377, %v369
    %v379 = vmul.f32 %v378, %v377
    %v380 = vmul.f32 0.5, %v379
    %v381 = vsub.f32 1.5, %v380
    %v382 = vmul.f32 %v377, %v381
    %vm383 = vweird.f32 %v369
    %vm384 = vweird.f32 %v377
    %vm385 = vmor %vm383, %vm384
    %v386 = vsel %vm385, %v377, %v382
    %v387 = vrsqrt.pop %v370
    %v388 = vmul.f32 %v387, %v370
    %v389 = vmul.f32 %v388, %v387
    %v390 = vmul.f32 0.5, %v389
    %v391 = vsub.f32 1.5, %v390
    %v392 = vmul.f32 %v387, %v391
    %vm393 = vweird.f32 %v370
    %vm394 = vweird.f32 %v387
    %vm395 = vmor %vm393, %vm394
    %v396 = vsel %vm395, %v387, %v392
    %v397 = vrsqrt.pop %v371
    %v398 = vmul.f32 %v397, %v371
    %v399 = vmul.f32 %v398, %v397
    %v400 = vmul.f32 0.5, %v399
    %v401 = vsub.f32 1.5, %v400
    %v402 = vmul.f32 %v397, %v401
    %vm403 = vweird.f32 %v371
    %vm404 = vweird.f32 %v397
    %vm405 = vmor %vm403, %vm404
    %v406 = vsel %vm405, %v397, %v402
    %v407 = vrsqrt.pop %v372
    %v408 = vmul.f32 %v407, %v372
    %v409 = vmul.f32 %v408, %v407
    %v410 = vmul.f32 0.5, %v409
    %v411 = vsub.f32 1.5, %v410
    %v412 = vmul.f32 %v407, %v411
    %vm413 = vweird.f32 %v372
    %vm414 = vweird.f32 %v407
    %vm415 = vmor %vm413, %vm414
    %v416 = vsel %vm415, %v407, %v412
    %v417 = vrsqrt.pop %v373
    %v418 = vmul.f32 %v417, %v373
    %v419 = vmul.f32 %v418, %v417
    %v420 = vmul.f32 0.5, %v419
    %v421 = vsub.f32 1.5, %v420
    %v422 = vmul.f32 %v417, %v421
    %vm423 = vweird.f32 %v373
    %vm424 = vweird.f32 %v417
    %vm425 = vmor %vm423, %vm424
    %v426 = vsel %vm425, %v417, %v422
    %v427 = vrsqrt.pop %v374
    %v428 = vmul.f32 %v427, %v374
    %v429 = vmul.f32 %v428, %v427
    %v430 = vmul.f32 0.5, %v429
    %v431 = vsub.f32 1.5, %v430
    %v432 = vmul.f32 %v427, %v431
    %vm433 = vweird.f32 %v374
    %vm434 = vweird.f32 %v427
    %vm435 = vmor %vm433, %vm434
    %v436 = vsel %vm435, %v427, %v432
    %v437 = vrsqrt.pop %v375
    %v438 = vmul.f32 %v437, %v375
    %v439 = vmul.f32 %v438, %v437
    %v440 = vmul.f32 0.5, %v439
    %v441 = vsub.f32 1.5, %v440
    %v442 = vmul.f32 %v437, %v441
    %vm443 = vweird.f32 %v375
    %vm444 = vweird.f32 %v437
    %vm445 = vmor %vm443, %vm444
    %v446 = vsel %vm445, %v437, %v442
    %v447 = vrsqrt.pop %v376
    %v448 = vmul.f32 %v447, %v376
    %v449 = vmul.f32 %v448, %v447
    %v450 = vmul.f32 0.5, %v449
    %v451 = vsub.f32 1.5, %v450
    %v452 = vmul.f32 %v447, %v451
    %vm453 = vweird.f32 %v376
    %vm454 = vweird.f32 %v447
    %vm455 = vmor %vm453, %vm454
    %v456 = vsel %vm455, %v447, %v452
    %v457 = vmul.f32 %v321, %v386
    %v458 = vmul.f32 %v322, %v396
    %v459 = vmul.f32 %v323, %v406
    %v460 = vmul.f32 %v324, %v416
    %v461 = vmul.f32 %v325, %v426
    %v462 = vmul.f32 %v326, %v436
    %v463 = vmul.f32 %v327, %v446
    %v464 = vmul.f32 %v328, %v456
    %v465 = vperm.slane %v279, 0
    %v466 = vmul.f32 %v457, %v465
    %v467 = vmul.f32 %v458, %v465
    %v468 = vmul.f32 %v459, %v465
    %v469 = vmul.f32 %v460, %v465
    %v470 = vmul.f32 %v461, %v465
    %v471 = vmul.f32 %v462, %v465
    %v472 = vmul.f32 %v463, %v465
    %v473 = vmul.f32 %v464, %v465
    %v474 = vperm.slane %v280, 0
    %v475 = vadd.f32 %v466, %v474
    %v476 = vadd.f32 %v467, %v474
    %v477 = vadd.f32 %v468, %v474
    %v478 = vadd.f32 %v469, %v474
    %v479 = vadd.f32 %v470, %v474
    %v480 = vadd.f32 %v471, %v474
    %v481 = vadd.f32 %v472, %v474
    %v482 = vadd.f32 %v473, %v474
    %v483 = vld [vmem:[%s3] sm:$0xff]
    %v484 = vld [vmem:[%s3 + $0x8] sm:$0xff]
    %v485 = vld [vmem:[%s3 + $0x10] sm:$0xff]
    %v486 = vld [vmem:[%s3 + $0x18] sm:$0xff]
    %v487 = vld [vmem:[%s4] sm:$0xf]
    %v488 = vld [vmem:[%s4 + $0x4] sm:$0xf]
    %v489 = vld [vmem:[%s4 + $0x8] sm:$0xf]
    %v490 = vld [vmem:[%s4 + $0xc] sm:$0xf]
    %v491 = vld [vmem:[%s4 + $0x10] sm:$0xf]
    %v492 = vld [vmem:[%s4 + $0x14] sm:$0xf]
    %v493 = vld [vmem:[%s4 + $0x18] sm:$0xf]
    %v494 = vld [vmem:[%s4 + $0x1c] sm:$0xf]
    %v495 = vld [vmem:[%s5] sm:$0xff]
    %v496 = vsel %vm281, %v475, 0.0
    %497 = vadd.xlane.f32.xlu0 %v496
    %v498 = vpop.xlane.xlu0 %497
    %v499 = vsel %vm281, %v476, 0.0
    %500 = vadd.xlane.f32.xlu0 %v499
    %v501 = vpop.xlane.xlu0 %500
    %v502 = vsel %vm281, %v477, 0.0
    %503 = vadd.xlane.f32.xlu0 %v502
    %v504 = vpop.xlane.xlu0 %503
    %v505 = vsel %vm281, %v478, 0.0
    %506 = vadd.xlane.f32.xlu0 %v505
    %v507 = vpop.xlane.xlu0 %506
    %v508 = vsel %vm281, %v479, 0.0
    %509 = vadd.xlane.f32.xlu0 %v508
    %v510 = vpop.xlane.xlu0 %509
    %v511 = vsel %vm281, %v480, 0.0
    %512 = vadd.xlane.f32.xlu0 %v511
    %v513 = vpop.xlane.xlu0 %512
    %v514 = vsel %vm281, %v481, 0.0
    %515 = vadd.xlane.f32.xlu0 %v514
    %v516 = vpop.xlane.xlu0 %515
    %v517 = vsel %vm281, %v482, 0.0
    %518 = vadd.xlane.f32.xlu0 %v517
    %v519 = vpop.xlane.xlu0 %518
    %v520 = vmul.f32 %v498, %v312
    %v521 = vmul.f32 %v501, %v312
    %v522 = vmul.f32 %v504, %v312
    %v523 = vmul.f32 %v507, %v312
    %v524 = vmul.f32 %v510, %v312
    %v525 = vmul.f32 %v513, %v312
    %v526 = vmul.f32 %v516, %v312
    %v527 = vmul.f32 %v519, %v312
    %v528 = vsub.f32 %v475, %v520
    %v529 = vsub.f32 %v476, %v521
    %v530 = vsub.f32 %v477, %v522
    %v531 = vsub.f32 %v478, %v523
    %v532 = vsub.f32 %v479, %v524
    %v533 = vsub.f32 %v480, %v525
    %v534 = vsub.f32 %v481, %v526
    %v535 = vsub.f32 %v482, %v527
    %v536 = vmul.f32 %v528, %v528
    %v537 = vmul.f32 %v529, %v529
    %v538 = vmul.f32 %v530, %v530
    %v539 = vmul.f32 %v531, %v531
    %v540 = vmul.f32 %v532, %v532
    %v541 = vmul.f32 %v533, %v533
    %v542 = vmul.f32 %v534, %v534
    %v543 = vmul.f32 %v535, %v535
    %v544 = vsel %vm281, %v536, 0.0
    %545 = vadd.xlane.f32.xlu0 %v544
    %v546 = vpop.xlane.xlu0 %545
    %v547 = vsel %vm281, %v537, 0.0
    %548 = vadd.xlane.f32.xlu0 %v547
    %v549 = vpop.xlane.xlu0 %548
    %v550 = vsel %vm281, %v538, 0.0
    %551 = vadd.xlane.f32.xlu0 %v550
    %v552 = vpop.xlane.xlu0 %551
    %v553 = vsel %vm281, %v539, 0.0
    %554 = vadd.xlane.f32.xlu0 %v553
    %v555 = vpop.xlane.xlu0 %554
    %v556 = vsel %vm281, %v540, 0.0
    %557 = vadd.xlane.f32.xlu0 %v556
    %v558 = vpop.xlane.xlu0 %557
    %v559 = vsel %vm281, %v541, 0.0
    %560 = vadd.xlane.f32.xlu0 %v559
    %v561 = vpop.xlane.xlu0 %560
    %v562 = vsel %vm281, %v542, 0.0
    %563 = vadd.xlane.f32.xlu0 %v562
    %v564 = vpop.xlane.xlu0 %563
    %v565 = vsel %vm281, %v543, 0.0
    %566 = vadd.xlane.f32.xlu0 %v565
    %v567 = vpop.xlane.xlu0 %566
    %v568 = vmul.f32 %v546, %v312
    %v569 = vmul.f32 %v549, %v312
    %v570 = vmul.f32 %v552, %v312
    %v571 = vmul.f32 %v555, %v312
    %v572 = vmul.f32 %v558, %v312
    %v573 = vmul.f32 %v561, %v312
    %v574 = vmul.f32 %v564, %v312
    %v575 = vmul.f32 %v567, %v312
    %v576 = vadd.f32 %v568, 1e-05
    %v577 = vadd.f32 %v569, 1e-05
    %v578 = vadd.f32 %v570, 1e-05
    %v579 = vadd.f32 %v571, 1e-05
    %v580 = vadd.f32 %v572, 1e-05
    %v581 = vadd.f32 %v573, 1e-05
    %v582 = vadd.f32 %v574, 1e-05
    %v583 = vadd.f32 %v575, 1e-05
    %v584 = vrsqrt.pop %v576
    %v585 = vmul.f32 %v584, %v576
    %v586 = vmul.f32 %v585, %v584
    %v587 = vmul.f32 0.5, %v586
    %v588 = vsub.f32 1.5, %v587
    %v589 = vmul.f32 %v584, %v588
    %vm590 = vweird.f32 %v576
    %vm591 = vweird.f32 %v584
    %vm592 = vmor %vm590, %vm591
    %v593 = vsel %vm592, %v584, %v589
    %v594 = vrsqrt.pop %v577
    %v595 = vmul.f32 %v594, %v577
    %v596 = vmul.f32 %v595, %v594
    %v597 = vmul.f32 0.5, %v596
    %v598 = vsub.f32 1.5, %v597
    %v599 = vmul.f32 %v594, %v598
    %vm600 = vweird.f32 %v577
    %vm601 = vweird.f32 %v594
    %vm602 = vmor %vm600, %vm601
    %v603 = vsel %vm602, %v594, %v599
    %v604 = vrsqrt.pop %v578
    %v605 = vmul.f32 %v604, %v578
    %v606 = vmul.f32 %v605, %v604
    %v607 = vmul.f32 0.5, %v606
    %v608 = vsub.f32 1.5, %v607
    %v609 = vmul.f32 %v604, %v608
    %vm610 = vweird.f32 %v578
    %vm611 = vweird.f32 %v604
    %vm612 = vmor %vm610, %vm611
    %v613 = vsel %vm612, %v604, %v609
    %v614 = vrsqrt.pop %v579
    %v615 = vmul.f32 %v614, %v579
    %v616 = vmul.f32 %v615, %v614
    %v617 = vmul.f32 0.5, %v616
    %v618 = vsub.f32 1.5, %v617
    %v619 = vmul.f32 %v614, %v618
    %vm620 = vweird.f32 %v579
    %vm621 = vweird.f32 %v614
    %vm622 = vmor %vm620, %vm621
    %v623 = vsel %vm622, %v614, %v619
    %v624 = vrsqrt.pop %v580
    %v625 = vmul.f32 %v624, %v580
    %v626 = vmul.f32 %v625, %v624
    %v627 = vmul.f32 0.5, %v626
    %v628 = vsub.f32 1.5, %v627
    %v629 = vmul.f32 %v624, %v628
    %vm630 = vweird.f32 %v580
    %vm631 = vweird.f32 %v624
    %vm632 = vmor %vm630, %vm631
    %v633 = vsel %vm632, %v624, %v629
    %v634 = vrsqrt.pop %v581
    %v635 = vmul.f32 %v634, %v581
    %v636 = vmul.f32 %v635, %v634
    %v637 = vmul.f32 0.5, %v636
    %v638 = vsub.f32 1.5, %v637
    %v639 = vmul.f32 %v634, %v638
    %vm640 = vweird.f32 %v581
    %vm641 = vweird.f32 %v634
    %vm642 = vmor %vm640, %vm641
    %v643 = vsel %vm642, %v634, %v639
    %v644 = vrsqrt.pop %v582
    %v645 = vmul.f32 %v644, %v582
    %v646 = vmul.f32 %v645, %v644
    %v647 = vmul.f32 0.5, %v646
    %v648 = vsub.f32 1.5, %v647
    %v649 = vmul.f32 %v644, %v648
    %vm650 = vweird.f32 %v582
    %vm651 = vweird.f32 %v644
    %vm652 = vmor %vm650, %vm651
    %v653 = vsel %vm652, %v644, %v649
    %v654 = vrsqrt.pop %v583
    %v655 = vmul.f32 %v654, %v583
    %v656 = vmul.f32 %v655, %v654
    %v657 = vmul.f32 0.5, %v656
    %v658 = vsub.f32 1.5, %v657
    %v659 = vmul.f32 %v654, %v658
    %vm660 = vweird.f32 %v583
    %vm661 = vweird.f32 %v654
    %vm662 = vmor %vm660, %vm661
    %v663 = vsel %vm662, %v654, %v659
    %v664 = vmul.f32 %v528, %v593
    %v665 = vmul.f32 %v529, %v603
    %v666 = vmul.f32 %v530, %v613
    %v667 = vmul.f32 %v531, %v623
    %v668 = vmul.f32 %v532, %v633
    %v669 = vmul.f32 %v533, %v643
    %v670 = vmul.f32 %v534, %v653
    %v671 = vmul.f32 %v535, %v663
    %v672 = vperm.slane %v495, 0
    %v673 = vmul.f32 %v664, %v672
    %v674 = vmul.f32 %v665, %v672
    %v675 = vmul.f32 %v666, %v672
    %v676 = vmul.f32 %v667, %v672
    %v677 = vmul.f32 %v668, %v672
    %v678 = vmul.f32 %v669, %v672
    %v679 = vmul.f32 %v670, %v672
    %v680 = vmul.f32 %v671, %v672
    %v681 = vperm.slane %v495, 1
    %v682 = vadd.f32 %v673, %v681
    %v683 = vadd.f32 %v674, %v681
    %v684 = vadd.f32 %v675, %v681
    %v685 = vadd.f32 %v676, %v681
    %v686 = vadd.f32 %v677, %v681
    %v687 = vadd.f32 %v678, %v681
    %v688 = vadd.f32 %v679, %v681
    %v689 = vadd.f32 %v680, %v681
    %v690 = vpack.c.bf16 %v683, %v682
    %v691 = vpack.c.bf16 %v685, %v684
    %v692 = vpack.c.bf16 %v687, %v686
    %v693 = vpack.c.bf16 %v689, %v688
    %v694 = vperm.slane %v495, 2
    %v699 = vunpack.c.l.b16 %v483
    %v700 = vunpack.c.l.b16 %v484
    %v701 = vunpack.c.l.b16 %v485
    %v702 = vunpack.c.l.b16 %v486
    %v703 = vpack.c.b16 %v700, %v699
    %v704 = vpack.c.b16 %v702, %v701
    %705 = vrot.lane.b32.xlu0 %v703, 96
    %v706 = vpop.permute.xlu0 %705
    %707 = vrot.lane.b32.xlu0 %v704, 96
    %v708 = vpop.permute.xlu0 %707
    %v712 = vsel %vm281, %v690, 0
    %v715 = vsel %vm281, %v691, 0
    %v718 = vsel %vm281, %v692, 0
    %v721 = vsel %vm281, %v693, 0
    %723 = vmatpush.bf16.msra.mxu0 0
    %724 = vmatpush.bf16.msra.mxu0 0
    %725 = vmatpush.bf16.msra.mxu0 0
    %726 = vmatpush.bf16.msra.mxu0 0
    %727 = vmatpush.bf16.msra.mxu0 0
    %728 = vmatpush.bf16.msra.mxu0 0
    %729 = vmatpush.bf16.msra.mxu0 %v708
    %730 = vmatpush.bf16.msra.mxu0 %v706
    %731 = vmatmul.bf16.gmra.mxu0 %v712
    %v732 = vpop.f32.mrf.mxu0
    %v733 = vadd.f32 %v694, %v732
    %v734 = vpop.f32.mrf.mxu0
    %v735 = vadd.f32 %v694, %v734
    %736 = vmatmul.bf16.gmra.mxu0 %v715
    %v737 = vpop.f32.mrf.mxu0
    %v738 = vadd.f32 %v694, %v737
    %v739 = vpop.f32.mrf.mxu0
    %v740 = vadd.f32 %v694, %v739
    %741 = vmatmul.bf16.gmra.mxu0 %v718
    %v742 = vpop.f32.mrf.mxu0
    %v743 = vadd.f32 %v694, %v742
    %v744 = vpop.f32.mrf.mxu0
    %v745 = vadd.f32 %v694, %v744
    %746 = vmatmul.bf16.gmra.mxu0 %v721
    %v747 = vpop.f32.mrf.mxu0
    %v748 = vadd.f32 %v694, %v747
    %v749 = vpop.f32.mrf.mxu0
    %v750 = vadd.f32 %v694, %v749
    %751 = vdwg.mxu0
    %v752 = vpack.c.bf16 %v735, %v733
    %v753 = vpack.c.bf16 %v740, %v738
    %v754 = vpack.c.bf16 %v745, %v743
    %v755 = vpack.c.bf16 %v750, %v748
    %760 = vrot.lane.b32.xlu0 %v752, 96
    %v761 = vpop.permute.xlu0 %760
    %762 = vrot.lane.b32.xlu0 %v753, 96
    %v763 = vpop.permute.xlu0 %762
    %764 = vrot.lane.b32.xlu0 %v754, 96
    %v765 = vpop.permute.xlu0 %764
    %766 = vrot.lane.b32.xlu0 %v755, 96
    %v767 = vpop.permute.xlu0 %766
    %vm768 = vcmask 130048
    %v770 = vsel %vm768, %v752, 0
    %v773 = vsel %vm768, %v753, 0
    %v776 = vsel %vm768, %v754, 0
    %v779 = vsel %vm768, %v755, 0
    %v782 = vsel %vm768, %v761, 0
    %v785 = vsel %vm768, %v763, 0
    %v788 = vsel %vm768, %v765, 0
    %v791 = vsel %vm768, %v767, 0
    %793 = vmatpush.bf16.xpose.msra.mxu0 0
    %794 = vmatpush.bf16.xpose.msra.mxu0 0
    %795 = vmatpush.bf16.xpose.msra.mxu0 0
    %796 = vmatpush.bf16.xpose.msra.mxu0 0
    %797 = vmatpush.bf16.xpose.msra.mxu0 %v791
    %798 = vmatpush.bf16.xpose.msra.mxu0 %v788
    %799 = vmatpush.bf16.xpose.msra.mxu0 %v785
    %800 = vmatpush.bf16.xpose.msra.mxu0 %v782
    %801 = vmatmul.bf16.gmra.mxu0 %v770
    %v802 = vpop.f32.mrf.mxu0
    %v803 = vadd.f32 %v28, %v802
    %v804 = vpop.f32.mrf.mxu0
    %v805 = vadd.f32 %v29, %v804
    %806 = vmatmul.bf16.gmra.mxu0 %v773
    %v807 = vpop.f32.mrf.mxu0
    %v808 = vadd.f32 %v30, %v807
    %v809 = vpop.f32.mrf.mxu0
    %v810 = vadd.f32 %v31, %v809
    %811 = vmatmul.bf16.gmra.mxu0 %v776
    %v812 = vpop.f32.mrf.mxu0
    %v813 = vadd.f32 %v32, %v812
    %v814 = vpop.f32.mrf.mxu0
    %v815 = vadd.f32 %v33, %v814
    %816 = vmatmul.bf16.gmra.mxu0 %v779
    %v817 = vpop.f32.mrf.mxu0
    %v818 = vadd.f32 %v34, %v817
    %v819 = vpop.f32.mrf.mxu0
    %v820 = vadd.f32 %v35, %v819
    %821 = vdwg.mxu0
    %v822 = vsel %vm208, %v803, -inf
    %823 = vmax.xlane.f32.xlu0 %v822
    %v824 = vpop.xlane.xlu0 %823
    %v825 = vsel %vm208, %v805, -inf
    %826 = vmax.xlane.f32.xlu0 %v825
    %v827 = vpop.xlane.xlu0 %826
    %v828 = vsel %vm208, %v808, -inf
    %829 = vmax.xlane.f32.xlu0 %v828
    %v830 = vpop.xlane.xlu0 %829
    %v831 = vsel %vm208, %v810, -inf
    %832 = vmax.xlane.f32.xlu0 %v831
    %v833 = vpop.xlane.xlu0 %832
    %v834 = vsel %vm208, %v813, -inf
    %835 = vmax.xlane.f32.xlu0 %v834
    %v836 = vpop.xlane.xlu0 %835
    %v837 = vsel %vm208, %v815, -inf
    %838 = vmax.xlane.f32.xlu0 %v837
    %v839 = vpop.xlane.xlu0 %838
    %v840 = vsel %vm208, %v818, -inf
    %841 = vmax.xlane.f32.xlu0 %v840
    %v842 = vpop.xlane.xlu0 %841
    %v843 = vsel %vm208, %v820, -inf
    %844 = vmax.xlane.f32.xlu0 %v843
    %v845 = vpop.xlane.xlu0 %844
    %v846 = vsub.f32 %v803, %v824
    %v847 = vsub.f32 %v805, %v827
    %v848 = vsub.f32 %v808, %v830
    %v849 = vsub.f32 %v810, %v833
    %v850 = vsub.f32 %v813, %v836
    %v851 = vsub.f32 %v815, %v839
    %v852 = vsub.f32 %v818, %v842
    %v853 = vsub.f32 %v820, %v845
    %v854 = vmul.f32 %v846, 1.442695
    %v855 = vpow.pop %v854
    %v856 = vmul.f32 %v847, 1.442695
    %v857 = vpow.pop %v856
    %v858 = vmul.f32 %v848, 1.442695
    %v859 = vpow.pop %v858
    %v860 = vmul.f32 %v849, 1.442695
    %v861 = vpow.pop %v860
    %v862 = vmul.f32 %v850, 1.442695
    %v863 = vpow.pop %v862
    %v864 = vmul.f32 %v851, 1.442695
    %v865 = vpow.pop %v864
    %v866 = vmul.f32 %v852, 1.442695
    %v867 = vpow.pop %v866
    %v868 = vmul.f32 %v853, 1.442695
    %v869 = vpow.pop %v868
    %v870 = vsel %vm208, %v855, 0.0
    %871 = vadd.xlane.f32.xlu0 %v870
    %v872 = vpop.xlane.xlu0 %871
    %v873 = vsel %vm208, %v857, 0.0
    %874 = vadd.xlane.f32.xlu0 %v873
    %v875 = vpop.xlane.xlu0 %874
    %v876 = vsel %vm208, %v859, 0.0
    %877 = vadd.xlane.f32.xlu0 %v876
    %v878 = vpop.xlane.xlu0 %877
    %v879 = vsel %vm208, %v861, 0.0
    %880 = vadd.xlane.f32.xlu0 %v879
    %v881 = vpop.xlane.xlu0 %880
    %v882 = vsel %vm208, %v863, 0.0
    %883 = vadd.xlane.f32.xlu0 %v882
    %v884 = vpop.xlane.xlu0 %883
    %v885 = vsel %vm208, %v865, 0.0
    %886 = vadd.xlane.f32.xlu0 %v885
    %v887 = vpop.xlane.xlu0 %886
    %v888 = vsel %vm208, %v867, 0.0
    %889 = vadd.xlane.f32.xlu0 %v888
    %v890 = vpop.xlane.xlu0 %889
    %v891 = vsel %vm208, %v869, 0.0
    %892 = vadd.xlane.f32.xlu0 %v891
    %v893 = vpop.xlane.xlu0 %892
    %v894 = vrcp.pop %v872
    %v895 = vmul.f32 %v872, %v894
    %v896 = vsub.f32 1.0, %v895
    %v897 = vmul.f32 %v894, %v896
    %v898 = vadd.f32 %v894, %v897
    %vm899 = vweird.f32 %v872
    %vm900 = vweird.f32 %v894
    %vm901 = vmor %vm899, %vm900
    %v902 = vsel %vm901, %v894, %v898
    %v903 = vand.u32 2147483647, %v872
    %vm904 = vcmp.eq.f32.partialorder %v903, 8.507059e+37
    %v905 = vand.u32 %v872, 2147483648
    %v906 = vor.u32 1.1754944e-38, %v905
    %v907 = vsel %vm904, %v906, %v902
    %v908 = vmul.f32 %v855, %v907
    %v909 = vrcp.pop %v875
    %v910 = vmul.f32 %v875, %v909
    %v911 = vsub.f32 1.0, %v910
    %v912 = vmul.f32 %v909, %v911
    %v913 = vadd.f32 %v909, %v912
    %vm914 = vweird.f32 %v875
    %vm915 = vweird.f32 %v909
    %vm916 = vmor %vm914, %vm915
    %v917 = vsel %vm916, %v909, %v913
    %v918 = vand.u32 2147483647, %v875
    %vm919 = vcmp.eq.f32.partialorder %v918, 8.507059e+37
    %v920 = vand.u32 %v875, 2147483648
    %v921 = vor.u32 1.1754944e-38, %v920
    %v922 = vsel %vm919, %v921, %v917
    %v923 = vmul.f32 %v857, %v922
    %v924 = vrcp.pop %v878
    %v925 = vmul.f32 %v878, %v924
    %v926 = vsub.f32 1.0, %v925
    %v927 = vmul.f32 %v924, %v926
    %v928 = vadd.f32 %v924, %v927
    %vm929 = vweird.f32 %v878
    %vm930 = vweird.f32 %v924
    %vm931 = vmor %vm929, %vm930
    %v932 = vsel %vm931, %v924, %v928
    %v933 = vand.u32 2147483647, %v878
    %vm934 = vcmp.eq.f32.partialorder %v933, 8.507059e+37
    %v935 = vand.u32 %v878, 2147483648
    %v936 = vor.u32 1.1754944e-38, %v935
    %v937 = vsel %vm934, %v936, %v932
    %v938 = vmul.f32 %v859, %v937
    %v939 = vrcp.pop %v881
    %v940 = vmul.f32 %v881, %v939
    %v941 = vsub.f32 1.0, %v940
    %v942 = vmul.f32 %v939, %v941
    %v943 = vadd.f32 %v939, %v942
    %vm944 = vweird.f32 %v881
    %vm945 = vweird.f32 %v939
    %vm946 = vmor %vm944, %vm945
    %v947 = vsel %vm946, %v939, %v943
    %v948 = vand.u32 2147483647, %v881
    %vm949 = vcmp.eq.f32.partialorder %v948, 8.507059e+37
    %v950 = vand.u32 %v881, 2147483648
    %v951 = vor.u32 1.1754944e-38, %v950
    %v952 = vsel %vm949, %v951, %v947
    %v953 = vmul.f32 %v861, %v952
    %v954 = vrcp.pop %v884
    %v955 = vmul.f32 %v884, %v954
    %v956 = vsub.f32 1.0, %v955
    %v957 = vmul.f32 %v954, %v956
    %v958 = vadd.f32 %v954, %v957
    %vm959 = vweird.f32 %v884
    %vm960 = vweird.f32 %v954
    %vm961 = vmor %vm959, %vm960
    %v962 = vsel %vm961, %v954, %v958
    %v963 = vand.u32 2147483647, %v884
    %vm964 = vcmp.eq.f32.partialorder %v963, 8.507059e+37
    %v965 = vand.u32 %v884, 2147483648
    %v966 = vor.u32 1.1754944e-38, %v965
    %v967 = vsel %vm964, %v966, %v962
    %v968 = vmul.f32 %v863, %v967
    %v969 = vrcp.pop %v887
    %v970 = vmul.f32 %v887, %v969
    %v971 = vsub.f32 1.0, %v970
    %v972 = vmul.f32 %v969, %v971
    %v973 = vadd.f32 %v969, %v972
    %vm974 = vweird.f32 %v887
    %vm975 = vweird.f32 %v969
    %vm976 = vmor %vm974, %vm975
    %v977 = vsel %vm976, %v969, %v973
    %v978 = vand.u32 2147483647, %v887
    %vm979 = vcmp.eq.f32.partialorder %v978, 8.507059e+37
    %v980 = vand.u32 %v887, 2147483648
    %v981 = vor.u32 1.1754944e-38, %v980
    %v982 = vsel %vm979, %v981, %v977
    %v983 = vmul.f32 %v865, %v982
    %v984 = vrcp.pop %v890
    %v985 = vmul.f32 %v890, %v984
    %v986 = vsub.f32 1.0, %v985
    %v987 = vmul.f32 %v984, %v986
    %v988 = vadd.f32 %v984, %v987
    %vm989 = vweird.f32 %v890
    %vm990 = vweird.f32 %v984
    %vm991 = vmor %vm989, %vm990
    %v992 = vsel %vm991, %v984, %v988
    %v993 = vand.u32 2147483647, %v890
    %vm994 = vcmp.eq.f32.partialorder %v993, 8.507059e+37
    %v995 = vand.u32 %v890, 2147483648
    %v996 = vor.u32 1.1754944e-38, %v995
    %v997 = vsel %vm994, %v996, %v992
    %v998 = vmul.f32 %v867, %v997
    %v999 = vrcp.pop %v893
    %v1000 = vmul.f32 %v893, %v999
    %v1001 = vsub.f32 1.0, %v1000
    %v1002 = vmul.f32 %v999, %v1001
    %v1003 = vadd.f32 %v999, %v1002
    %vm1004 = vweird.f32 %v893
    %vm1005 = vweird.f32 %v999
    %vm1006 = vmor %vm1004, %vm1005
    %v1007 = vsel %vm1006, %v999, %v1003
    %v1008 = vand.u32 2147483647, %v893
    %vm1009 = vcmp.eq.f32.partialorder %v1008, 8.507059e+37
    %v1010 = vand.u32 %v893, 2147483648
    %v1011 = vor.u32 1.1754944e-38, %v1010
    %v1012 = vsel %vm1009, %v1011, %v1007
    %v1013 = vmul.f32 %v869, %v1012
    %v1014 = vpack.c.bf16 %v923, %v908
    %v1015 = vpack.c.bf16 %v953, %v938
    %v1016 = vpack.c.bf16 %v983, %v968
    %v1017 = vpack.c.bf16 %v1013, %v998
    %1018 = vrot.lane.b32.xlu0 %v752, 64
    %v1019 = vpop.permute.xlu0 %1018
    %1020 = vrot.lane.b32.xlu0 %v753, 64
    %v1021 = vpop.permute.xlu0 %1020
    %1022 = vrot.lane.b32.xlu0 %v754, 64
    %v1023 = vpop.permute.xlu0 %1022
    %1024 = vrot.lane.b32.xlu0 %v755, 64
    %v1025 = vpop.permute.xlu0 %1024
    %v1031 = vsel %vm208, %v1014, 0
    %v1034 = vsel %vm208, %v1015, 0
    %v1037 = vsel %vm208, %v1016, 0
    %v1040 = vsel %vm208, %v1017, 0
    %1042 = vmatpush.bf16.msra.mxu0 0
    %1043 = vmatpush.bf16.msra.mxu0 0
    %1044 = vmatpush.bf16.msra.mxu0 0
    %1045 = vmatpush.bf16.msra.mxu0 0
    %1046 = vmatpush.bf16.msra.mxu0 %v1025
    %1047 = vmatpush.bf16.msra.mxu0 %v1023
    %1048 = vmatpush.bf16.msra.mxu0 %v1021
    %1049 = vmatpush.bf16.msra.mxu0 %v1019
    %1050 = vmatmul.bf16.gmra.mxu0 %v1031
    %v1051 = vpop.f32.mrf.mxu0
    %v1052 = vadd.f32 0.0, %v1051
    %v1053 = vpop.f32.mrf.mxu0
    %v1054 = vadd.f32 0.0, %v1053
    %1055 = vmatmul.bf16.gmra.mxu0 %v1034
    %v1056 = vpop.f32.mrf.mxu0
    %v1057 = vadd.f32 0.0, %v1056
    %v1058 = vpop.f32.mrf.mxu0
    %v1059 = vadd.f32 0.0, %v1058
    %1060 = vmatmul.bf16.gmra.mxu0 %v1037
    %v1061 = vpop.f32.mrf.mxu0
    %v1062 = vadd.f32 0.0, %v1061
    %v1063 = vpop.f32.mrf.mxu0
    %v1064 = vadd.f32 0.0, %v1063
    %1065 = vmatmul.bf16.gmra.mxu0 %v1040
    %v1066 = vpop.f32.mrf.mxu0
    %v1067 = vadd.f32 0.0, %v1066
    %v1068 = vpop.f32.mrf.mxu0
    %v1069 = vadd.f32 0.0, %v1068
    %1070 = vdwg.mxu0
    %1071 = vrot.lane.b32.xlu0 %v752, 112
    %v1072 = vpop.permute.xlu0 %1071
    %1073 = vrot.lane.b32.xlu0 %v753, 112
    %v1074 = vpop.permute.xlu0 %1073
    %1075 = vrot.lane.b32.xlu0 %v754, 112
    %v1076 = vpop.permute.xlu0 %1075
    %1077 = vrot.lane.b32.xlu0 %v755, 112
    %v1078 = vpop.permute.xlu0 %1077
    %1079 = vrot.lane.b32.xlu0 %v752, 80
    %v1080 = vpop.permute.xlu0 %1079
    %1081 = vrot.lane.b32.xlu0 %v753, 80
    %v1082 = vpop.permute.xlu0 %1081
    %1083 = vrot.lane.b32.xlu0 %v754, 80
    %v1084 = vpop.permute.xlu0 %1083
    %1085 = vrot.lane.b32.xlu0 %v755, 80
    %v1086 = vpop.permute.xlu0 %1085
    %v1088 = vsel %vm768, %v1072, 0
    %v1091 = vsel %vm768, %v1074, 0
    %v1094 = vsel %vm768, %v1076, 0
    %v1097 = vsel %vm768, %v1078, 0
    %v1100 = vsel %vm768, %v1080, 0
    %v1103 = vsel %vm768, %v1082, 0
    %v1106 = vsel %vm768, %v1084, 0
    %v1109 = vsel %vm768, %v1086, 0
    %1111 = vmatpush.bf16.xpose.msra.mxu0 0
    %1112 = vmatpush.bf16.xpose.msra.mxu0 0
    %1113 = vmatpush.bf16.xpose.msra.mxu0 0
    %1114 = vmatpush.bf16.xpose.msra.mxu0 0
    %1115 = vmatpush.bf16.xpose.msra.mxu0 %v1109
    %1116 = vmatpush.bf16.xpose.msra.mxu0 %v1106
    %1117 = vmatpush.bf16.xpose.msra.mxu0 %v1103
    %1118 = vmatpush.bf16.xpose.msra.mxu0 %v1100
    %1119 = vmatmul.bf16.gmra.mxu0 %v1088
    %v1120 = vpop.f32.mrf.mxu0
    %v1121 = vadd.f32 %v28, %v1120
    %v1122 = vpop.f32.mrf.mxu0
    %v1123 = vadd.f32 %v29, %v1122
    %1124 = vmatmul.bf16.gmra.mxu0 %v1091
    %v1125 = vpop.f32.mrf.mxu0
    %v1126 = vadd.f32 %v30, %v1125
    %v1127 = vpop.f32.mrf.mxu0
    %v1128 = vadd.f32 %v31, %v1127
    %1129 = vmatmul.bf16.gmra.mxu0 %v1094
    %v1130 = vpop.f32.mrf.mxu0
    %v1131 = vadd.f32 %v32, %v1130
    %v1132 = vpop.f32.mrf.mxu0
    %v1133 = vadd.f32 %v33, %v1132
    %1134 = vmatmul.bf16.gmra.mxu0 %v1097
    %v1135 = vpop.f32.mrf.mxu0
    %v1136 = vadd.f32 %v34, %v1135
    %v1137 = vpop.f32.mrf.mxu0
    %v1138 = vadd.f32 %v35, %v1137
    %1139 = vdwg.mxu0
    %v1140 = vsel %vm208, %v1121, -inf
    %1141 = vmax.xlane.f32.xlu0 %v1140
    %v1142 = vpop.xlane.xlu0 %1141
    %v1143 = vsel %vm208, %v1123, -inf
    %1144 = vmax.xlane.f32.xlu0 %v1143
    %v1145 = vpop.xlane.xlu0 %1144
    %v1146 = vsel %vm208, %v1126, -inf
    %1147 = vmax.xlane.f32.xlu0 %v1146
    %v1148 = vpop.xlane.xlu0 %1147
    %v1149 = vsel %vm208, %v1128, -inf
    %1150 = vmax.xlane.f32.xlu0 %v1149
    %v1151 = vpop.xlane.xlu0 %1150
    %v1152 = vsel %vm208, %v1131, -inf
    %1153 = vmax.xlane.f32.xlu0 %v1152
    %v1154 = vpop.xlane.xlu0 %1153
    %v1155 = vsel %vm208, %v1133, -inf
    %1156 = vmax.xlane.f32.xlu0 %v1155
    %v1157 = vpop.xlane.xlu0 %1156
    %v1158 = vsel %vm208, %v1136, -inf
    %1159 = vmax.xlane.f32.xlu0 %v1158
    %v1160 = vpop.xlane.xlu0 %1159
    %v1161 = vsel %vm208, %v1138, -inf
    %1162 = vmax.xlane.f32.xlu0 %v1161
    %v1163 = vpop.xlane.xlu0 %1162
    %v1164 = vsub.f32 %v1121, %v1142
    %v1165 = vsub.f32 %v1123, %v1145
    %v1166 = vsub.f32 %v1126, %v1148
    %v1167 = vsub.f32 %v1128, %v1151
    %v1168 = vsub.f32 %v1131, %v1154
    %v1169 = vsub.f32 %v1133, %v1157
    %v1170 = vsub.f32 %v1136, %v1160
    %v1171 = vsub.f32 %v1138, %v1163
    %v1172 = vmul.f32 %v1164, 1.442695
    %v1173 = vpow.pop %v1172
    %v1174 = vmul.f32 %v1165, 1.442695
    %v1175 = vpow.pop %v1174
    %v1176 = vmul.f32 %v1166, 1.442695
    %v1177 = vpow.pop %v1176
    %v1178 = vmul.f32 %v1167, 1.442695
    %v1179 = vpow.pop %v1178
    %v1180 = vmul.f32 %v1168, 1.442695
    %v1181 = vpow.pop %v1180
    %v1182 = vmul.f32 %v1169, 1.442695
    %v1183 = vpow.pop %v1182
    %v1184 = vmul.f32 %v1170, 1.442695
    %v1185 = vpow.pop %v1184
    %v1186 = vmul.f32 %v1171, 1.442695
    %v1187 = vpow.pop %v1186
    %v1188 = vsel %vm208, %v1173, 0.0
    %1189 = vadd.xlane.f32.xlu0 %v1188
    %v1190 = vpop.xlane.xlu0 %1189
    %v1191 = vsel %vm208, %v1175, 0.0
    %1192 = vadd.xlane.f32.xlu0 %v1191
    %v1193 = vpop.xlane.xlu0 %1192
    %v1194 = vsel %vm208, %v1177, 0.0
    %1195 = vadd.xlane.f32.xlu0 %v1194
    %v1196 = vpop.xlane.xlu0 %1195
    %v1197 = vsel %vm208, %v1179, 0.0
    %1198 = vadd.xlane.f32.xlu0 %v1197
    %v1199 = vpop.xlane.xlu0 %1198
    %v1200 = vsel %vm208, %v1181, 0.0
    %1201 = vadd.xlane.f32.xlu0 %v1200
    %v1202 = vpop.xlane.xlu0 %1201
    %v1203 = vsel %vm208, %v1183, 0.0
    %1204 = vadd.xlane.f32.xlu0 %v1203
    %v1205 = vpop.xlane.xlu0 %1204
    %v1206 = vsel %vm208, %v1185, 0.0
    %1207 = vadd.xlane.f32.xlu0 %v1206
    %v1208 = vpop.xlane.xlu0 %1207
    %v1209 = vsel %vm208, %v1187, 0.0
    %1210 = vadd.xlane.f32.xlu0 %v1209
    %v1211 = vpop.xlane.xlu0 %1210
    %v1212 = vrcp.pop %v1190
    %v1213 = vmul.f32 %v1190, %v1212
    %v1214 = vsub.f32 1.0, %v1213
    %v1215 = vmul.f32 %v1212, %v1214
    %v1216 = vadd.f32 %v1212, %v1215
    %vm1217 = vweird.f32 %v1190
    %vm1218 = vweird.f32 %v1212
    %vm1219 = vmor %vm1217, %vm1218
    %v1220 = vsel %vm1219, %v1212, %v1216
    %v1221 = vand.u32 2147483647, %v1190
    %vm1222 = vcmp.eq.f32.partialorder %v1221, 8.507059e+37
    %v1223 = vand.u32 %v1190, 2147483648
    %v1224 = vor.u32 1.1754944e-38, %v1223
    %v1225 = vsel %vm1222, %v1224, %v1220
    %v1226 = vmul.f32 %v1173, %v1225
    %v1227 = vrcp.pop %v1193
    %v1228 = vmul.f32 %v1193, %v1227
    %v1229 = vsub.f32 1.0, %v1228
    %v1230 = vmul.f32 %v1227, %v1229
    %v1231 = vadd.f32 %v1227, %v1230
    %vm1232 = vweird.f32 %v1193
    %vm1233 = vweird.f32 %v1227
    %vm1234 = vmor %vm1232, %vm1233
    %v1235 = vsel %vm1234, %v1227, %v1231
    %v1236 = vand.u32 2147483647, %v1193
    %vm1237 = vcmp.eq.f32.partialorder %v1236, 8.507059e+37
    %v1238 = vand.u32 %v1193, 2147483648
    %v1239 = vor.u32 1.1754944e-38, %v1238
    %v1240 = vsel %vm1237, %v1239, %v1235
    %v1241 = vmul.f32 %v1175, %v1240
    %v1242 = vrcp.pop %v1196
    %v1243 = vmul.f32 %v1196, %v1242
    %v1244 = vsub.f32 1.0, %v1243
    %v1245 = vmul.f32 %v1242, %v1244
    %v1246 = vadd.f32 %v1242, %v1245
    %vm1247 = vweird.f32 %v1196
    %vm1248 = vweird.f32 %v1242
    %vm1249 = vmor %vm1247, %vm1248
    %v1250 = vsel %vm1249, %v1242, %v1246
    %v1251 = vand.u32 2147483647, %v1196
    %vm1252 = vcmp.eq.f32.partialorder %v1251, 8.507059e+37
    %v1253 = vand.u32 %v1196, 2147483648
    %v1254 = vor.u32 1.1754944e-38, %v1253
    %v1255 = vsel %vm1252, %v1254, %v1250
    %v1256 = vmul.f32 %v1177, %v1255
    %v1257 = vrcp.pop %v1199
    %v1258 = vmul.f32 %v1199, %v1257
    %v1259 = vsub.f32 1.0, %v1258
    %v1260 = vmul.f32 %v1257, %v1259
    %v1261 = vadd.f32 %v1257, %v1260
    %vm1262 = vweird.f32 %v1199
    %vm1263 = vweird.f32 %v1257
    %vm1264 = vmor %vm1262, %vm1263
    %v1265 = vsel %vm1264, %v1257, %v1261
    %v1266 = vand.u32 2147483647, %v1199
    %vm1267 = vcmp.eq.f32.partialorder %v1266, 8.507059e+37
    %v1268 = vand.u32 %v1199, 2147483648
    %v1269 = vor.u32 1.1754944e-38, %v1268
    %v1270 = vsel %vm1267, %v1269, %v1265
    %v1271 = vmul.f32 %v1179, %v1270
    %v1272 = vrcp.pop %v1202
    %v1273 = vmul.f32 %v1202, %v1272
    %v1274 = vsub.f32 1.0, %v1273
    %v1275 = vmul.f32 %v1272, %v1274
    %v1276 = vadd.f32 %v1272, %v1275
    %vm1277 = vweird.f32 %v1202
    %vm1278 = vweird.f32 %v1272
    %vm1279 = vmor %vm1277, %vm1278
    %v1280 = vsel %vm1279, %v1272, %v1276
    %v1281 = vand.u32 2147483647, %v1202
    %vm1282 = vcmp.eq.f32.partialorder %v1281, 8.507059e+37
    %v1283 = vand.u32 %v1202, 2147483648
    %v1284 = vor.u32 1.1754944e-38, %v1283
    %v1285 = vsel %vm1282, %v1284, %v1280
    %v1286 = vmul.f32 %v1181, %v1285
    %v1287 = vrcp.pop %v1205
    %v1288 = vmul.f32 %v1205, %v1287
    %v1289 = vsub.f32 1.0, %v1288
    %v1290 = vmul.f32 %v1287, %v1289
    %v1291 = vadd.f32 %v1287, %v1290
    %vm1292 = vweird.f32 %v1205
    %vm1293 = vweird.f32 %v1287
    %vm1294 = vmor %vm1292, %vm1293
    %v1295 = vsel %vm1294, %v1287, %v1291
    %v1296 = vand.u32 2147483647, %v1205
    %vm1297 = vcmp.eq.f32.partialorder %v1296, 8.507059e+37
    %v1298 = vand.u32 %v1205, 2147483648
    %v1299 = vor.u32 1.1754944e-38, %v1298
    %v1300 = vsel %vm1297, %v1299, %v1295
    %v1301 = vmul.f32 %v1183, %v1300
    %v1302 = vrcp.pop %v1208
    %v1303 = vmul.f32 %v1208, %v1302
    %v1304 = vsub.f32 1.0, %v1303
    %v1305 = vmul.f32 %v1302, %v1304
    %v1306 = vadd.f32 %v1302, %v1305
    %vm1307 = vweird.f32 %v1208
    %vm1308 = vweird.f32 %v1302
    %vm1309 = vmor %vm1307, %vm1308
    %v1310 = vsel %vm1309, %v1302, %v1306
    %v1311 = vand.u32 2147483647, %v1208
    %vm1312 = vcmp.eq.f32.partialorder %v1311, 8.507059e+37
    %v1313 = vand.u32 %v1208, 2147483648
    %v1314 = vor.u32 1.1754944e-38, %v1313
    %v1315 = vsel %vm1312, %v1314, %v1310
    %v1316 = vmul.f32 %v1185, %v1315
    %v1317 = vrcp.pop %v1211
    %v1318 = vmul.f32 %v1211, %v1317
    %v1319 = vsub.f32 1.0, %v1318
    %v1320 = vmul.f32 %v1317, %v1319
    %v1321 = vadd.f32 %v1317, %v1320
    %vm1322 = vweird.f32 %v1211
    %vm1323 = vweird.f32 %v1317
    %vm1324 = vmor %vm1322, %vm1323
    %v1325 = vsel %vm1324, %v1317, %v1321
    %v1326 = vand.u32 2147483647, %v1211
    %vm1327 = vcmp.eq.f32.partialorder %v1326, 8.507059e+37
    %v1328 = vand.u32 %v1211, 2147483648
    %v1329 = vor.u32 1.1754944e-38, %v1328
    %v1330 = vsel %vm1327, %v1329, %v1325
    %v1331 = vmul.f32 %v1187, %v1330
    %v1332 = vpack.c.bf16 %v1241, %v1226
    %v1333 = vpack.c.bf16 %v1271, %v1256
    %v1334 = vpack.c.bf16 %v1301, %v1286
    %v1335 = vpack.c.bf16 %v1331, %v1316
    %1336 = vrot.lane.b32.xlu0 %v752, 48
    %v1337 = vpop.permute.xlu0 %1336
    %1338 = vrot.lane.b32.xlu0 %v753, 48
    %v1339 = vpop.permute.xlu0 %1338
    %1340 = vrot.lane.b32.xlu0 %v754, 48
    %v1341 = vpop.permute.xlu0 %1340
    %1342 = vrot.lane.b32.xlu0 %v755, 48
    %v1343 = vpop.permute.xlu0 %1342
    %v1349 = vsel %vm208, %v1332, 0
    %v1352 = vsel %vm208, %v1333, 0
    %v1355 = vsel %vm208, %v1334, 0
    %v1358 = vsel %vm208, %v1335, 0
    %1360 = vmatpush.bf16.msra.mxu0 0
    %1361 = vmatpush.bf16.msra.mxu0 0
    %1362 = vmatpush.bf16.msra.mxu0 0
    %1363 = vmatpush.bf16.msra.mxu0 0
    %1364 = vmatpush.bf16.msra.mxu0 %v1343
    %1365 = vmatpush.bf16.msra.mxu0 %v1341
    %1366 = vmatpush.bf16.msra.mxu0 %v1339
    %1367 = vmatpush.bf16.msra.mxu0 %v1337
    %1368 = vmatmul.bf16.gmra.mxu0 %v1349
    %v1369 = vpop.f32.mrf.mxu0
    %v1370 = vadd.f32 0.0, %v1369
    %v1371 = vpop.f32.mrf.mxu0
    %v1372 = vadd.f32 0.0, %v1371
    %1373 = vmatmul.bf16.gmra.mxu0 %v1352
    %v1374 = vpop.f32.mrf.mxu0
    %v1375 = vadd.f32 0.0, %v1374
    %v1376 = vpop.f32.mrf.mxu0
    %v1377 = vadd.f32 0.0, %v1376
    %1378 = vmatmul.bf16.gmra.mxu0 %v1355
    %v1379 = vpop.f32.mrf.mxu0
    %v1380 = vadd.f32 0.0, %v1379
    %v1381 = vpop.f32.mrf.mxu0
    %v1382 = vadd.f32 0.0, %v1381
    %1383 = vmatmul.bf16.gmra.mxu0 %v1358
    %v1384 = vpop.f32.mrf.mxu0
    %v1385 = vadd.f32 0.0, %v1384
    %v1386 = vpop.f32.mrf.mxu0
    %v1387 = vadd.f32 0.0, %v1386
    %1388 = vdwg.mxu0
    %1397 = vrot.lane.b32.xlu0 %v1370, 16
    %v1398 = vpop.permute.xlu0 %1397
    %1399 = vrot.lane.b32.xlu0 %v1372, 16
    %v1400 = vpop.permute.xlu0 %1399
    %1401 = vrot.lane.b32.xlu0 %v1375, 16
    %v1402 = vpop.permute.xlu0 %1401
    %1403 = vrot.lane.b32.xlu0 %v1377, 16
    %v1404 = vpop.permute.xlu0 %1403
    %1405 = vrot.lane.b32.xlu0 %v1380, 16
    %v1406 = vpop.permute.xlu0 %1405
    %1407 = vrot.lane.b32.xlu0 %v1382, 16
    %v1408 = vpop.permute.xlu0 %1407
    %1409 = vrot.lane.b32.xlu0 %v1385, 16
    %v1410 = vpop.permute.xlu0 %1409
    %1411 = vrot.lane.b32.xlu0 %v1387, 16
    %v1412 = vpop.permute.xlu0 %1411
    %v1421 = vsel %vm768, %v1052, %v1398
    %v1422 = vsel %vm768, %v1054, %v1400
    %v1423 = vsel %vm768, %v1057, %v1402
    %v1424 = vsel %vm768, %v1059, %v1404
    %v1425 = vsel %vm768, %v1062, %v1406
    %v1426 = vsel %vm768, %v1064, %v1408
    %v1427 = vsel %vm768, %v1067, %v1410
    %v1428 = vsel %vm768, %v1069, %v1412
    %v1429 = vpack.c.bf16 %v1422, %v1421
    %v1430 = vpack.c.bf16 %v1424, %v1423
    %v1431 = vpack.c.bf16 %v1426, %v1425
    %v1432 = vpack.c.bf16 %v1428, %v1427
    %v1436 = vsel %vm281, %v1429, 0
    %v1439 = vsel %vm281, %v1430, 0
    %v1442 = vsel %vm281, %v1431, 0
    %v1445 = vsel %vm281, %v1432, 0
    %1447 = vmatpush.bf16.msra.mxu0 0
    %1448 = vmatpush.bf16.msra.mxu0 0
    %1449 = vmatpush.bf16.msra.mxu0 0
    %1450 = vmatpush.bf16.msra.mxu0 0
    %1451 = vmatpush.bf16.msra.mxu0 0
    %1452 = vmatpush.bf16.msra.mxu0 0
    %1453 = vmatpush.bf16.msra.mxu0 %v704
    %1454 = vmatpush.bf16.msra.mxu0 %v703
    %1455 = vmatmul.bf16.gmra.mxu0 %v1436
    %v1456 = vpop.f32.mrf.mxu0
    %v1457 = vadd.f32 0.0, %v1456
    %v1458 = vpop.f32.mrf.mxu0
    %v1459 = vadd.f32 0.0, %v1458
    %1460 = vmatmul.bf16.gmra.mxu0 %v1439
    %v1461 = vpop.f32.mrf.mxu0
    %v1462 = vadd.f32 0.0, %v1461
    %v1463 = vpop.f32.mrf.mxu0
    %v1464 = vadd.f32 0.0, %v1463
    %1465 = vmatmul.bf16.gmra.mxu0 %v1442
    %v1466 = vpop.f32.mrf.mxu0
    %v1467 = vadd.f32 0.0, %v1466
    %v1468 = vpop.f32.mrf.mxu0
    %v1469 = vadd.f32 0.0, %v1468
    %1470 = vmatmul.bf16.gmra.mxu0 %v1445
    %v1471 = vpop.f32.mrf.mxu0
    %v1472 = vadd.f32 0.0, %v1471
    %v1473 = vpop.f32.mrf.mxu0
    %v1474 = vadd.f32 0.0, %v1473
    %1475 = vdwg.mxu0
    %v1476 = vadd.f32 %v475, %v1457
    %v1477 = vadd.f32 %v476, %v1459
    %v1478 = vadd.f32 %v477, %v1462
    %v1479 = vadd.f32 %v478, %v1464
    %v1480 = vadd.f32 %v479, %v1467
    %v1481 = vadd.f32 %v480, %v1469
    %v1482 = vadd.f32 %v481, %v1472
    %v1483 = vadd.f32 %v482, %v1474
    %v1484 = vperm.slane %v495, 3
    %v1485 = vadd.f32 %v1476, %v1484
    %v1486 = vadd.f32 %v1477, %v1484
    %v1487 = vadd.f32 %v1478, %v1484
    %v1488 = vadd.f32 %v1479, %v1484
    %v1489 = vadd.f32 %v1480, %v1484
    %v1490 = vadd.f32 %v1481, %v1484
    %v1491 = vadd.f32 %v1482, %v1484
    %v1492 = vadd.f32 %v1483, %v1484
    %v1493 = vsel %vm281, %v1485, 0.0
    %1494 = vadd.xlane.f32.xlu0 %v1493
    %v1495 = vpop.xlane.xlu0 %1494
    %v1496 = vsel %vm281, %v1486, 0.0
    %1497 = vadd.xlane.f32.xlu0 %v1496
    %v1498 = vpop.xlane.xlu0 %1497
    %v1499 = vsel %vm281, %v1487, 0.0
    %1500 = vadd.xlane.f32.xlu0 %v1499
    %v1501 = vpop.xlane.xlu0 %1500
    %v1502 = vsel %vm281, %v1488, 0.0
    %1503 = vadd.xlane.f32.xlu0 %v1502
    %v1504 = vpop.xlane.xlu0 %1503
    %v1505 = vsel %vm281, %v1489, 0.0
    %1506 = vadd.xlane.f32.xlu0 %v1505
    %v1507 = vpop.xlane.xlu0 %1506
    %v1508 = vsel %vm281, %v1490, 0.0
    %1509 = vadd.xlane.f32.xlu0 %v1508
    %v1510 = vpop.xlane.xlu0 %1509
    %v1511 = vsel %vm281, %v1491, 0.0
    %1512 = vadd.xlane.f32.xlu0 %v1511
    %v1513 = vpop.xlane.xlu0 %1512
    %v1514 = vsel %vm281, %v1492, 0.0
    %1515 = vadd.xlane.f32.xlu0 %v1514
    %v1516 = vpop.xlane.xlu0 %1515
    %v1517 = vmul.f32 %v1495, %v312
    %v1518 = vmul.f32 %v1498, %v312
    %v1519 = vmul.f32 %v1501, %v312
    %v1520 = vmul.f32 %v1504, %v312
    %v1521 = vmul.f32 %v1507, %v312
    %v1522 = vmul.f32 %v1510, %v312
    %v1523 = vmul.f32 %v1513, %v312
    %v1524 = vmul.f32 %v1516, %v312
    %v1525 = vsub.f32 %v1485, %v1517
    %v1526 = vsub.f32 %v1486, %v1518
    %v1527 = vsub.f32 %v1487, %v1519
    %v1528 = vsub.f32 %v1488, %v1520
    %v1529 = vsub.f32 %v1489, %v1521
    %v1530 = vsub.f32 %v1490, %v1522
    %v1531 = vsub.f32 %v1491, %v1523
    %v1532 = vsub.f32 %v1492, %v1524
    %v1533 = vmul.f32 %v1525, %v1525
    %v1534 = vmul.f32 %v1526, %v1526
    %v1535 = vmul.f32 %v1527, %v1527
    %v1536 = vmul.f32 %v1528, %v1528
    %v1537 = vmul.f32 %v1529, %v1529
    %v1538 = vmul.f32 %v1530, %v1530
    %v1539 = vmul.f32 %v1531, %v1531
    %v1540 = vmul.f32 %v1532, %v1532
    %v1541 = vsel %vm281, %v1533, 0.0
    %1542 = vadd.xlane.f32.xlu0 %v1541
    %v1543 = vpop.xlane.xlu0 %1542
    %v1544 = vsel %vm281, %v1534, 0.0
    %1545 = vadd.xlane.f32.xlu0 %v1544
    %v1546 = vpop.xlane.xlu0 %1545
    %v1547 = vsel %vm281, %v1535, 0.0
    %1548 = vadd.xlane.f32.xlu0 %v1547
    %v1549 = vpop.xlane.xlu0 %1548
    %v1550 = vsel %vm281, %v1536, 0.0
    %1551 = vadd.xlane.f32.xlu0 %v1550
    %v1552 = vpop.xlane.xlu0 %1551
    %v1553 = vsel %vm281, %v1537, 0.0
    %1554 = vadd.xlane.f32.xlu0 %v1553
    %v1555 = vpop.xlane.xlu0 %1554
    %v1556 = vsel %vm281, %v1538, 0.0
    %1557 = vadd.xlane.f32.xlu0 %v1556
    %v1558 = vpop.xlane.xlu0 %1557
    %v1559 = vsel %vm281, %v1539, 0.0
    %1560 = vadd.xlane.f32.xlu0 %v1559
    %v1561 = vpop.xlane.xlu0 %1560
    %v1562 = vsel %vm281, %v1540, 0.0
    %1563 = vadd.xlane.f32.xlu0 %v1562
    %v1564 = vpop.xlane.xlu0 %1563
    %v1565 = vmul.f32 %v1543, %v312
    %v1566 = vmul.f32 %v1546, %v312
    %v1567 = vmul.f32 %v1549, %v312
    %v1568 = vmul.f32 %v1552, %v312
    %v1569 = vmul.f32 %v1555, %v312
    %v1570 = vmul.f32 %v1558, %v312
    %v1571 = vmul.f32 %v1561, %v312
    %v1572 = vmul.f32 %v1564, %v312
    %v1573 = vadd.f32 %v1565, 1e-05
    %v1574 = vadd.f32 %v1566, 1e-05
    %v1575 = vadd.f32 %v1567, 1e-05
    %v1576 = vadd.f32 %v1568, 1e-05
    %v1577 = vadd.f32 %v1569, 1e-05
    %v1578 = vadd.f32 %v1570, 1e-05
    %v1579 = vadd.f32 %v1571, 1e-05
    %v1580 = vadd.f32 %v1572, 1e-05
    %v1581 = vrsqrt.pop %v1573
    %v1582 = vmul.f32 %v1581, %v1573
    %v1583 = vmul.f32 %v1582, %v1581
    %v1584 = vmul.f32 0.5, %v1583
    %v1585 = vsub.f32 1.5, %v1584
    %v1586 = vmul.f32 %v1581, %v1585
    %vm1587 = vweird.f32 %v1573
    %vm1588 = vweird.f32 %v1581
    %vm1589 = vmor %vm1587, %vm1588
    %v1590 = vsel %vm1589, %v1581, %v1586
    %v1591 = vrsqrt.pop %v1574
    %v1592 = vmul.f32 %v1591, %v1574
    %v1593 = vmul.f32 %v1592, %v1591
    %v1594 = vmul.f32 0.5, %v1593
    %v1595 = vsub.f32 1.5, %v1594
    %v1596 = vmul.f32 %v1591, %v1595
    %vm1597 = vweird.f32 %v1574
    %vm1598 = vweird.f32 %v1591
    %vm1599 = vmor %vm1597, %vm1598
    %v1600 = vsel %vm1599, %v1591, %v1596
    %v1601 = vrsqrt.pop %v1575
    %v1602 = vmul.f32 %v1601, %v1575
    %v1603 = vmul.f32 %v1602, %v1601
    %v1604 = vmul.f32 0.5, %v1603
    %v1605 = vsub.f32 1.5, %v1604
    %v1606 = vmul.f32 %v1601, %v1605
    %vm1607 = vweird.f32 %v1575
    %vm1608 = vweird.f32 %v1601
    %vm1609 = vmor %vm1607, %vm1608
    %v1610 = vsel %vm1609, %v1601, %v1606
    %v1611 = vrsqrt.pop %v1576
    %v1612 = vmul.f32 %v1611, %v1576
    %v1613 = vmul.f32 %v1612, %v1611
    %v1614 = vmul.f32 0.5, %v1613
    %v1615 = vsub.f32 1.5, %v1614
    %v1616 = vmul.f32 %v1611, %v1615
    %vm1617 = vweird.f32 %v1576
    %vm1618 = vweird.f32 %v1611
    %vm1619 = vmor %vm1617, %vm1618
    %v1620 = vsel %vm1619, %v1611, %v1616
    %v1621 = vrsqrt.pop %v1577
    %v1622 = vmul.f32 %v1621, %v1577
    %v1623 = vmul.f32 %v1622, %v1621
    %v1624 = vmul.f32 0.5, %v1623
    %v1625 = vsub.f32 1.5, %v1624
    %v1626 = vmul.f32 %v1621, %v1625
    %vm1627 = vweird.f32 %v1577
    %vm1628 = vweird.f32 %v1621
    %vm1629 = vmor %vm1627, %vm1628
    %v1630 = vsel %vm1629, %v1621, %v1626
    %v1631 = vrsqrt.pop %v1578
    %v1632 = vmul.f32 %v1631, %v1578
    %v1633 = vmul.f32 %v1632, %v1631
    %v1634 = vmul.f32 0.5, %v1633
    %v1635 = vsub.f32 1.5, %v1634
    %v1636 = vmul.f32 %v1631, %v1635
    %vm1637 = vweird.f32 %v1578
    %vm1638 = vweird.f32 %v1631
    %vm1639 = vmor %vm1637, %vm1638
    %v1640 = vsel %vm1639, %v1631, %v1636
    %v1641 = vrsqrt.pop %v1579
    %v1642 = vmul.f32 %v1641, %v1579
    %v1643 = vmul.f32 %v1642, %v1641
    %v1644 = vmul.f32 0.5, %v1643
    %v1645 = vsub.f32 1.5, %v1644
    %v1646 = vmul.f32 %v1641, %v1645
    %vm1647 = vweird.f32 %v1579
    %vm1648 = vweird.f32 %v1641
    %vm1649 = vmor %vm1647, %vm1648
    %v1650 = vsel %vm1649, %v1641, %v1646
    %v1651 = vrsqrt.pop %v1580
    %v1652 = vmul.f32 %v1651, %v1580
    %v1653 = vmul.f32 %v1652, %v1651
    %v1654 = vmul.f32 0.5, %v1653
    %v1655 = vsub.f32 1.5, %v1654
    %v1656 = vmul.f32 %v1651, %v1655
    %vm1657 = vweird.f32 %v1580
    %vm1658 = vweird.f32 %v1651
    %vm1659 = vmor %vm1657, %vm1658
    %v1660 = vsel %vm1659, %v1651, %v1656
    %v1661 = vmul.f32 %v1525, %v1590
    %v1662 = vmul.f32 %v1526, %v1600
    %v1663 = vmul.f32 %v1527, %v1610
    %v1664 = vmul.f32 %v1528, %v1620
    %v1665 = vmul.f32 %v1529, %v1630
    %v1666 = vmul.f32 %v1530, %v1640
    %v1667 = vmul.f32 %v1531, %v1650
    %v1668 = vmul.f32 %v1532, %v1660
    %v1669 = vperm.slane %v495, 4
    %v1670 = vmul.f32 %v1661, %v1669
    %v1671 = vmul.f32 %v1662, %v1669
    %v1672 = vmul.f32 %v1663, %v1669
    %v1673 = vmul.f32 %v1664, %v1669
    %v1674 = vmul.f32 %v1665, %v1669
    %v1675 = vmul.f32 %v1666, %v1669
    %v1676 = vmul.f32 %v1667, %v1669
    %v1677 = vmul.f32 %v1668, %v1669
    %v1678 = vperm.slane %v495, 5
    %v1679 = vadd.f32 %v1670, %v1678
    %v1680 = vadd.f32 %v1671, %v1678
    %v1681 = vadd.f32 %v1672, %v1678
    %v1682 = vadd.f32 %v1673, %v1678
    %v1683 = vadd.f32 %v1674, %v1678
    %v1684 = vadd.f32 %v1675, %v1678
    %v1685 = vadd.f32 %v1676, %v1678
    %v1686 = vadd.f32 %v1677, %v1678
    %v1687 = vpack.c.bf16 %v1680, %v1679
    %v1688 = vpack.c.bf16 %v1682, %v1681
    %v1689 = vpack.c.bf16 %v1684, %v1683
    %v1690 = vpack.c.bf16 %v1686, %v1685
    %v1691 = vperm.slane %v495, 6
    %v1692 = vunpack.c.h.b16 %v483
    %v1693 = vunpack.c.h.b16 %v484
    %v1694 = vunpack.c.h.b16 %v485
    %v1695 = vunpack.c.h.b16 %v486
    %v1696 = vpack.c.b16 %v1693, %v1692
    %v1697 = vpack.c.b16 %v1695, %v1694
    %v1701 = vsel %vm281, %v1687, 0
    %v1704 = vsel %vm281, %v1688, 0
    %v1707 = vsel %vm281, %v1689, 0
    %v1710 = vsel %vm281, %v1690, 0
    %1712 = vmatpush.bf16.msra.mxu0 0
    %1713 = vmatpush.bf16.msra.mxu0 0
    %1714 = vmatpush.bf16.msra.mxu0 0
    %1715 = vmatpush.bf16.msra.mxu0 0
    %1716 = vmatpush.bf16.msra.mxu0 0
    %1717 = vmatpush.bf16.msra.mxu0 0
    %1718 = vmatpush.bf16.msra.mxu0 %v1697
    %1719 = vmatpush.bf16.msra.mxu0 %v1696
    %1720 = vmatmul.bf16.gmra.mxu0 %v1701
    %v1721 = vpop.f32.mrf.mxu0
    %v1722 = vadd.f32 %v1691, %v1721
    %v1723 = vpop.f32.mrf.mxu0
    %v1724 = vadd.f32 %v1691, %v1723
    %1725 = vmatmul.bf16.gmra.mxu0 %v1704
    %v1726 = vpop.f32.mrf.mxu0
    %v1727 = vadd.f32 %v1691, %v1726
    %v1728 = vpop.f32.mrf.mxu0
    %v1729 = vadd.f32 %v1691, %v1728
    %1730 = vmatmul.bf16.gmra.mxu0 %v1707
    %v1731 = vpop.f32.mrf.mxu0
    %v1732 = vadd.f32 %v1691, %v1731
    %v1733 = vpop.f32.mrf.mxu0
    %v1734 = vadd.f32 %v1691, %v1733
    %1735 = vmatmul.bf16.gmra.mxu0 %v1710
    %v1736 = vpop.f32.mrf.mxu0
    %v1737 = vadd.f32 %v1691, %v1736
    %v1738 = vpop.f32.mrf.mxu0
    %v1739 = vadd.f32 %v1691, %v1738
    %1740 = vdwg.mxu0
    %v1741 = vmul.f32 %v1722, 1.702
    %v1742 = vmul.f32 %v1724, 1.702
    %v1743 = vmul.f32 %v1727, 1.702
    %v1744 = vmul.f32 %v1729, 1.702
    %v1745 = vmul.f32 %v1732, 1.702
    %v1746 = vmul.f32 %v1734, 1.702
    %v1747 = vmul.f32 %v1737, 1.702
    %v1748 = vmul.f32 %v1739, 1.702
    %v1749 = vxor.u32 %v1741, 2147483648
    %v1750 = vxor.u32 %v1742, 2147483648
    %v1751 = vxor.u32 %v1743, 2147483648
    %v1752 = vxor.u32 %v1744, 2147483648
    %v1753 = vxor.u32 %v1745, 2147483648
    %v1754 = vxor.u32 %v1746, 2147483648
    %v1755 = vxor.u32 %v1747, 2147483648
    %v1756 = vxor.u32 %v1748, 2147483648
    %v1757 = vmul.f32 %v1749, 1.442695
    %v1758 = vpow.pop %v1757
    %v1759 = vmul.f32 %v1750, 1.442695
    %v1760 = vpow.pop %v1759
    %v1761 = vmul.f32 %v1751, 1.442695
    %v1762 = vpow.pop %v1761
    %v1763 = vmul.f32 %v1752, 1.442695
    %v1764 = vpow.pop %v1763
    %v1765 = vmul.f32 %v1753, 1.442695
    %v1766 = vpow.pop %v1765
    %v1767 = vmul.f32 %v1754, 1.442695
    %v1768 = vpow.pop %v1767
    %v1769 = vmul.f32 %v1755, 1.442695
    %v1770 = vpow.pop %v1769
    %v1771 = vmul.f32 %v1756, 1.442695
    %v1772 = vpow.pop %v1771
    %v1773 = vadd.f32 %v1758, 1.0
    %v1774 = vadd.f32 %v1760, 1.0
    %v1775 = vadd.f32 %v1762, 1.0
    %v1776 = vadd.f32 %v1764, 1.0
    %v1777 = vadd.f32 %v1766, 1.0
    %v1778 = vadd.f32 %v1768, 1.0
    %v1779 = vadd.f32 %v1770, 1.0
    %v1780 = vadd.f32 %v1772, 1.0
    %v1781 = vrcp.pop %v1773
    %v1782 = vmul.f32 %v1773, %v1781
    %v1783 = vsub.f32 1.0, %v1782
    %v1784 = vmul.f32 %v1781, %v1783
    %v1785 = vadd.f32 %v1781, %v1784
    %vm1786 = vweird.f32 %v1773
    %vm1787 = vweird.f32 %v1781
    %vm1788 = vmor %vm1786, %vm1787
    %v1789 = vsel %vm1788, %v1781, %v1785
    %v1790 = vand.u32 2147483647, %v1773
    %vm1791 = vcmp.eq.f32.partialorder %v1790, 8.507059e+37
    %v1792 = vand.u32 %v1773, 2147483648
    %v1793 = vor.u32 1.1754944e-38, %v1792
    %v1794 = vsel %vm1791, %v1793, %v1789
    %v1795 = vmul.f32 1.0, %v1794
    %v1796 = vrcp.pop %v1774
    %v1797 = vmul.f32 %v1774, %v1796
    %v1798 = vsub.f32 1.0, %v1797
    %v1799 = vmul.f32 %v1796, %v1798
    %v1800 = vadd.f32 %v1796, %v1799
    %vm1801 = vweird.f32 %v1774
    %vm1802 = vweird.f32 %v1796
    %vm1803 = vmor %vm1801, %vm1802
    %v1804 = vsel %vm1803, %v1796, %v1800
    %v1805 = vand.u32 2147483647, %v1774
    %vm1806 = vcmp.eq.f32.partialorder %v1805, 8.507059e+37
    %v1807 = vand.u32 %v1774, 2147483648
    %v1808 = vor.u32 1.1754944e-38, %v1807
    %v1809 = vsel %vm1806, %v1808, %v1804
    %v1810 = vmul.f32 1.0, %v1809
    %v1811 = vrcp.pop %v1775
    %v1812 = vmul.f32 %v1775, %v1811
    %v1813 = vsub.f32 1.0, %v1812
    %v1814 = vmul.f32 %v1811, %v1813
    %v1815 = vadd.f32 %v1811, %v1814
    %vm1816 = vweird.f32 %v1775
    %vm1817 = vweird.f32 %v1811
    %vm1818 = vmor %vm1816, %vm1817
    %v1819 = vsel %vm1818, %v1811, %v1815
    %v1820 = vand.u32 2147483647, %v1775
    %vm1821 = vcmp.eq.f32.partialorder %v1820, 8.507059e+37
    %v1822 = vand.u32 %v1775, 2147483648
    %v1823 = vor.u32 1.1754944e-38, %v1822
    %v1824 = vsel %vm1821, %v1823, %v1819
    %v1825 = vmul.f32 1.0, %v1824
    %v1826 = vrcp.pop %v1776
    %v1827 = vmul.f32 %v1776, %v1826
    %v1828 = vsub.f32 1.0, %v1827
    %v1829 = vmul.f32 %v1826, %v1828
    %v1830 = vadd.f32 %v1826, %v1829
    %vm1831 = vweird.f32 %v1776
    %vm1832 = vweird.f32 %v1826
    %vm1833 = vmor %vm1831, %vm1832
    %v1834 = vsel %vm1833, %v1826, %v1830
    %v1835 = vand.u32 2147483647, %v1776
    %vm1836 = vcmp.eq.f32.partialorder %v1835, 8.507059e+37
    %v1837 = vand.u32 %v1776, 2147483648
    %v1838 = vor.u32 1.1754944e-38, %v1837
    %v1839 = vsel %vm1836, %v1838, %v1834
    %v1840 = vmul.f32 1.0, %v1839
    %v1841 = vrcp.pop %v1777
    %v1842 = vmul.f32 %v1777, %v1841
    %v1843 = vsub.f32 1.0, %v1842
    %v1844 = vmul.f32 %v1841, %v1843
    %v1845 = vadd.f32 %v1841, %v1844
    %vm1846 = vweird.f32 %v1777
    %vm1847 = vweird.f32 %v1841
    %vm1848 = vmor %vm1846, %vm1847
    %v1849 = vsel %vm1848, %v1841, %v1845
    %v1850 = vand.u32 2147483647, %v1777
    %vm1851 = vcmp.eq.f32.partialorder %v1850, 8.507059e+37
    %v1852 = vand.u32 %v1777, 2147483648
    %v1853 = vor.u32 1.1754944e-38, %v1852
    %v1854 = vsel %vm1851, %v1853, %v1849
    %v1855 = vmul.f32 1.0, %v1854
    %v1856 = vrcp.pop %v1778
    %v1857 = vmul.f32 %v1778, %v1856
    %v1858 = vsub.f32 1.0, %v1857
    %v1859 = vmul.f32 %v1856, %v1858
    %v1860 = vadd.f32 %v1856, %v1859
    %vm1861 = vweird.f32 %v1778
    %vm1862 = vweird.f32 %v1856
    %vm1863 = vmor %vm1861, %vm1862
    %v1864 = vsel %vm1863, %v1856, %v1860
    %v1865 = vand.u32 2147483647, %v1778
    %vm1866 = vcmp.eq.f32.partialorder %v1865, 8.507059e+37
    %v1867 = vand.u32 %v1778, 2147483648
    %v1868 = vor.u32 1.1754944e-38, %v1867
    %v1869 = vsel %vm1866, %v1868, %v1864
    %v1870 = vmul.f32 1.0, %v1869
    %v1871 = vrcp.pop %v1779
    %v1872 = vmul.f32 %v1779, %v1871
    %v1873 = vsub.f32 1.0, %v1872
    %v1874 = vmul.f32 %v1871, %v1873
    %v1875 = vadd.f32 %v1871, %v1874
    %vm1876 = vweird.f32 %v1779
    %vm1877 = vweird.f32 %v1871
    %vm1878 = vmor %vm1876, %vm1877
    %v1879 = vsel %vm1878, %v1871, %v1875
    %v1880 = vand.u32 2147483647, %v1779
    %vm1881 = vcmp.eq.f32.partialorder %v1880, 8.507059e+37
    %v1882 = vand.u32 %v1779, 2147483648
    %v1883 = vor.u32 1.1754944e-38, %v1882
    %v1884 = vsel %vm1881, %v1883, %v1879
    %v1885 = vmul.f32 1.0, %v1884
    %v1886 = vrcp.pop %v1780
    %v1887 = vmul.f32 %v1780, %v1886
    %v1888 = vsub.f32 1.0, %v1887
    %v1889 = vmul.f32 %v1886, %v1888
    %v1890 = vadd.f32 %v1886, %v1889
    %vm1891 = vweird.f32 %v1780
    %vm1892 = vweird.f32 %v1886
    %vm1893 = vmor %vm1891, %vm1892
    %v1894 = vsel %vm1893, %v1886, %v1890
    %v1895 = vand.u32 2147483647, %v1780
    %vm1896 = vcmp.eq.f32.partialorder %v1895, 8.507059e+37
    %v1897 = vand.u32 %v1780, 2147483648
    %v1898 = vor.u32 1.1754944e-38, %v1897
    %v1899 = vsel %vm1896, %v1898, %v1894
    %v1900 = vmul.f32 1.0, %v1899
    %v1901 = vmul.f32 %v1722, %v1795
    %v1902 = vmul.f32 %v1724, %v1810
    %v1903 = vmul.f32 %v1727, %v1825
    %v1904 = vmul.f32 %v1729, %v1840
    %v1905 = vmul.f32 %v1732, %v1855
    %v1906 = vmul.f32 %v1734, %v1870
    %v1907 = vmul.f32 %v1737, %v1885
    %v1908 = vmul.f32 %v1739, %v1900
    %v1909 = vpack.c.bf16 %v1902, %v1901
    %v1910 = vpack.c.bf16 %v1904, %v1903
    %v1911 = vpack.c.bf16 %v1906, %v1905
    %v1912 = vpack.c.bf16 %v1908, %v1907
    %v1921 = vunpack.c.l.b16 %v487
    %v1922 = vunpack.c.l.b16 %v488
    %v1923 = vunpack.c.l.b16 %v489
    %v1924 = vunpack.c.l.b16 %v490
    %v1925 = vunpack.c.l.b16 %v491
    %v1926 = vunpack.c.l.b16 %v492
    %v1927 = vunpack.c.l.b16 %v493
    %v1928 = vunpack.c.l.b16 %v494
    %v1929 = vpack.c.b16 %v1922, %v1921
    %v1930 = vpack.c.b16 %v1924, %v1923
    %v1931 = vpack.c.b16 %v1926, %v1925
    %v1932 = vpack.c.b16 %v1928, %v1927
    %v1938 = vsel %vm208, %v1909, 0
    %v1941 = vsel %vm208, %v1910, 0
    %v1944 = vsel %vm208, %v1911, 0
    %v1947 = vsel %vm208, %v1912, 0
    %1949 = vmatpush.bf16.msra.mxu0 0
    %1950 = vmatpush.bf16.msra.mxu0 0
    %1951 = vmatpush.bf16.msra.mxu0 0
    %1952 = vmatpush.bf16.msra.mxu0 0
    %1953 = vmatpush.bf16.msra.mxu0 %v1932
    %1954 = vmatpush.bf16.msra.mxu0 %v1931
    %1955 = vmatpush.bf16.msra.mxu0 %v1930
    %1956 = vmatpush.bf16.msra.mxu0 %v1929
    %1957 = vmatmul.bf16.gmra.mxu0 %v1938
    %v1958 = vpop.f32.mrf.mxu0
    %v1959 = vadd.f32 0.0, %v1958
    %v1960 = vpop.f32.mrf.mxu0
    %v1961 = vadd.f32 0.0, %v1960
    %1962 = vmatmul.bf16.gmra.mxu0 %v1941
    %v1963 = vpop.f32.mrf.mxu0
    %v1964 = vadd.f32 0.0, %v1963
    %v1965 = vpop.f32.mrf.mxu0
    %v1966 = vadd.f32 0.0, %v1965
    %1967 = vmatmul.bf16.gmra.mxu0 %v1944
    %v1968 = vpop.f32.mrf.mxu0
    %v1969 = vadd.f32 0.0, %v1968
    %v1970 = vpop.f32.mrf.mxu0
    %v1971 = vadd.f32 0.0, %v1970
    %1972 = vmatmul.bf16.gmra.mxu0 %v1947
    %v1973 = vpop.f32.mrf.mxu0
    %v1974 = vadd.f32 0.0, %v1973
    %v1975 = vpop.f32.mrf.mxu0
    %v1976 = vadd.f32 0.0, %v1975
    %1977 = vdwg.mxu0
    %v1978 = vadd.f32 %v1485, %v1959
    %v1979 = vadd.f32 %v1486, %v1961
    %v1980 = vadd.f32 %v1487, %v1964
    %v1981 = vadd.f32 %v1488, %v1966
    %v1982 = vadd.f32 %v1489, %v1969
    %v1983 = vadd.f32 %v1490, %v1971
    %v1984 = vadd.f32 %v1491, %v1974
    %v1985 = vadd.f32 %v1492, %v1976
    %v1986 = vperm.slane %v495, 7
    %v1987 = vadd.f32 %v1978, %v1986
    %v1988 = vadd.f32 %v1979, %v1986
    %v1989 = vadd.f32 %v1980, %v1986
    %v1990 = vadd.f32 %v1981, %v1986
    %v1991 = vadd.f32 %v1982, %v1986
    %v1992 = vadd.f32 %v1983, %v1986
    %v1993 = vadd.f32 %v1984, %v1986
    %v1994 = vadd.f32 %v1985, %v1986
    %s1995 = scalar_lea.vmem %s3, 32
    %v1996 = vld [vmem:[%s1995] sm:$0xff]
    %v1997 = vld [vmem:[%s1995 + $0x8] sm:$0xff]
    %v1998 = vld [vmem:[%s1995 + $0x10] sm:$0xff]
    %v1999 = vld [vmem:[%s1995 + $0x18] sm:$0xff]
    %s2000 = scalar_lea.vmem %s4, 32
    %v2001 = vld [vmem:[%s2000] sm:$0xf]
    %v2002 = vld [vmem:[%s2000 + $0x4] sm:$0xf]
    %v2003 = vld [vmem:[%s2000 + $0x8] sm:$0xf]
    %v2004 = vld [vmem:[%s2000 + $0xc] sm:$0xf]
    %v2005 = vld [vmem:[%s2000 + $0x10] sm:$0xf]
    %v2006 = vld [vmem:[%s2000 + $0x14] sm:$0xf]
    %v2007 = vld [vmem:[%s2000 + $0x18] sm:$0xf]
    %v2008 = vld [vmem:[%s2000 + $0x1c] sm:$0xf]
    %s2009 = scalar_lea.vmem %s5, 8
    %v2010 = vld [vmem:[%s2009] sm:$0xff]
    %v2011 = vsel %vm281, %v1987, 0.0
    %2012 = vadd.xlane.f32.xlu0 %v2011
    %v2013 = vpop.xlane.xlu0 %2012
    %v2014 = vsel %vm281, %v1988, 0.0
    %2015 = vadd.xlane.f32.xlu0 %v2014
    %v2016 = vpop.xlane.xlu0 %2015
    %v2017 = vsel %vm281, %v1989, 0.0
    %2018 = vadd.xlane.f32.xlu0 %v2017
    %v2019 = vpop.xlane.xlu0 %2018
    %v2020 = vsel %vm281, %v1990, 0.0
    %2021 = vadd.xlane.f32.xlu0 %v2020
    %v2022 = vpop.xlane.xlu0 %2021
    %v2023 = vsel %vm281, %v1991, 0.0
    %2024 = vadd.xlane.f32.xlu0 %v2023
    %v2025 = vpop.xlane.xlu0 %2024
    %v2026 = vsel %vm281, %v1992, 0.0
    %2027 = vadd.xlane.f32.xlu0 %v2026
    %v2028 = vpop.xlane.xlu0 %2027
    %v2029 = vsel %vm281, %v1993, 0.0
    %2030 = vadd.xlane.f32.xlu0 %v2029
    %v2031 = vpop.xlane.xlu0 %2030
    %v2032 = vsel %vm281, %v1994, 0.0
    %2033 = vadd.xlane.f32.xlu0 %v2032
    %v2034 = vpop.xlane.xlu0 %2033
    %v2035 = vmul.f32 %v2013, %v312
    %v2036 = vmul.f32 %v2016, %v312
    %v2037 = vmul.f32 %v2019, %v312
    %v2038 = vmul.f32 %v2022, %v312
    %v2039 = vmul.f32 %v2025, %v312
    %v2040 = vmul.f32 %v2028, %v312
    %v2041 = vmul.f32 %v2031, %v312
    %v2042 = vmul.f32 %v2034, %v312
    %v2043 = vsub.f32 %v1987, %v2035
    %v2044 = vsub.f32 %v1988, %v2036
    %v2045 = vsub.f32 %v1989, %v2037
    %v2046 = vsub.f32 %v1990, %v2038
    %v2047 = vsub.f32 %v1991, %v2039
    %v2048 = vsub.f32 %v1992, %v2040
    %v2049 = vsub.f32 %v1993, %v2041
    %v2050 = vsub.f32 %v1994, %v2042
    %v2051 = vmul.f32 %v2043, %v2043
    %v2052 = vmul.f32 %v2044, %v2044
    %v2053 = vmul.f32 %v2045, %v2045
    %v2054 = vmul.f32 %v2046, %v2046
    %v2055 = vmul.f32 %v2047, %v2047
    %v2056 = vmul.f32 %v2048, %v2048
    %v2057 = vmul.f32 %v2049, %v2049
    %v2058 = vmul.f32 %v2050, %v2050
    %v2059 = vsel %vm281, %v2051, 0.0
    %2060 = vadd.xlane.f32.xlu0 %v2059
    %v2061 = vpop.xlane.xlu0 %2060
    %v2062 = vsel %vm281, %v2052, 0.0
    %2063 = vadd.xlane.f32.xlu0 %v2062
    %v2064 = vpop.xlane.xlu0 %2063
    %v2065 = vsel %vm281, %v2053, 0.0
    %2066 = vadd.xlane.f32.xlu0 %v2065
    %v2067 = vpop.xlane.xlu0 %2066
    %v2068 = vsel %vm281, %v2054, 0.0
    %2069 = vadd.xlane.f32.xlu0 %v2068
    %v2070 = vpop.xlane.xlu0 %2069
    %v2071 = vsel %vm281, %v2055, 0.0
    %2072 = vadd.xlane.f32.xlu0 %v2071
    %v2073 = vpop.xlane.xlu0 %2072
    %v2074 = vsel %vm281, %v2056, 0.0
    %2075 = vadd.xlane.f32.xlu0 %v2074
    %v2076 = vpop.xlane.xlu0 %2075
    %v2077 = vsel %vm281, %v2057, 0.0
    %2078 = vadd.xlane.f32.xlu0 %v2077
    %v2079 = vpop.xlane.xlu0 %2078
    %v2080 = vsel %vm281, %v2058, 0.0
    %2081 = vadd.xlane.f32.xlu0 %v2080
    %v2082 = vpop.xlane.xlu0 %2081
    %v2083 = vmul.f32 %v2061, %v312
    %v2084 = vmul.f32 %v2064, %v312
    %v2085 = vmul.f32 %v2067, %v312
    %v2086 = vmul.f32 %v2070, %v312
    %v2087 = vmul.f32 %v2073, %v312
    %v2088 = vmul.f32 %v2076, %v312
    %v2089 = vmul.f32 %v2079, %v312
    %v2090 = vmul.f32 %v2082, %v312
    %v2091 = vadd.f32 %v2083, 1e-05
    %v2092 = vadd.f32 %v2084, 1e-05
    %v2093 = vadd.f32 %v2085, 1e-05
    %v2094 = vadd.f32 %v2086, 1e-05
    %v2095 = vadd.f32 %v2087, 1e-05
    %v2096 = vadd.f32 %v2088, 1e-05
    %v2097 = vadd.f32 %v2089, 1e-05
    %v2098 = vadd.f32 %v2090, 1e-05
    %v2099 = vrsqrt.pop %v2091
    %v2100 = vmul.f32 %v2099, %v2091
    %v2101 = vmul.f32 %v2100, %v2099
    %v2102 = vmul.f32 0.5, %v2101
    %v2103 = vsub.f32 1.5, %v2102
    %v2104 = vmul.f32 %v2099, %v2103
    %vm2105 = vweird.f32 %v2091
    %vm2106 = vweird.f32 %v2099
    %vm2107 = vmor %vm2105, %vm2106
    %v2108 = vsel %vm2107, %v2099, %v2104
    %v2109 = vrsqrt.pop %v2092
    %v2110 = vmul.f32 %v2109, %v2092
    %v2111 = vmul.f32 %v2110, %v2109
    %v2112 = vmul.f32 0.5, %v2111
    %v2113 = vsub.f32 1.5, %v2112
    %v2114 = vmul.f32 %v2109, %v2113
    %vm2115 = vweird.f32 %v2092
    %vm2116 = vweird.f32 %v2109
    %vm2117 = vmor %vm2115, %vm2116
    %v2118 = vsel %vm2117, %v2109, %v2114
    %v2119 = vrsqrt.pop %v2093
    %v2120 = vmul.f32 %v2119, %v2093
    %v2121 = vmul.f32 %v2120, %v2119
    %v2122 = vmul.f32 0.5, %v2121
    %v2123 = vsub.f32 1.5, %v2122
    %v2124 = vmul.f32 %v2119, %v2123
    %vm2125 = vweird.f32 %v2093
    %vm2126 = vweird.f32 %v2119
    %vm2127 = vmor %vm2125, %vm2126
    %v2128 = vsel %vm2127, %v2119, %v2124
    %v2129 = vrsqrt.pop %v2094
    %v2130 = vmul.f32 %v2129, %v2094
    %v2131 = vmul.f32 %v2130, %v2129
    %v2132 = vmul.f32 0.5, %v2131
    %v2133 = vsub.f32 1.5, %v2132
    %v2134 = vmul.f32 %v2129, %v2133
    %vm2135 = vweird.f32 %v2094
    %vm2136 = vweird.f32 %v2129
    %vm2137 = vmor %vm2135, %vm2136
    %v2138 = vsel %vm2137, %v2129, %v2134
    %v2139 = vrsqrt.pop %v2095
    %v2140 = vmul.f32 %v2139, %v2095
    %v2141 = vmul.f32 %v2140, %v2139
    %v2142 = vmul.f32 0.5, %v2141
    %v2143 = vsub.f32 1.5, %v2142
    %v2144 = vmul.f32 %v2139, %v2143
    %vm2145 = vweird.f32 %v2095
    %vm2146 = vweird.f32 %v2139
    %vm2147 = vmor %vm2145, %vm2146
    %v2148 = vsel %vm2147, %v2139, %v2144
    %v2149 = vrsqrt.pop %v2096
    %v2150 = vmul.f32 %v2149, %v2096
    %v2151 = vmul.f32 %v2150, %v2149
    %v2152 = vmul.f32 0.5, %v2151
    %v2153 = vsub.f32 1.5, %v2152
    %v2154 = vmul.f32 %v2149, %v2153
    %vm2155 = vweird.f32 %v2096
    %vm2156 = vweird.f32 %v2149
    %vm2157 = vmor %vm2155, %vm2156
    %v2158 = vsel %vm2157, %v2149, %v2154
    %v2159 = vrsqrt.pop %v2097
    %v2160 = vmul.f32 %v2159, %v2097
    %v2161 = vmul.f32 %v2160, %v2159
    %v2162 = vmul.f32 0.5, %v2161
    %v2163 = vsub.f32 1.5, %v2162
    %v2164 = vmul.f32 %v2159, %v2163
    %vm2165 = vweird.f32 %v2097
    %vm2166 = vweird.f32 %v2159
    %vm2167 = vmor %vm2165, %vm2166
    %v2168 = vsel %vm2167, %v2159, %v2164
    %v2169 = vrsqrt.pop %v2098
    %v2170 = vmul.f32 %v2169, %v2098
    %v2171 = vmul.f32 %v2170, %v2169
    %v2172 = vmul.f32 0.5, %v2171
    %v2173 = vsub.f32 1.5, %v2172
    %v2174 = vmul.f32 %v2169, %v2173
    %vm2175 = vweird.f32 %v2098
    %vm2176 = vweird.f32 %v2169
    %vm2177 = vmor %vm2175, %vm2176
    %v2178 = vsel %vm2177, %v2169, %v2174
    %v2179 = vmul.f32 %v2043, %v2108
    %v2180 = vmul.f32 %v2044, %v2118
    %v2181 = vmul.f32 %v2045, %v2128
    %v2182 = vmul.f32 %v2046, %v2138
    %v2183 = vmul.f32 %v2047, %v2148
    %v2184 = vmul.f32 %v2048, %v2158
    %v2185 = vmul.f32 %v2049, %v2168
    %v2186 = vmul.f32 %v2050, %v2178
    %v2187 = vperm.slane %v2010, 0
    %v2188 = vmul.f32 %v2179, %v2187
    %v2189 = vmul.f32 %v2180, %v2187
    %v2190 = vmul.f32 %v2181, %v2187
    %v2191 = vmul.f32 %v2182, %v2187
    %v2192 = vmul.f32 %v2183, %v2187
    %v2193 = vmul.f32 %v2184, %v2187
    %v2194 = vmul.f32 %v2185, %v2187
    %v2195 = vmul.f32 %v2186, %v2187
    %v2196 = vperm.slane %v2010, 1
    %v2197 = vadd.f32 %v2188, %v2196
    %v2198 = vadd.f32 %v2189, %v2196
    %v2199 = vadd.f32 %v2190, %v2196
    %v2200 = vadd.f32 %v2191, %v2196
    %v2201 = vadd.f32 %v2192, %v2196
    %v2202 = vadd.f32 %v2193, %v2196
    %v2203 = vadd.f32 %v2194, %v2196
    %v2204 = vadd.f32 %v2195, %v2196
    %v2205 = vpack.c.bf16 %v2198, %v2197
    %v2206 = vpack.c.bf16 %v2200, %v2199
    %v2207 = vpack.c.bf16 %v2202, %v2201
    %v2208 = vpack.c.bf16 %v2204, %v2203
    %v2209 = vperm.slane %v2010, 2
    %v2214 = vunpack.c.l.b16 %v1996
    %v2215 = vunpack.c.l.b16 %v1997
    %v2216 = vunpack.c.l.b16 %v1998
    %v2217 = vunpack.c.l.b16 %v1999
    %v2218 = vpack.c.b16 %v2215, %v2214
    %v2219 = vpack.c.b16 %v2217, %v2216
    %2220 = vrot.lane.b32.xlu0 %v2218, 96
    %v2221 = vpop.permute.xlu0 %2220
    %2222 = vrot.lane.b32.xlu0 %v2219, 96
    %v2223 = vpop.permute.xlu0 %2222
    %v2227 = vsel %vm281, %v2205, 0
    %v2230 = vsel %vm281, %v2206, 0
    %v2233 = vsel %vm281, %v2207, 0
    %v2236 = vsel %vm281, %v2208, 0
    %2238 = vmatpush.bf16.msra.mxu0 0
    %2239 = vmatpush.bf16.msra.mxu0 0
    %2240 = vmatpush.bf16.msra.mxu0 0
    %2241 = vmatpush.bf16.msra.mxu0 0
    %2242 = vmatpush.bf16.msra.mxu0 0
    %2243 = vmatpush.bf16.msra.mxu0 0
    %2244 = vmatpush.bf16.msra.mxu0 %v2223
    %2245 = vmatpush.bf16.msra.mxu0 %v2221
    %2246 = vmatmul.bf16.gmra.mxu0 %v2227
    %v2247 = vpop.f32.mrf.mxu0
    %v2248 = vadd.f32 %v2209, %v2247
    %v2249 = vpop.f32.mrf.mxu0
    %v2250 = vadd.f32 %v2209, %v2249
    %2251 = vmatmul.bf16.gmra.mxu0 %v2230
    %v2252 = vpop.f32.mrf.mxu0
    %v2253 = vadd.f32 %v2209, %v2252
    %v2254 = vpop.f32.mrf.mxu0
    %v2255 = vadd.f32 %v2209, %v2254
    %2256 = vmatmul.bf16.gmra.mxu0 %v2233
    %v2257 = vpop.f32.mrf.mxu0
    %v2258 = vadd.f32 %v2209, %v2257
    %v2259 = vpop.f32.mrf.mxu0
    %v2260 = vadd.f32 %v2209, %v2259
    %2261 = vmatmul.bf16.gmra.mxu0 %v2236
    %v2262 = vpop.f32.mrf.mxu0
    %v2263 = vadd.f32 %v2209, %v2262
    %v2264 = vpop.f32.mrf.mxu0
    %v2265 = vadd.f32 %v2209, %v2264
    %2266 = vdwg.mxu0
    %v2267 = vpack.c.bf16 %v2250, %v2248
    %v2268 = vpack.c.bf16 %v2255, %v2253
    %v2269 = vpack.c.bf16 %v2260, %v2258
    %v2270 = vpack.c.bf16 %v2265, %v2263
    %2275 = vrot.lane.b32.xlu0 %v2267, 96
    %v2276 = vpop.permute.xlu0 %2275
    %2277 = vrot.lane.b32.xlu0 %v2268, 96
    %v2278 = vpop.permute.xlu0 %2277
    %2279 = vrot.lane.b32.xlu0 %v2269, 96
    %v2280 = vpop.permute.xlu0 %2279
    %2281 = vrot.lane.b32.xlu0 %v2270, 96
    %v2282 = vpop.permute.xlu0 %2281
    %v2284 = vsel %vm768, %v2267, 0
    %v2287 = vsel %vm768, %v2268, 0
    %v2290 = vsel %vm768, %v2269, 0
    %v2293 = vsel %vm768, %v2270, 0
    %v2296 = vsel %vm768, %v2276, 0
    %v2299 = vsel %vm768, %v2278, 0
    %v2302 = vsel %vm768, %v2280, 0
    %v2305 = vsel %vm768, %v2282, 0
    %2307 = vmatpush.bf16.xpose.msra.mxu0 0
    %2308 = vmatpush.bf16.xpose.msra.mxu0 0
    %2309 = vmatpush.bf16.xpose.msra.mxu0 0
    %2310 = vmatpush.bf16.xpose.msra.mxu0 0
    %2311 = vmatpush.bf16.xpose.msra.mxu0 %v2305
    %2312 = vmatpush.bf16.xpose.msra.mxu0 %v2302
    %2313 = vmatpush.bf16.xpose.msra.mxu0 %v2299
    %2314 = vmatpush.bf16.xpose.msra.mxu0 %v2296
    %2315 = vmatmul.bf16.gmra.mxu0 %v2284
    %v2316 = vpop.f32.mrf.mxu0
    %v2317 = vadd.f32 %v28, %v2316
    %v2318 = vpop.f32.mrf.mxu0
    %v2319 = vadd.f32 %v29, %v2318
    %2320 = vmatmul.bf16.gmra.mxu0 %v2287
    %v2321 = vpop.f32.mrf.mxu0
    %v2322 = vadd.f32 %v30, %v2321
    %v2323 = vpop.f32.mrf.mxu0
    %v2324 = vadd.f32 %v31, %v2323
    %2325 = vmatmul.bf16.gmra.mxu0 %v2290
    %v2326 = vpop.f32.mrf.mxu0
    %v2327 = vadd.f32 %v32, %v2326
    %v2328 = vpop.f32.mrf.mxu0
    %v2329 = vadd.f32 %v33, %v2328
    %2330 = vmatmul.bf16.gmra.mxu0 %v2293
    %v2331 = vpop.f32.mrf.mxu0
    %v2332 = vadd.f32 %v34, %v2331
    %v2333 = vpop.f32.mrf.mxu0
    %v2334 = vadd.f32 %v35, %v2333
    %2335 = vdwg.mxu0
    %v2336 = vsel %vm208, %v2317, -inf
    %2337 = vmax.xlane.f32.xlu0 %v2336
    %v2338 = vpop.xlane.xlu0 %2337
    %v2339 = vsel %vm208, %v2319, -inf
    %2340 = vmax.xlane.f32.xlu0 %v2339
    %v2341 = vpop.xlane.xlu0 %2340
    %v2342 = vsel %vm208, %v2322, -inf
    %2343 = vmax.xlane.f32.xlu0 %v2342
    %v2344 = vpop.xlane.xlu0 %2343
    %v2345 = vsel %vm208, %v2324, -inf
    %2346 = vmax.xlane.f32.xlu0 %v2345
    %v2347 = vpop.xlane.xlu0 %2346
    %v2348 = vsel %vm208, %v2327, -inf
    %2349 = vmax.xlane.f32.xlu0 %v2348
    %v2350 = vpop.xlane.xlu0 %2349
    %v2351 = vsel %vm208, %v2329, -inf
    %2352 = vmax.xlane.f32.xlu0 %v2351
    %v2353 = vpop.xlane.xlu0 %2352
    %v2354 = vsel %vm208, %v2332, -inf
    %2355 = vmax.xlane.f32.xlu0 %v2354
    %v2356 = vpop.xlane.xlu0 %2355
    %v2357 = vsel %vm208, %v2334, -inf
    %2358 = vmax.xlane.f32.xlu0 %v2357
    %v2359 = vpop.xlane.xlu0 %2358
    %v2360 = vsub.f32 %v2317, %v2338
    %v2361 = vsub.f32 %v2319, %v2341
    %v2362 = vsub.f32 %v2322, %v2344
    %v2363 = vsub.f32 %v2324, %v2347
    %v2364 = vsub.f32 %v2327, %v2350
    %v2365 = vsub.f32 %v2329, %v2353
    %v2366 = vsub.f32 %v2332, %v2356
    %v2367 = vsub.f32 %v2334, %v2359
    %v2368 = vmul.f32 %v2360, 1.442695
    %v2369 = vpow.pop %v2368
    %v2370 = vmul.f32 %v2361, 1.442695
    %v2371 = vpow.pop %v2370
    %v2372 = vmul.f32 %v2362, 1.442695
    %v2373 = vpow.pop %v2372
    %v2374 = vmul.f32 %v2363, 1.442695
    %v2375 = vpow.pop %v2374
    %v2376 = vmul.f32 %v2364, 1.442695
    %v2377 = vpow.pop %v2376
    %v2378 = vmul.f32 %v2365, 1.442695
    %v2379 = vpow.pop %v2378
    %v2380 = vmul.f32 %v2366, 1.442695
    %v2381 = vpow.pop %v2380
    %v2382 = vmul.f32 %v2367, 1.442695
    %v2383 = vpow.pop %v2382
    %v2384 = vsel %vm208, %v2369, 0.0
    %2385 = vadd.xlane.f32.xlu0 %v2384
    %v2386 = vpop.xlane.xlu0 %2385
    %v2387 = vsel %vm208, %v2371, 0.0
    %2388 = vadd.xlane.f32.xlu0 %v2387
    %v2389 = vpop.xlane.xlu0 %2388
    %v2390 = vsel %vm208, %v2373, 0.0
    %2391 = vadd.xlane.f32.xlu0 %v2390
    %v2392 = vpop.xlane.xlu0 %2391
    %v2393 = vsel %vm208, %v2375, 0.0
    %2394 = vadd.xlane.f32.xlu0 %v2393
    %v2395 = vpop.xlane.xlu0 %2394
    %v2396 = vsel %vm208, %v2377, 0.0
    %2397 = vadd.xlane.f32.xlu0 %v2396
    %v2398 = vpop.xlane.xlu0 %2397
    %v2399 = vsel %vm208, %v2379, 0.0
    %2400 = vadd.xlane.f32.xlu0 %v2399
    %v2401 = vpop.xlane.xlu0 %2400
    %v2402 = vsel %vm208, %v2381, 0.0
    %2403 = vadd.xlane.f32.xlu0 %v2402
    %v2404 = vpop.xlane.xlu0 %2403
    %v2405 = vsel %vm208, %v2383, 0.0
    %2406 = vadd.xlane.f32.xlu0 %v2405
    %v2407 = vpop.xlane.xlu0 %2406
    %v2408 = vrcp.pop %v2386
    %v2409 = vmul.f32 %v2386, %v2408
    %v2410 = vsub.f32 1.0, %v2409
    %v2411 = vmul.f32 %v2408, %v2410
    %v2412 = vadd.f32 %v2408, %v2411
    %vm2413 = vweird.f32 %v2386
    %vm2414 = vweird.f32 %v2408
    %vm2415 = vmor %vm2413, %vm2414
    %v2416 = vsel %vm2415, %v2408, %v2412
    %v2417 = vand.u32 2147483647, %v2386
    %vm2418 = vcmp.eq.f32.partialorder %v2417, 8.507059e+37
    %v2419 = vand.u32 %v2386, 2147483648
    %v2420 = vor.u32 1.1754944e-38, %v2419
    %v2421 = vsel %vm2418, %v2420, %v2416
    %v2422 = vmul.f32 %v2369, %v2421
    %v2423 = vrcp.pop %v2389
    %v2424 = vmul.f32 %v2389, %v2423
    %v2425 = vsub.f32 1.0, %v2424
    %v2426 = vmul.f32 %v2423, %v2425
    %v2427 = vadd.f32 %v2423, %v2426
    %vm2428 = vweird.f32 %v2389
    %vm2429 = vweird.f32 %v2423
    %vm2430 = vmor %vm2428, %vm2429
    %v2431 = vsel %vm2430, %v2423, %v2427
    %v2432 = vand.u32 2147483647, %v2389
    %vm2433 = vcmp.eq.f32.partialorder %v2432, 8.507059e+37
    %v2434 = vand.u32 %v2389, 2147483648
    %v2435 = vor.u32 1.1754944e-38, %v2434
    %v2436 = vsel %vm2433, %v2435, %v2431
    %v2437 = vmul.f32 %v2371, %v2436
    %v2438 = vrcp.pop %v2392
    %v2439 = vmul.f32 %v2392, %v2438
    %v2440 = vsub.f32 1.0, %v2439
    %v2441 = vmul.f32 %v2438, %v2440
    %v2442 = vadd.f32 %v2438, %v2441
    %vm2443 = vweird.f32 %v2392
    %vm2444 = vweird.f32 %v2438
    %vm2445 = vmor %vm2443, %vm2444
    %v2446 = vsel %vm2445, %v2438, %v2442
    %v2447 = vand.u32 2147483647, %v2392
    %vm2448 = vcmp.eq.f32.partialorder %v2447, 8.507059e+37
    %v2449 = vand.u32 %v2392, 2147483648
    %v2450 = vor.u32 1.1754944e-38, %v2449
    %v2451 = vsel %vm2448, %v2450, %v2446
    %v2452 = vmul.f32 %v2373, %v2451
    %v2453 = vrcp.pop %v2395
    %v2454 = vmul.f32 %v2395, %v2453
    %v2455 = vsub.f32 1.0, %v2454
    %v2456 = vmul.f32 %v2453, %v2455
    %v2457 = vadd.f32 %v2453, %v2456
    %vm2458 = vweird.f32 %v2395
    %vm2459 = vweird.f32 %v2453
    %vm2460 = vmor %vm2458, %vm2459
    %v2461 = vsel %vm2460, %v2453, %v2457
    %v2462 = vand.u32 2147483647, %v2395
    %vm2463 = vcmp.eq.f32.partialorder %v2462, 8.507059e+37
    %v2464 = vand.u32 %v2395, 2147483648
    %v2465 = vor.u32 1.1754944e-38, %v2464
    %v2466 = vsel %vm2463, %v2465, %v2461
    %v2467 = vmul.f32 %v2375, %v2466
    %v2468 = vrcp.pop %v2398
    %v2469 = vmul.f32 %v2398, %v2468
    %v2470 = vsub.f32 1.0, %v2469
    %v2471 = vmul.f32 %v2468, %v2470
    %v2472 = vadd.f32 %v2468, %v2471
    %vm2473 = vweird.f32 %v2398
    %vm2474 = vweird.f32 %v2468
    %vm2475 = vmor %vm2473, %vm2474
    %v2476 = vsel %vm2475, %v2468, %v2472
    %v2477 = vand.u32 2147483647, %v2398
    %vm2478 = vcmp.eq.f32.partialorder %v2477, 8.507059e+37
    %v2479 = vand.u32 %v2398, 2147483648
    %v2480 = vor.u32 1.1754944e-38, %v2479
    %v2481 = vsel %vm2478, %v2480, %v2476
    %v2482 = vmul.f32 %v2377, %v2481
    %v2483 = vrcp.pop %v2401
    %v2484 = vmul.f32 %v2401, %v2483
    %v2485 = vsub.f32 1.0, %v2484
    %v2486 = vmul.f32 %v2483, %v2485
    %v2487 = vadd.f32 %v2483, %v2486
    %vm2488 = vweird.f32 %v2401
    %vm2489 = vweird.f32 %v2483
    %vm2490 = vmor %vm2488, %vm2489
    %v2491 = vsel %vm2490, %v2483, %v2487
    %v2492 = vand.u32 2147483647, %v2401
    %vm2493 = vcmp.eq.f32.partialorder %v2492, 8.507059e+37
    %v2494 = vand.u32 %v2401, 2147483648
    %v2495 = vor.u32 1.1754944e-38, %v2494
    %v2496 = vsel %vm2493, %v2495, %v2491
    %v2497 = vmul.f32 %v2379, %v2496
    %v2498 = vrcp.pop %v2404
    %v2499 = vmul.f32 %v2404, %v2498
    %v2500 = vsub.f32 1.0, %v2499
    %v2501 = vmul.f32 %v2498, %v2500
    %v2502 = vadd.f32 %v2498, %v2501
    %vm2503 = vweird.f32 %v2404
    %vm2504 = vweird.f32 %v2498
    %vm2505 = vmor %vm2503, %vm2504
    %v2506 = vsel %vm2505, %v2498, %v2502
    %v2507 = vand.u32 2147483647, %v2404
    %vm2508 = vcmp.eq.f32.partialorder %v2507, 8.507059e+37
    %v2509 = vand.u32 %v2404, 2147483648
    %v2510 = vor.u32 1.1754944e-38, %v2509
    %v2511 = vsel %vm2508, %v2510, %v2506
    %v2512 = vmul.f32 %v2381, %v2511
    %v2513 = vrcp.pop %v2407
    %v2514 = vmul.f32 %v2407, %v2513
    %v2515 = vsub.f32 1.0, %v2514
    %v2516 = vmul.f32 %v2513, %v2515
    %v2517 = vadd.f32 %v2513, %v2516
    %vm2518 = vweird.f32 %v2407
    %vm2519 = vweird.f32 %v2513
    %vm2520 = vmor %vm2518, %vm2519
    %v2521 = vsel %vm2520, %v2513, %v2517
    %v2522 = vand.u32 2147483647, %v2407
    %vm2523 = vcmp.eq.f32.partialorder %v2522, 8.507059e+37
    %v2524 = vand.u32 %v2407, 2147483648
    %v2525 = vor.u32 1.1754944e-38, %v2524
    %v2526 = vsel %vm2523, %v2525, %v2521
    %v2527 = vmul.f32 %v2383, %v2526
    %v2528 = vpack.c.bf16 %v2437, %v2422
    %v2529 = vpack.c.bf16 %v2467, %v2452
    %v2530 = vpack.c.bf16 %v2497, %v2482
    %v2531 = vpack.c.bf16 %v2527, %v2512
    %2532 = vrot.lane.b32.xlu0 %v2267, 64
    %v2533 = vpop.permute.xlu0 %2532
    %2534 = vrot.lane.b32.xlu0 %v2268, 64
    %v2535 = vpop.permute.xlu0 %2534
    %2536 = vrot.lane.b32.xlu0 %v2269, 64
    %v2537 = vpop.permute.xlu0 %2536
    %2538 = vrot.lane.b32.xlu0 %v2270, 64
    %v2539 = vpop.permute.xlu0 %2538
    %v2545 = vsel %vm208, %v2528, 0
    %v2548 = vsel %vm208, %v2529, 0
    %v2551 = vsel %vm208, %v2530, 0
    %v2554 = vsel %vm208, %v2531, 0
    %2556 = vmatpush.bf16.msra.mxu0 0
    %2557 = vmatpush.bf16.msra.mxu0 0
    %2558 = vmatpush.bf16.msra.mxu0 0
    %2559 = vmatpush.bf16.msra.mxu0 0
    %2560 = vmatpush.bf16.msra.mxu0 %v2539
    %2561 = vmatpush.bf16.msra.mxu0 %v2537
    %2562 = vmatpush.bf16.msra.mxu0 %v2535
    %2563 = vmatpush.bf16.msra.mxu0 %v2533
    %2564 = vmatmul.bf16.gmra.mxu0 %v2545
    %v2565 = vpop.f32.mrf.mxu0
    %v2566 = vadd.f32 0.0, %v2565
    %v2567 = vpop.f32.mrf.mxu0
    %v2568 = vadd.f32 0.0, %v2567
    %2569 = vmatmul.bf16.gmra.mxu0 %v2548
    %v2570 = vpop.f32.mrf.mxu0
    %v2571 = vadd.f32 0.0, %v2570
    %v2572 = vpop.f32.mrf.mxu0
    %v2573 = vadd.f32 0.0, %v2572
    %2574 = vmatmul.bf16.gmra.mxu0 %v2551
    %v2575 = vpop.f32.mrf.mxu0
    %v2576 = vadd.f32 0.0, %v2575
    %v2577 = vpop.f32.mrf.mxu0
    %v2578 = vadd.f32 0.0, %v2577
    %2579 = vmatmul.bf16.gmra.mxu0 %v2554
    %v2580 = vpop.f32.mrf.mxu0
    %v2581 = vadd.f32 0.0, %v2580
    %v2582 = vpop.f32.mrf.mxu0
    %v2583 = vadd.f32 0.0, %v2582
    %2584 = vdwg.mxu0
    %2585 = vrot.lane.b32.xlu0 %v2267, 112
    %v2586 = vpop.permute.xlu0 %2585
    %2587 = vrot.lane.b32.xlu0 %v2268, 112
    %v2588 = vpop.permute.xlu0 %2587
    %2589 = vrot.lane.b32.xlu0 %v2269, 112
    %v2590 = vpop.permute.xlu0 %2589
    %2591 = vrot.lane.b32.xlu0 %v2270, 112
    %v2592 = vpop.permute.xlu0 %2591
    %2593 = vrot.lane.b32.xlu0 %v2267, 80
    %v2594 = vpop.permute.xlu0 %2593
    %2595 = vrot.lane.b32.xlu0 %v2268, 80
    %v2596 = vpop.permute.xlu0 %2595
    %2597 = vrot.lane.b32.xlu0 %v2269, 80
    %v2598 = vpop.permute.xlu0 %2597
    %2599 = vrot.lane.b32.xlu0 %v2270, 80
    %v2600 = vpop.permute.xlu0 %2599
    %v2602 = vsel %vm768, %v2586, 0
    %v2605 = vsel %vm768, %v2588, 0
    %v2608 = vsel %vm768, %v2590, 0
    %v2611 = vsel %vm768, %v2592, 0
    %v2614 = vsel %vm768, %v2594, 0
    %v2617 = vsel %vm768, %v2596, 0
    %v2620 = vsel %vm768, %v2598, 0
    %v2623 = vsel %vm768, %v2600, 0
    %2625 = vmatpush.bf16.xpose.msra.mxu0 0
    %2626 = vmatpush.bf16.xpose.msra.mxu0 0
    %2627 = vmatpush.bf16.xpose.msra.mxu0 0
    %2628 = vmatpush.bf16.xpose.msra.mxu0 0
    %2629 = vmatpush.bf16.xpose.msra.mxu0 %v2623
    %2630 = vmatpush.bf16.xpose.msra.mxu0 %v2620
    %2631 = vmatpush.bf16.xpose.msra.mxu0 %v2617
    %2632 = vmatpush.bf16.xpose.msra.mxu0 %v2614
    %2633 = vmatmul.bf16.gmra.mxu0 %v2602
    %v2634 = vpop.f32.mrf.mxu0
    %v2635 = vadd.f32 %v28, %v2634
    %v2636 = vpop.f32.mrf.mxu0
    %v2637 = vadd.f32 %v29, %v2636
    %2638 = vmatmul.bf16.gmra.mxu0 %v2605
    %v2639 = vpop.f32.mrf.mxu0
    %v2640 = vadd.f32 %v30, %v2639
    %v2641 = vpop.f32.mrf.mxu0
    %v2642 = vadd.f32 %v31, %v2641
    %2643 = vmatmul.bf16.gmra.mxu0 %v2608
    %v2644 = vpop.f32.mrf.mxu0
    %v2645 = vadd.f32 %v32, %v2644
    %v2646 = vpop.f32.mrf.mxu0
    %v2647 = vadd.f32 %v33, %v2646
    %2648 = vmatmul.bf16.gmra.mxu0 %v2611
    %v2649 = vpop.f32.mrf.mxu0
    %v2650 = vadd.f32 %v34, %v2649
    %v2651 = vpop.f32.mrf.mxu0
    %v2652 = vadd.f32 %v35, %v2651
    %2653 = vdwg.mxu0
    %v2654 = vsel %vm208, %v2635, -inf
    %2655 = vmax.xlane.f32.xlu0 %v2654
    %v2656 = vpop.xlane.xlu0 %2655
    %v2657 = vsel %vm208, %v2637, -inf
    %2658 = vmax.xlane.f32.xlu0 %v2657
    %v2659 = vpop.xlane.xlu0 %2658
    %v2660 = vsel %vm208, %v2640, -inf
    %2661 = vmax.xlane.f32.xlu0 %v2660
    %v2662 = vpop.xlane.xlu0 %2661
    %v2663 = vsel %vm208, %v2642, -inf
    %2664 = vmax.xlane.f32.xlu0 %v2663
    %v2665 = vpop.xlane.xlu0 %2664
    %v2666 = vsel %vm208, %v2645, -inf
    %2667 = vmax.xlane.f32.xlu0 %v2666
    %v2668 = vpop.xlane.xlu0 %2667
    %v2669 = vsel %vm208, %v2647, -inf
    %2670 = vmax.xlane.f32.xlu0 %v2669
    %v2671 = vpop.xlane.xlu0 %2670
    %v2672 = vsel %vm208, %v2650, -inf
    %2673 = vmax.xlane.f32.xlu0 %v2672
    %v2674 = vpop.xlane.xlu0 %2673
    %v2675 = vsel %vm208, %v2652, -inf
    %2676 = vmax.xlane.f32.xlu0 %v2675
    %v2677 = vpop.xlane.xlu0 %2676
    %v2678 = vsub.f32 %v2635, %v2656
    %v2679 = vsub.f32 %v2637, %v2659
    %v2680 = vsub.f32 %v2640, %v2662
    %v2681 = vsub.f32 %v2642, %v2665
    %v2682 = vsub.f32 %v2645, %v2668
    %v2683 = vsub.f32 %v2647, %v2671
    %v2684 = vsub.f32 %v2650, %v2674
    %v2685 = vsub.f32 %v2652, %v2677
    %v2686 = vmul.f32 %v2678, 1.442695
    %v2687 = vpow.pop %v2686
    %v2688 = vmul.f32 %v2679, 1.442695
    %v2689 = vpow.pop %v2688
    %v2690 = vmul.f32 %v2680, 1.442695
    %v2691 = vpow.pop %v2690
    %v2692 = vmul.f32 %v2681, 1.442695
    %v2693 = vpow.pop %v2692
    %v2694 = vmul.f32 %v2682, 1.442695
    %v2695 = vpow.pop %v2694
    %v2696 = vmul.f32 %v2683, 1.442695
    %v2697 = vpow.pop %v2696
    %v2698 = vmul.f32 %v2684, 1.442695
    %v2699 = vpow.pop %v2698
    %v2700 = vmul.f32 %v2685, 1.442695
    %v2701 = vpow.pop %v2700
    %v2702 = vsel %vm208, %v2687, 0.0
    %2703 = vadd.xlane.f32.xlu0 %v2702
    %v2704 = vpop.xlane.xlu0 %2703
    %v2705 = vsel %vm208, %v2689, 0.0
    %2706 = vadd.xlane.f32.xlu0 %v2705
    %v2707 = vpop.xlane.xlu0 %2706
    %v2708 = vsel %vm208, %v2691, 0.0
    %2709 = vadd.xlane.f32.xlu0 %v2708
    %v2710 = vpop.xlane.xlu0 %2709
    %v2711 = vsel %vm208, %v2693, 0.0
    %2712 = vadd.xlane.f32.xlu0 %v2711
    %v2713 = vpop.xlane.xlu0 %2712
    %v2714 = vsel %vm208, %v2695, 0.0
    %2715 = vadd.xlane.f32.xlu0 %v2714
    %v2716 = vpop.xlane.xlu0 %2715
    %v2717 = vsel %vm208, %v2697, 0.0
    %2718 = vadd.xlane.f32.xlu0 %v2717
    %v2719 = vpop.xlane.xlu0 %2718
    %v2720 = vsel %vm208, %v2699, 0.0
    %2721 = vadd.xlane.f32.xlu0 %v2720
    %v2722 = vpop.xlane.xlu0 %2721
    %v2723 = vsel %vm208, %v2701, 0.0
    %2724 = vadd.xlane.f32.xlu0 %v2723
    %v2725 = vpop.xlane.xlu0 %2724
    %v2726 = vrcp.pop %v2704
    %v2727 = vmul.f32 %v2704, %v2726
    %v2728 = vsub.f32 1.0, %v2727
    %v2729 = vmul.f32 %v2726, %v2728
    %v2730 = vadd.f32 %v2726, %v2729
    %vm2731 = vweird.f32 %v2704
    %vm2732 = vweird.f32 %v2726
    %vm2733 = vmor %vm2731, %vm2732
    %v2734 = vsel %vm2733, %v2726, %v2730
    %v2735 = vand.u32 2147483647, %v2704
    %vm2736 = vcmp.eq.f32.partialorder %v2735, 8.507059e+37
    %v2737 = vand.u32 %v2704, 2147483648
    %v2738 = vor.u32 1.1754944e-38, %v2737
    %v2739 = vsel %vm2736, %v2738, %v2734
    %v2740 = vmul.f32 %v2687, %v2739
    %v2741 = vrcp.pop %v2707
    %v2742 = vmul.f32 %v2707, %v2741
    %v2743 = vsub.f32 1.0, %v2742
    %v2744 = vmul.f32 %v2741, %v2743
    %v2745 = vadd.f32 %v2741, %v2744
    %vm2746 = vweird.f32 %v2707
    %vm2747 = vweird.f32 %v2741
    %vm2748 = vmor %vm2746, %vm2747
    %v2749 = vsel %vm2748, %v2741, %v2745
    %v2750 = vand.u32 2147483647, %v2707
    %vm2751 = vcmp.eq.f32.partialorder %v2750, 8.507059e+37
    %v2752 = vand.u32 %v2707, 2147483648
    %v2753 = vor.u32 1.1754944e-38, %v2752
    %v2754 = vsel %vm2751, %v2753, %v2749
    %v2755 = vmul.f32 %v2689, %v2754
    %v2756 = vrcp.pop %v2710
    %v2757 = vmul.f32 %v2710, %v2756
    %v2758 = vsub.f32 1.0, %v2757
    %v2759 = vmul.f32 %v2756, %v2758
    %v2760 = vadd.f32 %v2756, %v2759
    %vm2761 = vweird.f32 %v2710
    %vm2762 = vweird.f32 %v2756
    %vm2763 = vmor %vm2761, %vm2762
    %v2764 = vsel %vm2763, %v2756, %v2760
    %v2765 = vand.u32 2147483647, %v2710
    %vm2766 = vcmp.eq.f32.partialorder %v2765, 8.507059e+37
    %v2767 = vand.u32 %v2710, 2147483648
    %v2768 = vor.u32 1.1754944e-38, %v2767
    %v2769 = vsel %vm2766, %v2768, %v2764
    %v2770 = vmul.f32 %v2691, %v2769
    %v2771 = vrcp.pop %v2713
    %v2772 = vmul.f32 %v2713, %v2771
    %v2773 = vsub.f32 1.0, %v2772
    %v2774 = vmul.f32 %v2771, %v2773
    %v2775 = vadd.f32 %v2771, %v2774
    %vm2776 = vweird.f32 %v2713
    %vm2777 = vweird.f32 %v2771
    %vm2778 = vmor %vm2776, %vm2777
    %v2779 = vsel %vm2778, %v2771, %v2775
    %v2780 = vand.u32 2147483647, %v2713
    %vm2781 = vcmp.eq.f32.partialorder %v2780, 8.507059e+37
    %v2782 = vand.u32 %v2713, 2147483648
    %v2783 = vor.u32 1.1754944e-38, %v2782
    %v2784 = vsel %vm2781, %v2783, %v2779
    %v2785 = vmul.f32 %v2693, %v2784
    %v2786 = vrcp.pop %v2716
    %v2787 = vmul.f32 %v2716, %v2786
    %v2788 = vsub.f32 1.0, %v2787
    %v2789 = vmul.f32 %v2786, %v2788
    %v2790 = vadd.f32 %v2786, %v2789
    %vm2791 = vweird.f32 %v2716
    %vm2792 = vweird.f32 %v2786
    %vm2793 = vmor %vm2791, %vm2792
    %v2794 = vsel %vm2793, %v2786, %v2790
    %v2795 = vand.u32 2147483647, %v2716
    %vm2796 = vcmp.eq.f32.partialorder %v2795, 8.507059e+37
    %v2797 = vand.u32 %v2716, 2147483648
    %v2798 = vor.u32 1.1754944e-38, %v2797
    %v2799 = vsel %vm2796, %v2798, %v2794
    %v2800 = vmul.f32 %v2695, %v2799
    %v2801 = vrcp.pop %v2719
    %v2802 = vmul.f32 %v2719, %v2801
    %v2803 = vsub.f32 1.0, %v2802
    %v2804 = vmul.f32 %v2801, %v2803
    %v2805 = vadd.f32 %v2801, %v2804
    %vm2806 = vweird.f32 %v2719
    %vm2807 = vweird.f32 %v2801
    %vm2808 = vmor %vm2806, %vm2807
    %v2809 = vsel %vm2808, %v2801, %v2805
    %v2810 = vand.u32 2147483647, %v2719
    %vm2811 = vcmp.eq.f32.partialorder %v2810, 8.507059e+37
    %v2812 = vand.u32 %v2719, 2147483648
    %v2813 = vor.u32 1.1754944e-38, %v2812
    %v2814 = vsel %vm2811, %v2813, %v2809
    %v2815 = vmul.f32 %v2697, %v2814
    %v2816 = vrcp.pop %v2722
    %v2817 = vmul.f32 %v2722, %v2816
    %v2818 = vsub.f32 1.0, %v2817
    %v2819 = vmul.f32 %v2816, %v2818
    %v2820 = vadd.f32 %v2816, %v2819
    %vm2821 = vweird.f32 %v2722
    %vm2822 = vweird.f32 %v2816
    %vm2823 = vmor %vm2821, %vm2822
    %v2824 = vsel %vm2823, %v2816, %v2820
    %v2825 = vand.u32 2147483647, %v2722
    %vm2826 = vcmp.eq.f32.partialorder %v2825, 8.507059e+37
    %v2827 = vand.u32 %v2722, 2147483648
    %v2828 = vor.u32 1.1754944e-38, %v2827
    %v2829 = vsel %vm2826, %v2828, %v2824
    %v2830 = vmul.f32 %v2699, %v2829
    %v2831 = vrcp.pop %v2725
    %v2832 = vmul.f32 %v2725, %v2831
    %v2833 = vsub.f32 1.0, %v2832
    %v2834 = vmul.f32 %v2831, %v2833
    %v2835 = vadd.f32 %v2831, %v2834
    %vm2836 = vweird.f32 %v2725
    %vm2837 = vweird.f32 %v2831
    %vm2838 = vmor %vm2836, %vm2837
    %v2839 = vsel %vm2838, %v2831, %v2835
    %v2840 = vand.u32 2147483647, %v2725
    %vm2841 = vcmp.eq.f32.partialorder %v2840, 8.507059e+37
    %v2842 = vand.u32 %v2725, 2147483648
    %v2843 = vor.u32 1.1754944e-38, %v2842
    %v2844 = vsel %vm2841, %v2843, %v2839
    %v2845 = vmul.f32 %v2701, %v2844
    %v2846 = vpack.c.bf16 %v2755, %v2740
    %v2847 = vpack.c.bf16 %v2785, %v2770
    %v2848 = vpack.c.bf16 %v2815, %v2800
    %v2849 = vpack.c.bf16 %v2845, %v2830
    %2850 = vrot.lane.b32.xlu0 %v2267, 48
    %v2851 = vpop.permute.xlu0 %2850
    %2852 = vrot.lane.b32.xlu0 %v2268, 48
    %v2853 = vpop.permute.xlu0 %2852
    %2854 = vrot.lane.b32.xlu0 %v2269, 48
    %v2855 = vpop.permute.xlu0 %2854
    %2856 = vrot.lane.b32.xlu0 %v2270, 48
    %v2857 = vpop.permute.xlu0 %2856
    %v2863 = vsel %vm208, %v2846, 0
    %v2866 = vsel %vm208, %v2847, 0
    %v2869 = vsel %vm208, %v2848, 0
    %v2872 = vsel %vm208, %v2849, 0
    %2874 = vmatpush.bf16.msra.mxu0 0
    %2875 = vmatpush.bf16.msra.mxu0 0
    %2876 = vmatpush.bf16.msra.mxu0 0
    %2877 = vmatpush.bf16.msra.mxu0 0
    %2878 = vmatpush.bf16.msra.mxu0 %v2857
    %2879 = vmatpush.bf16.msra.mxu0 %v2855
    %2880 = vmatpush.bf16.msra.mxu0 %v2853
    %2881 = vmatpush.bf16.msra.mxu0 %v2851
    %2882 = vmatmul.bf16.gmra.mxu0 %v2863
    %v2883 = vpop.f32.mrf.mxu0
    %v2884 = vadd.f32 0.0, %v2883
    %v2885 = vpop.f32.mrf.mxu0
    %v2886 = vadd.f32 0.0, %v2885
    %2887 = vmatmul.bf16.gmra.mxu0 %v2866
    %v2888 = vpop.f32.mrf.mxu0
    %v2889 = vadd.f32 0.0, %v2888
    %v2890 = vpop.f32.mrf.mxu0
    %v2891 = vadd.f32 0.0, %v2890
    %2892 = vmatmul.bf16.gmra.mxu0 %v2869
    %v2893 = vpop.f32.mrf.mxu0
    %v2894 = vadd.f32 0.0, %v2893
    %v2895 = vpop.f32.mrf.mxu0
    %v2896 = vadd.f32 0.0, %v2895
    %2897 = vmatmul.bf16.gmra.mxu0 %v2872
    %v2898 = vpop.f32.mrf.mxu0
    %v2899 = vadd.f32 0.0, %v2898
    %v2900 = vpop.f32.mrf.mxu0
    %v2901 = vadd.f32 0.0, %v2900
    %2902 = vdwg.mxu0
    %2911 = vrot.lane.b32.xlu0 %v2884, 16
    %v2912 = vpop.permute.xlu0 %2911
    %2913 = vrot.lane.b32.xlu0 %v2886, 16
    %v2914 = vpop.permute.xlu0 %2913
    %2915 = vrot.lane.b32.xlu0 %v2889, 16
    %v2916 = vpop.permute.xlu0 %2915
    %2917 = vrot.lane.b32.xlu0 %v2891, 16
    %v2918 = vpop.permute.xlu0 %2917
    %2919 = vrot.lane.b32.xlu0 %v2894, 16
    %v2920 = vpop.permute.xlu0 %2919
    %2921 = vrot.lane.b32.xlu0 %v2896, 16
    %v2922 = vpop.permute.xlu0 %2921
    %2923 = vrot.lane.b32.xlu0 %v2899, 16
    %v2924 = vpop.permute.xlu0 %2923
    %2925 = vrot.lane.b32.xlu0 %v2901, 16
    %v2926 = vpop.permute.xlu0 %2925
    %v2935 = vsel %vm768, %v2566, %v2912
    %v2936 = vsel %vm768, %v2568, %v2914
    %v2937 = vsel %vm768, %v2571, %v2916
    %v2938 = vsel %vm768, %v2573, %v2918
    %v2939 = vsel %vm768, %v2576, %v2920
    %v2940 = vsel %vm768, %v2578, %v2922
    %v2941 = vsel %vm768, %v2581, %v2924
    %v2942 = vsel %vm768, %v2583, %v2926
    %v2943 = vpack.c.bf16 %v2936, %v2935
    %v2944 = vpack.c.bf16 %v2938, %v2937
    %v2945 = vpack.c.bf16 %v2940, %v2939
    %v2946 = vpack.c.bf16 %v2942, %v2941
    %v2950 = vsel %vm281, %v2943, 0
    %v2953 = vsel %vm281, %v2944, 0
    %v2956 = vsel %vm281, %v2945, 0
    %v2959 = vsel %vm281, %v2946, 0
    %2961 = vmatpush.bf16.msra.mxu0 0
    %2962 = vmatpush.bf16.msra.mxu0 0
    %2963 = vmatpush.bf16.msra.mxu0 0
    %2964 = vmatpush.bf16.msra.mxu0 0
    %2965 = vmatpush.bf16.msra.mxu0 0
    %2966 = vmatpush.bf16.msra.mxu0 0
    %2967 = vmatpush.bf16.msra.mxu0 %v2219
    %2968 = vmatpush.bf16.msra.mxu0 %v2218
    %2969 = vmatmul.bf16.gmra.mxu0 %v2950
    %v2970 = vpop.f32.mrf.mxu0
    %v2971 = vadd.f32 0.0, %v2970
    %v2972 = vpop.f32.mrf.mxu0
    %v2973 = vadd.f32 0.0, %v2972
    %2974 = vmatmul.bf16.gmra.mxu0 %v2953
    %v2975 = vpop.f32.mrf.mxu0
    %v2976 = vadd.f32 0.0, %v2975
    %v2977 = vpop.f32.mrf.mxu0
    %v2978 = vadd.f32 0.0, %v2977
    %2979 = vmatmul.bf16.gmra.mxu0 %v2956
    %v2980 = vpop.f32.mrf.mxu0
    %v2981 = vadd.f32 0.0, %v2980
    %v2982 = vpop.f32.mrf.mxu0
    %v2983 = vadd.f32 0.0, %v2982
    %2984 = vmatmul.bf16.gmra.mxu0 %v2959
    %v2985 = vpop.f32.mrf.mxu0
    %v2986 = vadd.f32 0.0, %v2985
    %v2987 = vpop.f32.mrf.mxu0
    %v2988 = vadd.f32 0.0, %v2987
    %2989 = vdwg.mxu0
    %v2990 = vadd.f32 %v1987, %v2971
    %v2991 = vadd.f32 %v1988, %v2973
    %v2992 = vadd.f32 %v1989, %v2976
    %v2993 = vadd.f32 %v1990, %v2978
    %v2994 = vadd.f32 %v1991, %v2981
    %v2995 = vadd.f32 %v1992, %v2983
    %v2996 = vadd.f32 %v1993, %v2986
    %v2997 = vadd.f32 %v1994, %v2988
    %v2998 = vperm.slane %v2010, 3
    %v2999 = vadd.f32 %v2990, %v2998
    %v3000 = vadd.f32 %v2991, %v2998
    %v3001 = vadd.f32 %v2992, %v2998
    %v3002 = vadd.f32 %v2993, %v2998
    %v3003 = vadd.f32 %v2994, %v2998
    %v3004 = vadd.f32 %v2995, %v2998
    %v3005 = vadd.f32 %v2996, %v2998
    %v3006 = vadd.f32 %v2997, %v2998
    %v3007 = vsel %vm281, %v2999, 0.0
    %3008 = vadd.xlane.f32.xlu0 %v3007
    %v3009 = vpop.xlane.xlu0 %3008
    %v3010 = vsel %vm281, %v3000, 0.0
    %3011 = vadd.xlane.f32.xlu0 %v3010
    %v3012 = vpop.xlane.xlu0 %3011
    %v3013 = vsel %vm281, %v3001, 0.0
    %3014 = vadd.xlane.f32.xlu0 %v3013
    %v3015 = vpop.xlane.xlu0 %3014
    %v3016 = vsel %vm281, %v3002, 0.0
    %3017 = vadd.xlane.f32.xlu0 %v3016
    %v3018 = vpop.xlane.xlu0 %3017
    %v3019 = vsel %vm281, %v3003, 0.0
    %3020 = vadd.xlane.f32.xlu0 %v3019
    %v3021 = vpop.xlane.xlu0 %3020
    %v3022 = vsel %vm281, %v3004, 0.0
    %3023 = vadd.xlane.f32.xlu0 %v3022
    %v3024 = vpop.xlane.xlu0 %3023
    %v3025 = vsel %vm281, %v3005, 0.0
    %3026 = vadd.xlane.f32.xlu0 %v3025
    %v3027 = vpop.xlane.xlu0 %3026
    %v3028 = vsel %vm281, %v3006, 0.0
    %3029 = vadd.xlane.f32.xlu0 %v3028
    %v3030 = vpop.xlane.xlu0 %3029
    %v3031 = vmul.f32 %v3009, %v312
    %v3032 = vmul.f32 %v3012, %v312
    %v3033 = vmul.f32 %v3015, %v312
    %v3034 = vmul.f32 %v3018, %v312
    %v3035 = vmul.f32 %v3021, %v312
    %v3036 = vmul.f32 %v3024, %v312
    %v3037 = vmul.f32 %v3027, %v312
    %v3038 = vmul.f32 %v3030, %v312
    %v3039 = vsub.f32 %v2999, %v3031
    %v3040 = vsub.f32 %v3000, %v3032
    %v3041 = vsub.f32 %v3001, %v3033
    %v3042 = vsub.f32 %v3002, %v3034
    %v3043 = vsub.f32 %v3003, %v3035
    %v3044 = vsub.f32 %v3004, %v3036
    %v3045 = vsub.f32 %v3005, %v3037
    %v3046 = vsub.f32 %v3006, %v3038
    %v3047 = vmul.f32 %v3039, %v3039
    %v3048 = vmul.f32 %v3040, %v3040
    %v3049 = vmul.f32 %v3041, %v3041
    %v3050 = vmul.f32 %v3042, %v3042
    %v3051 = vmul.f32 %v3043, %v3043
    %v3052 = vmul.f32 %v3044, %v3044
    %v3053 = vmul.f32 %v3045, %v3045
    %v3054 = vmul.f32 %v3046, %v3046
    %v3055 = vsel %vm281, %v3047, 0.0
    %3056 = vadd.xlane.f32.xlu0 %v3055
    %v3057 = vpop.xlane.xlu0 %3056
    %v3058 = vsel %vm281, %v3048, 0.0
    %3059 = vadd.xlane.f32.xlu0 %v3058
    %v3060 = vpop.xlane.xlu0 %3059
    %v3061 = vsel %vm281, %v3049, 0.0
    %3062 = vadd.xlane.f32.xlu0 %v3061
    %v3063 = vpop.xlane.xlu0 %3062
    %v3064 = vsel %vm281, %v3050, 0.0
    %3065 = vadd.xlane.f32.xlu0 %v3064
    %v3066 = vpop.xlane.xlu0 %3065
    %v3067 = vsel %vm281, %v3051, 0.0
    %3068 = vadd.xlane.f32.xlu0 %v3067
    %v3069 = vpop.xlane.xlu0 %3068
    %v3070 = vsel %vm281, %v3052, 0.0
    %3071 = vadd.xlane.f32.xlu0 %v3070
    %v3072 = vpop.xlane.xlu0 %3071
    %v3073 = vsel %vm281, %v3053, 0.0
    %3074 = vadd.xlane.f32.xlu0 %v3073
    %v3075 = vpop.xlane.xlu0 %3074
    %v3076 = vsel %vm281, %v3054, 0.0
    %3077 = vadd.xlane.f32.xlu0 %v3076
    %v3078 = vpop.xlane.xlu0 %3077
    %v3079 = vmul.f32 %v3057, %v312
    %v3080 = vmul.f32 %v3060, %v312
    %v3081 = vmul.f32 %v3063, %v312
    %v3082 = vmul.f32 %v3066, %v312
    %v3083 = vmul.f32 %v3069, %v312
    %v3084 = vmul.f32 %v3072, %v312
    %v3085 = vmul.f32 %v3075, %v312
    %v3086 = vmul.f32 %v3078, %v312
    %v3087 = vadd.f32 %v3079, 1e-05
    %v3088 = vadd.f32 %v3080, 1e-05
    %v3089 = vadd.f32 %v3081, 1e-05
    %v3090 = vadd.f32 %v3082, 1e-05
    %v3091 = vadd.f32 %v3083, 1e-05
    %v3092 = vadd.f32 %v3084, 1e-05
    %v3093 = vadd.f32 %v3085, 1e-05
    %v3094 = vadd.f32 %v3086, 1e-05
    %v3095 = vrsqrt.pop %v3087
    %v3096 = vmul.f32 %v3095, %v3087
    %v3097 = vmul.f32 %v3096, %v3095
    %v3098 = vmul.f32 0.5, %v3097
    %v3099 = vsub.f32 1.5, %v3098
    %v3100 = vmul.f32 %v3095, %v3099
    %vm3101 = vweird.f32 %v3087
    %vm3102 = vweird.f32 %v3095
    %vm3103 = vmor %vm3101, %vm3102
    %v3104 = vsel %vm3103, %v3095, %v3100
    %v3105 = vrsqrt.pop %v3088
    %v3106 = vmul.f32 %v3105, %v3088
    %v3107 = vmul.f32 %v3106, %v3105
    %v3108 = vmul.f32 0.5, %v3107
    %v3109 = vsub.f32 1.5, %v3108
    %v3110 = vmul.f32 %v3105, %v3109
    %vm3111 = vweird.f32 %v3088
    %vm3112 = vweird.f32 %v3105
    %vm3113 = vmor %vm3111, %vm3112
    %v3114 = vsel %vm3113, %v3105, %v3110
    %v3115 = vrsqrt.pop %v3089
    %v3116 = vmul.f32 %v3115, %v3089
    %v3117 = vmul.f32 %v3116, %v3115
    %v3118 = vmul.f32 0.5, %v3117
    %v3119 = vsub.f32 1.5, %v3118
    %v3120 = vmul.f32 %v3115, %v3119
    %vm3121 = vweird.f32 %v3089
    %vm3122 = vweird.f32 %v3115
    %vm3123 = vmor %vm3121, %vm3122
    %v3124 = vsel %vm3123, %v3115, %v3120
    %v3125 = vrsqrt.pop %v3090
    %v3126 = vmul.f32 %v3125, %v3090
    %v3127 = vmul.f32 %v3126, %v3125
    %v3128 = vmul.f32 0.5, %v3127
    %v3129 = vsub.f32 1.5, %v3128
    %v3130 = vmul.f32 %v3125, %v3129
    %vm3131 = vweird.f32 %v3090
    %vm3132 = vweird.f32 %v3125
    %vm3133 = vmor %vm3131, %vm3132
    %v3134 = vsel %vm3133, %v3125, %v3130
    %v3135 = vrsqrt.pop %v3091
    %v3136 = vmul.f32 %v3135, %v3091
    %v3137 = vmul.f32 %v3136, %v3135
    %v3138 = vmul.f32 0.5, %v3137
    %v3139 = vsub.f32 1.5, %v3138
    %v3140 = vmul.f32 %v3135, %v3139
    %vm3141 = vweird.f32 %v3091
    %vm3142 = vweird.f32 %v3135
    %vm3143 = vmor %vm3141, %vm3142
    %v3144 = vsel %vm3143, %v3135, %v3140
    %v3145 = vrsqrt.pop %v3092
    %v3146 = vmul.f32 %v3145, %v3092
    %v3147 = vmul.f32 %v3146, %v3145
    %v3148 = vmul.f32 0.5, %v3147
    %v3149 = vsub.f32 1.5, %v3148
    %v3150 = vmul.f32 %v3145, %v3149
    %vm3151 = vweird.f32 %v3092
    %vm3152 = vweird.f32 %v3145
    %vm3153 = vmor %vm3151, %vm3152
    %v3154 = vsel %vm3153, %v3145, %v3150
    %v3155 = vrsqrt.pop %v3093
    %v3156 = vmul.f32 %v3155, %v3093
    %v3157 = vmul.f32 %v3156, %v3155
    %v3158 = vmul.f32 0.5, %v3157
    %v3159 = vsub.f32 1.5, %v3158
    %v3160 = vmul.f32 %v3155, %v3159
    %vm3161 = vweird.f32 %v3093
    %vm3162 = vweird.f32 %v3155
    %vm3163 = vmor %vm3161, %vm3162
    %v3164 = vsel %vm3163, %v3155, %v3160
    %v3165 = vrsqrt.pop %v3094
    %v3166 = vmul.f32 %v3165, %v3094
    %v3167 = vmul.f32 %v3166, %v3165
    %v3168 = vmul.f32 0.5, %v3167
    %v3169 = vsub.f32 1.5, %v3168
    %v3170 = vmul.f32 %v3165, %v3169
    %vm3171 = vweird.f32 %v3094
    %vm3172 = vweird.f32 %v3165
    %vm3173 = vmor %vm3171, %vm3172
    %v3174 = vsel %vm3173, %v3165, %v3170
    %v3175 = vmul.f32 %v3039, %v3104
    %v3176 = vmul.f32 %v3040, %v3114
    %v3177 = vmul.f32 %v3041, %v3124
    %v3178 = vmul.f32 %v3042, %v3134
    %v3179 = vmul.f32 %v3043, %v3144
    %v3180 = vmul.f32 %v3044, %v3154
    %v3181 = vmul.f32 %v3045, %v3164
    %v3182 = vmul.f32 %v3046, %v3174
    %v3183 = vperm.slane %v2010, 4
    %v3184 = vmul.f32 %v3175, %v3183
    %v3185 = vmul.f32 %v3176, %v3183
    %v3186 = vmul.f32 %v3177, %v3183
    %v3187 = vmul.f32 %v3178, %v3183
    %v3188 = vmul.f32 %v3179, %v3183
    %v3189 = vmul.f32 %v3180, %v3183
    %v3190 = vmul.f32 %v3181, %v3183
    %v3191 = vmul.f32 %v3182, %v3183
    %v3192 = vperm.slane %v2010, 5
    %v3193 = vadd.f32 %v3184, %v3192
    %v3194 = vadd.f32 %v3185, %v3192
    %v3195 = vadd.f32 %v3186, %v3192
    %v3196 = vadd.f32 %v3187, %v3192
    %v3197 = vadd.f32 %v3188, %v3192
    %v3198 = vadd.f32 %v3189, %v3192
    %v3199 = vadd.f32 %v3190, %v3192
    %v3200 = vadd.f32 %v3191, %v3192
    %v3201 = vpack.c.bf16 %v3194, %v3193
    %v3202 = vpack.c.bf16 %v3196, %v3195
    %v3203 = vpack.c.bf16 %v3198, %v3197
    %v3204 = vpack.c.bf16 %v3200, %v3199
    %v3205 = vperm.slane %v2010, 6
    %v3206 = vunpack.c.h.b16 %v1996
    %v3207 = vunpack.c.h.b16 %v1997
    %v3208 = vunpack.c.h.b16 %v1998
    %v3209 = vunpack.c.h.b16 %v1999
    %v3210 = vpack.c.b16 %v3207, %v3206
    %v3211 = vpack.c.b16 %v3209, %v3208
    %v3215 = vsel %vm281, %v3201, 0
    %v3218 = vsel %vm281, %v3202, 0
    %v3221 = vsel %vm281, %v3203, 0
    %v3224 = vsel %vm281, %v3204, 0
    %3226 = vmatpush.bf16.msra.mxu0 0
    %3227 = vmatpush.bf16.msra.mxu0 0
    %3228 = vmatpush.bf16.msra.mxu0 0
    %3229 = vmatpush.bf16.msra.mxu0 0
    %3230 = vmatpush.bf16.msra.mxu0 0
    %3231 = vmatpush.bf16.msra.mxu0 0
    %3232 = vmatpush.bf16.msra.mxu0 %v3211
    %3233 = vmatpush.bf16.msra.mxu0 %v3210
    %3234 = vmatmul.bf16.gmra.mxu0 %v3215
    %v3235 = vpop.f32.mrf.mxu0
    %v3236 = vadd.f32 %v3205, %v3235
    %v3237 = vpop.f32.mrf.mxu0
    %v3238 = vadd.f32 %v3205, %v3237
    %3239 = vmatmul.bf16.gmra.mxu0 %v3218
    %v3240 = vpop.f32.mrf.mxu0
    %v3241 = vadd.f32 %v3205, %v3240
    %v3242 = vpop.f32.mrf.mxu0
    %v3243 = vadd.f32 %v3205, %v3242
    %3244 = vmatmul.bf16.gmra.mxu0 %v3221
    %v3245 = vpop.f32.mrf.mxu0
    %v3246 = vadd.f32 %v3205, %v3245
    %v3247 = vpop.f32.mrf.mxu0
    %v3248 = vadd.f32 %v3205, %v3247
    %3249 = vmatmul.bf16.gmra.mxu0 %v3224
    %v3250 = vpop.f32.mrf.mxu0
    %v3251 = vadd.f32 %v3205, %v3250
    %v3252 = vpop.f32.mrf.mxu0
    %v3253 = vadd.f32 %v3205, %v3252
    %3254 = vdwg.mxu0
    %v3255 = vmul.f32 %v3236, 1.702
    %v3256 = vmul.f32 %v3238, 1.702
    %v3257 = vmul.f32 %v3241, 1.702
    %v3258 = vmul.f32 %v3243, 1.702
    %v3259 = vmul.f32 %v3246, 1.702
    %v3260 = vmul.f32 %v3248, 1.702
    %v3261 = vmul.f32 %v3251, 1.702
    %v3262 = vmul.f32 %v3253, 1.702
    %v3263 = vxor.u32 %v3255, 2147483648
    %v3264 = vxor.u32 %v3256, 2147483648
    %v3265 = vxor.u32 %v3257, 2147483648
    %v3266 = vxor.u32 %v3258, 2147483648
    %v3267 = vxor.u32 %v3259, 2147483648
    %v3268 = vxor.u32 %v3260, 2147483648
    %v3269 = vxor.u32 %v3261, 2147483648
    %v3270 = vxor.u32 %v3262, 2147483648
    %v3271 = vmul.f32 %v3263, 1.442695
    %v3272 = vpow.pop %v3271
    %v3273 = vmul.f32 %v3264, 1.442695
    %v3274 = vpow.pop %v3273
    %v3275 = vmul.f32 %v3265, 1.442695
    %v3276 = vpow.pop %v3275
    %v3277 = vmul.f32 %v3266, 1.442695
    %v3278 = vpow.pop %v3277
    %v3279 = vmul.f32 %v3267, 1.442695
    %v3280 = vpow.pop %v3279
    %v3281 = vmul.f32 %v3268, 1.442695
    %v3282 = vpow.pop %v3281
    %v3283 = vmul.f32 %v3269, 1.442695
    %v3284 = vpow.pop %v3283
    %v3285 = vmul.f32 %v3270, 1.442695
    %v3286 = vpow.pop %v3285
    %v3287 = vadd.f32 %v3272, 1.0
    %v3288 = vadd.f32 %v3274, 1.0
    %v3289 = vadd.f32 %v3276, 1.0
    %v3290 = vadd.f32 %v3278, 1.0
    %v3291 = vadd.f32 %v3280, 1.0
    %v3292 = vadd.f32 %v3282, 1.0
    %v3293 = vadd.f32 %v3284, 1.0
    %v3294 = vadd.f32 %v3286, 1.0
    %v3295 = vrcp.pop %v3287
    %v3296 = vmul.f32 %v3287, %v3295
    %v3297 = vsub.f32 1.0, %v3296
    %v3298 = vmul.f32 %v3295, %v3297
    %v3299 = vadd.f32 %v3295, %v3298
    %vm3300 = vweird.f32 %v3287
    %vm3301 = vweird.f32 %v3295
    %vm3302 = vmor %vm3300, %vm3301
    %v3303 = vsel %vm3302, %v3295, %v3299
    %v3304 = vand.u32 2147483647, %v3287
    %vm3305 = vcmp.eq.f32.partialorder %v3304, 8.507059e+37
    %v3306 = vand.u32 %v3287, 2147483648
    %v3307 = vor.u32 1.1754944e-38, %v3306
    %v3308 = vsel %vm3305, %v3307, %v3303
    %v3309 = vmul.f32 1.0, %v3308
    %v3310 = vrcp.pop %v3288
    %v3311 = vmul.f32 %v3288, %v3310
    %v3312 = vsub.f32 1.0, %v3311
    %v3313 = vmul.f32 %v3310, %v3312
    %v3314 = vadd.f32 %v3310, %v3313
    %vm3315 = vweird.f32 %v3288
    %vm3316 = vweird.f32 %v3310
    %vm3317 = vmor %vm3315, %vm3316
    %v3318 = vsel %vm3317, %v3310, %v3314
    %v3319 = vand.u32 2147483647, %v3288
    %vm3320 = vcmp.eq.f32.partialorder %v3319, 8.507059e+37
    %v3321 = vand.u32 %v3288, 2147483648
    %v3322 = vor.u32 1.1754944e-38, %v3321
    %v3323 = vsel %vm3320, %v3322, %v3318
    %v3324 = vmul.f32 1.0, %v3323
    %v3325 = vrcp.pop %v3289
    %v3326 = vmul.f32 %v3289, %v3325
    %v3327 = vsub.f32 1.0, %v3326
    %v3328 = vmul.f32 %v3325, %v3327
    %v3329 = vadd.f32 %v3325, %v3328
    %vm3330 = vweird.f32 %v3289
    %vm3331 = vweird.f32 %v3325
    %vm3332 = vmor %vm3330, %vm3331
    %v3333 = vsel %vm3332, %v3325, %v3329
    %v3334 = vand.u32 2147483647, %v3289
    %vm3335 = vcmp.eq.f32.partialorder %v3334, 8.507059e+37
    %v3336 = vand.u32 %v3289, 2147483648
    %v3337 = vor.u32 1.1754944e-38, %v3336
    %v3338 = vsel %vm3335, %v3337, %v3333
    %v3339 = vmul.f32 1.0, %v3338
    %v3340 = vrcp.pop %v3290
    %v3341 = vmul.f32 %v3290, %v3340
    %v3342 = vsub.f32 1.0, %v3341
    %v3343 = vmul.f32 %v3340, %v3342
    %v3344 = vadd.f32 %v3340, %v3343
    %vm3345 = vweird.f32 %v3290
    %vm3346 = vweird.f32 %v3340
    %vm3347 = vmor %vm3345, %vm3346
    %v3348 = vsel %vm3347, %v3340, %v3344
    %v3349 = vand.u32 2147483647, %v3290
    %vm3350 = vcmp.eq.f32.partialorder %v3349, 8.507059e+37
    %v3351 = vand.u32 %v3290, 2147483648
    %v3352 = vor.u32 1.1754944e-38, %v3351
    %v3353 = vsel %vm3350, %v3352, %v3348
    %v3354 = vmul.f32 1.0, %v3353
    %v3355 = vrcp.pop %v3291
    %v3356 = vmul.f32 %v3291, %v3355
    %v3357 = vsub.f32 1.0, %v3356
    %v3358 = vmul.f32 %v3355, %v3357
    %v3359 = vadd.f32 %v3355, %v3358
    %vm3360 = vweird.f32 %v3291
    %vm3361 = vweird.f32 %v3355
    %vm3362 = vmor %vm3360, %vm3361
    %v3363 = vsel %vm3362, %v3355, %v3359
    %v3364 = vand.u32 2147483647, %v3291
    %vm3365 = vcmp.eq.f32.partialorder %v3364, 8.507059e+37
    %v3366 = vand.u32 %v3291, 2147483648
    %v3367 = vor.u32 1.1754944e-38, %v3366
    %v3368 = vsel %vm3365, %v3367, %v3363
    %v3369 = vmul.f32 1.0, %v3368
    %v3370 = vrcp.pop %v3292
    %v3371 = vmul.f32 %v3292, %v3370
    %v3372 = vsub.f32 1.0, %v3371
    %v3373 = vmul.f32 %v3370, %v3372
    %v3374 = vadd.f32 %v3370, %v3373
    %vm3375 = vweird.f32 %v3292
    %vm3376 = vweird.f32 %v3370
    %vm3377 = vmor %vm3375, %vm3376
    %v3378 = vsel %vm3377, %v3370, %v3374
    %v3379 = vand.u32 2147483647, %v3292
    %vm3380 = vcmp.eq.f32.partialorder %v3379, 8.507059e+37
    %v3381 = vand.u32 %v3292, 2147483648
    %v3382 = vor.u32 1.1754944e-38, %v3381
    %v3383 = vsel %vm3380, %v3382, %v3378
    %v3384 = vmul.f32 1.0, %v3383
    %v3385 = vrcp.pop %v3293
    %v3386 = vmul.f32 %v3293, %v3385
    %v3387 = vsub.f32 1.0, %v3386
    %v3388 = vmul.f32 %v3385, %v3387
    %v3389 = vadd.f32 %v3385, %v3388
    %vm3390 = vweird.f32 %v3293
    %vm3391 = vweird.f32 %v3385
    %vm3392 = vmor %vm3390, %vm3391
    %v3393 = vsel %vm3392, %v3385, %v3389
    %v3394 = vand.u32 2147483647, %v3293
    %vm3395 = vcmp.eq.f32.partialorder %v3394, 8.507059e+37
    %v3396 = vand.u32 %v3293, 2147483648
    %v3397 = vor.u32 1.1754944e-38, %v3396
    %v3398 = vsel %vm3395, %v3397, %v3393
    %v3399 = vmul.f32 1.0, %v3398
    %v3400 = vrcp.pop %v3294
    %v3401 = vmul.f32 %v3294, %v3400
    %v3402 = vsub.f32 1.0, %v3401
    %v3403 = vmul.f32 %v3400, %v3402
    %v3404 = vadd.f32 %v3400, %v3403
    %vm3405 = vweird.f32 %v3294
    %vm3406 = vweird.f32 %v3400
    %vm3407 = vmor %vm3405, %vm3406
    %v3408 = vsel %vm3407, %v3400, %v3404
    %v3409 = vand.u32 2147483647, %v3294
    %vm3410 = vcmp.eq.f32.partialorder %v3409, 8.507059e+37
    %v3411 = vand.u32 %v3294, 2147483648
    %v3412 = vor.u32 1.1754944e-38, %v3411
    %v3413 = vsel %vm3410, %v3412, %v3408
    %v3414 = vmul.f32 1.0, %v3413
    %v3415 = vmul.f32 %v3236, %v3309
    %v3416 = vmul.f32 %v3238, %v3324
    %v3417 = vmul.f32 %v3241, %v3339
    %v3418 = vmul.f32 %v3243, %v3354
    %v3419 = vmul.f32 %v3246, %v3369
    %v3420 = vmul.f32 %v3248, %v3384
    %v3421 = vmul.f32 %v3251, %v3399
    %v3422 = vmul.f32 %v3253, %v3414
    %v3423 = vpack.c.bf16 %v3416, %v3415
    %v3424 = vpack.c.bf16 %v3418, %v3417
    %v3425 = vpack.c.bf16 %v3420, %v3419
    %v3426 = vpack.c.bf16 %v3422, %v3421
    %v3435 = vunpack.c.l.b16 %v2001
    %v3436 = vunpack.c.l.b16 %v2002
    %v3437 = vunpack.c.l.b16 %v2003
    %v3438 = vunpack.c.l.b16 %v2004
    %v3439 = vunpack.c.l.b16 %v2005
    %v3440 = vunpack.c.l.b16 %v2006
    %v3441 = vunpack.c.l.b16 %v2007
    %v3442 = vunpack.c.l.b16 %v2008
    %v3443 = vpack.c.b16 %v3436, %v3435
    %v3444 = vpack.c.b16 %v3438, %v3437
    %v3445 = vpack.c.b16 %v3440, %v3439
    %v3446 = vpack.c.b16 %v3442, %v3441
    %v3452 = vsel %vm208, %v3423, 0
    %v3455 = vsel %vm208, %v3424, 0
    %v3458 = vsel %vm208, %v3425, 0
    %v3461 = vsel %vm208, %v3426, 0
    %3463 = vmatpush.bf16.msra.mxu0 0
    %3464 = vmatpush.bf16.msra.mxu0 0
    %3465 = vmatpush.bf16.msra.mxu0 0
    %3466 = vmatpush.bf16.msra.mxu0 0
    %3467 = vmatpush.bf16.msra.mxu0 %v3446
    %3468 = vmatpush.bf16.msra.mxu0 %v3445
    %3469 = vmatpush.bf16.msra.mxu0 %v3444
    %3470 = vmatpush.bf16.msra.mxu0 %v3443
    %3471 = vmatmul.bf16.gmra.mxu0 %v3452
    %v3472 = vpop.f32.mrf.mxu0
    %v3473 = vadd.f32 0.0, %v3472
    %v3474 = vpop.f32.mrf.mxu0
    %3475 = vmatmul.bf16.gmra.mxu0 %v3455
    %v3476 = vpop.f32.mrf.mxu0
    %v3477 = vpop.f32.mrf.mxu0
    %3478 = vmatmul.bf16.gmra.mxu0 %v3458
    %v3479 = vpop.f32.mrf.mxu0
    %v3480 = vadd.f32 0.0, %v3479
    %v3481 = vpop.f32.mrf.mxu0
    %3482 = vmatmul.bf16.gmra.mxu0 %v3461
    %v3483 = vpop.f32.mrf.mxu0
    %v3484 = vpop.f32.mrf.mxu0
    %3485 = vdwg.mxu0
    %v3486 = vadd.f32 %v2999, %v3473
    %v3487 = vadd.f32 %v3003, %v3480
    %v3488 = vperm.slane %v2010, 7
    %v3489 = vadd.f32 %v3486, %v3488
    %v3490 = vadd.f32 %v3487, %v3488
    %v3492 = vrot.slane %v3490, 7
    %vm3494 = vcmask 1040384
    %v3495 = vsel %vm3494, %v3489, %v3492
    %v3496 = vld [vmem:[%s6 + $0x2] sm:$0x1]
    %v3497 = vld [vmem:[%s6 + $0x3] sm:$0x1]
    %vm3498 = vcmask 254976
    %v3499 = vsel %vm3498, %v3495, 0.0
    %3500 = vadd.xlane.f32.xlu0 %v3499
    %v3501 = vpop.xlane.xlu0 %3500
    %v3502 = vmul.f32 %v3501, %v312
    %v3503 = vsub.f32 %v3495, %v3502
    %v3504 = vmul.f32 %v3503, %v3503
    %v3505 = vsel %vm3498, %v3504, 0.0
    %3506 = vadd.xlane.f32.xlu0 %v3505
    %v3507 = vpop.xlane.xlu0 %3506
    %v3508 = vmul.f32 %v3507, %v312
    %v3509 = vadd.f32 %v3508, 1e-05
    %v3510 = vrsqrt.pop %v3509
    %v3511 = vmul.f32 %v3510, %v3509
    %v3512 = vmul.f32 %v3511, %v3510
    %v3513 = vmul.f32 0.5, %v3512
    %v3514 = vsub.f32 1.5, %v3513
    %v3515 = vmul.f32 %v3510, %v3514
    %vm3516 = vweird.f32 %v3509
    %vm3517 = vweird.f32 %v3510
    %vm3518 = vmor %vm3516, %vm3517
    %v3519 = vsel %vm3518, %v3510, %v3515
    %v3520 = vmul.f32 %v3503, %v3519
    %v3521 = vperm.slane %v3496, 0
    %v3522 = vmul.f32 %v3520, %v3521
    %v3523 = vperm.slane %v3497, 0
    %v3524 = vadd.f32 %v3522, %v3523
    %v3525 = vld [vmem:[%s6 + $0x8] sm:$0xff]
    %v3526 = vld [vmem:[%s6 + $0x10] sm:$0xff]
    %v3527 = vld [vmem:[%s6 + $0x18] sm:$0xff]
    %v3528 = vld [vmem:[%s6 + $0x20] sm:$0xff]
    %v3530 = vsel %vm281, %v3524, 0
    %3532 = vmatpush.msra.mxu0 0.0
    %3533 = vmatpush.msra.mxu0 0.0
    %3534 = vmatpush.msra.mxu0 0.0
    %3535 = vmatpush.msra.mxu0 0.0
    %3536 = vmatpush.msra.mxu0 0.0
    %3537 = vmatpush.msra.mxu0 0.0
    %3538 = vmatpush.msra.mxu0 0.0
    %3539 = vmatpush.msra.mxu0 0.0
    %3540 = vmatpush.msra.mxu0 0.0
    %3541 = vmatpush.msra.mxu0 0.0
    %3542 = vmatpush.msra.mxu0 0.0
    %3543 = vmatpush.msra.mxu0 0.0
    %3544 = vmatpush.msra.mxu0 %v3528
    %3545 = vmatpush.msra.mxu0 %v3527
    %3546 = vmatpush.msra.mxu0 %v3526
    %3547 = vmatpush.msra.mxu0 %v3525
    %3548 = vmatmul.f32.gmra.mxu0 %v3530
    %v3549 = vpop.f32.mrf.mxu0
    %v3550 = vadd.f32 0.0, %v3549
    %3551 = vdwg.mxu0
    %v3552 = vmul.f32 %v3550, %v3550
    %vm3553 = vcmask 123904
    %v3554 = vsel %vm3553, %v3552, 0.0
    %3555 = vadd.xlane.f32.xlu0 %v3554
    %v3556 = vpop.xlane.xlu0 %3555
    %v3557 = vmax.f32 %v3556, 1e-24
    %v3558 = vrsqrt.pop %v3557
    %v3559 = vmul.f32 %v3558, %v3557
    %v3560 = vmul.f32 %v3559, %v3558
    %v3561 = vmul.f32 0.5, %v3560
    %v3562 = vsub.f32 1.5, %v3561
    %v3563 = vmul.f32 %v3558, %v3562
    %vm3564 = vweird.f32 %v3557
    %vm3565 = vweird.f32 %v3558
    %vm3566 = vmor %vm3564, %vm3565
    %v3567 = vsel %vm3566, %v3558, %v3563
    %v3568 = vmul.f32 %v3550, %v3567
    %v3569 = vld [vmem:[%s6 + $0x28] sm:$0xff]
    %v3570 = vld [vmem:[%s6 + $0x30] sm:$0xff]
    %v3572 = vsel %vm768, %v3568, 0
    %3574 = vmatpush.msra.mxu0 0.0
    %3575 = vmatpush.msra.mxu0 0.0
    %3576 = vmatpush.msra.mxu0 0.0
    %3577 = vmatpush.msra.mxu0 0.0
    %3578 = vmatpush.msra.mxu0 0.0
    %3579 = vmatpush.msra.mxu0 0.0
    %3580 = vmatpush.msra.mxu0 0.0
    %3581 = vmatpush.msra.mxu0 0.0
    %3582 = vmatpush.msra.mxu0 0.0
    %3583 = vmatpush.msra.mxu0 0.0
    %3584 = vmatpush.msra.mxu0 0.0
    %3585 = vmatpush.msra.mxu0 0.0
    %3586 = vmatpush.msra.mxu0 0.0
    %3587 = vmatpush.msra.mxu0 0.0
    %3588 = vmatpush.msra.mxu0 %v3570
    %3589 = vmatpush.msra.mxu0 %v3569
    %3590 = vmatmul.f32.gmra.mxu0 %v3572
    %v3591 = vpop.f32.mrf.mxu0
    %v3592 = vadd.f32 0.0, %v3591
    %3593 = vdwg.mxu0
    %3594 = vst [vmem:[#allocation2] sm:$0x3] %v3592
    // Predicated region
    $region30: #{clip_zero_shot_forward.1} parent=1 // pred_check
      _
    $region31: #{clip_zero_shot_forward.1} parent=1 // pred_check_branch
      %3596 = sbr.rel (0) target = $region33
    $region32: #{clip_zero_shot_forward.1} parent=1 // pred_region
      %3598 = vsyncadd [#allocation3], 0
      %s3600 = sshll.u32 [#allocation2], 4
      %s3601 = int_to_ptr.vmem [resolvable:$true] %s3600
      %s3602 = sshll.u32 %s7, 4
      %s3603 = int_to_ptr.hbm [resolvable:$true] %s3602
      %3605 = dma.vmem_to_hbm [thread:$0]  %s3601, 32, %s3603, [#allocation3]
    $region33: #{clip_zero_shot_forward.1} parent=1 // pred_fallthru
      _
    // Predicated region
    $region34: #{clip_zero_shot_forward.1} parent=1 // pred_check
      _
    $region35: #{clip_zero_shot_forward.1} parent=1 // pred_check_branch
      %3607 = sbr.rel (0) target = $region37
    $region36: #{clip_zero_shot_forward.1} parent=1 // pred_region
      %3609 = dma.done [#allocation3], 32
    $region37: #{clip_zero_shot_forward.1} parent=1 // pred_fallthru
      _
    %3610 = vsyncpa [#allocation3], 1

</llo_original>
